<compile_context>
chip_gen: v6e
topology: v6e:2x2x1
jax: 0.10.0
libtpu: 0.0.40
codegen_flags: <defaults>
</compile_context>

<pallas_src>
import functools

import jax
import jax.numpy as jnp
from jax import lax
from jax.experimental import pallas as pl
from jax.experimental.pallas import tpu as pltpu

EPS = 1e-5   # nn.SyncBatchNorm default eps
K = 3        # filter_size
PAD = 1      # padding


def _round_up(x, m):
    return (x + m - 1) // m * m


# ----------------------------- Pallas kernel --------------------------------
def _double_conv_kernel(H, W, Wt, x_ref, w1_ref, b1_ref, w2_ref, b2_ref,
                        o_ref, ic_ref, y1_ref):
    """Fused (conv3x3 + folded-BN + ReLU) x 2 for one batch element.

    Buffer convention ("padded grid"): a layer input buffer of shape
    (H+4, Wt, C) holds the zero-padded activation at [i, j] = act[i-2, j-2];
    planes 1 / H+2 and columns 1 / W+2 are the zero conv halo, plane 0 / H+3,
    column 0 and columns >= W+3 are don't-care (never read by valid outputs).
    Because Wt % 8 == 0, the (plane, width) axes flatten for free and each
    3x3 tap is a dense slice of the flat view at offset (kh+1)*Wt + (kw-1).

    x_ref  : (H+4, Wt, Cin)        bf16  pre-padded input (true Cin)
    w1_ref : (9*Cin,  Cmid)        bf16  BN1 scale folded in
    b1_ref : (1, Cmid)             f32   folded BN1 bias
    w2_ref : (9*Cmid, Cout)        bf16  BN2 scale folded in
    b2_ref : (1, Cout)             f32   folded BN2 bias
    o_ref  : (H, W, Cout)          f32   output (true Cout)
    ic_ref : (H*Wt, 9*max(Cin,Cmid)) bf16  shared im2col scratch
    y1_ref : (H+4, Wt, Cmid)       bf16  intermediate activation (+ halo)
    """
    cin = x_ref.shape[-1]
    cmid = w1_ref.shape[-1]
    cout = w2_ref.shape[-1]
    M = H * Wt                      # dot rows: (h, j) -> output (h, j - 2)

    def conv_bn_relu(src_ref, c, w_ref, b_ref):
        # Flat view of the padded grid (free: Wt is a multiple of 8).
        src = src_ref[...].reshape((H + 4) * Wt, c)
        # Build the (M, 9*c) im2col matrix: one aligned-length stripe per tap.
        for kh in range(K):
            for kw in range(K):
                tap = kh * K + kw
                d = (kh + 1) * Wt + (kw - 1)
                ic_ref[:, tap * c:(tap + 1) * c] = src[d:d + M, :]
        # Single MXU dot with K = 9*c, f32 accumulation inside the MXU.
        acc = jnp.dot(ic_ref[:, :K * K * c], w_ref[...],
                      preferred_element_type=jnp.float32)
        return jnp.maximum(acc + b_ref[...], 0.0)          # (M, layer_out) f32

    # ---- layer 1: conv + folded BN + ReLU -----------------------------------
    y1 = conv_bn_relu(x_ref, cin, w1_ref, b1_ref)
    # Store into the intermediate padded-grid buffer (plane-aligned, full
    # width), then zero only the 1-pixel halo ring (not the whole buffer).
    y1_ref[2:H + 2, :, :] = y1.reshape(H, Wt, cmid).astype(y1_ref.dtype)
    zrow = jnp.zeros((1, Wt, cmid), y1_ref.dtype)
    zcol = jnp.zeros((H + 4, 1, cmid), y1_ref.dtype)
    y1_ref[1:2, :, :] = zrow
    y1_ref[H + 2:H + 3, :, :] = zrow
    y1_ref[:, 1:2, :] = zcol
    y1_ref[:, W + 2:W + 3, :] = zcol

    # ---- layer 2 -------------------------------------------------------------
    y2 = conv_bn_relu(y1_ref, cmid, w2_ref, b2_ref)
    o_ref[...] = y2.reshape(H, Wt, cout)[:, 2:W + 2, :].astype(o_ref.dtype)


# ------------------------------ glue (JAX) -----------------------------------
def _fold_bn(w_oihw, conv_b, gamma, beta, mean, var):
    """Fold inference-mode BN into the conv.

    Returns (K*K*Cin, Cout) bf16 weights (row = (kh*3+kw)*Cin + ci, BN scale
    folded) and a (1, Cout) f32 bias.  No channel padding.
    """
    co = w_oihw.shape[0]
    scale = gamma * lax.rsqrt(var + EPS)                      # (Cout,)
    bias = beta + (conv_b - mean) * scale                     # (Cout,)
    w = jnp.transpose(w_oihw, (2, 3, 1, 0)) * scale           # (kh,kw,ci,co)
    w = w.reshape(-1, co)
    return w.astype(jnp.bfloat16), bias.reshape(1, co).astype(jnp.float32)


def double_conv_forward(x_nchw, p):
    B, Cin, H, W = x_nchw.shape
    Cmid = p["w1"].shape[0]
    Cout = p["w2"].shape[0]
    Wt = _round_up(W + 3, 8)          # padded grid width (multiple of 8)
    M = H * Wt
    Cmax = max(Cin, Cmid)

    # NCHW -> NHWC + padded-grid spatial pad + bf16 cast (one fused XLA op).
    # rows: 1 don't-care + 1 halo before, 1 halo + 1 don't-care after
    # cols: 1 don't-care + 1 halo before, 1 halo + (Wt-W-3) don't-care after
    x = jnp.transpose(x_nchw, (0, 2, 3, 1))
    xp = jnp.pad(x, ((0, 0), (2, 2), (2, Wt - W - 2), (0, 0)))
    xp = xp.astype(jnp.bfloat16)

    w1f, b1 = _fold_bn(p["w1"], p["b1"], p["g1"], p["be1"], p["m1"], p["v1"])
    w2f, b2 = _fold_bn(p["w2"], p["b2"], p["g2"], p["be2"], p["m2"], p["v2"])

    flops = 2 * B * M * K * K * (Cin * Cmid + Cmid * Cout)
    bytes_accessed = (B * (H + 4) * Wt * Cin * 2
                      + K * K * (Cin * Cmid + Cmid * Cout) * 2
                      + (Cmid + Cout) * 4
                      + B * H * W * Cout * 4)

    # VMEM budget derived from actual block / scratch sizes (+ slack for the
    # in-kernel temporaries), capped below the generation's physical VMEM.
    blk_bytes = ((H + 4) * Wt * Cin * 2 + H * W * Cout * 4
                 + K * K * (Cin * Cmid + Cmid * Cout) * 2 + (Cmid + Cout) * 4)
    scratch_bytes = M * K * K * Cmax * 2 + (H + 4) * Wt * Cmid * 2
    tmp_bytes = 4 * M * max(Cmax, Cout) * 4 + (H + 4) * Wt * Cmax * 4
    need = 2 * blk_bytes + scratch_bytes + tmp_bytes
    try:
        vmem_cap = pltpu.get_tpu_info().vmem_capacity_bytes
    except Exception:
        vmem_cap = 64 * 1024 * 1024
    vmem_limit = int(min(max(2 * need, 32 * 1024 * 1024),
                         int(0.75 * vmem_cap)))

    kernel = functools.partial(_double_conv_kernel, H, W, Wt)
    out = pl.pallas_call(
        kernel,
        out_shape=jax.ShapeDtypeStruct((B, H, W, Cout), jnp.float32),
        grid=(B,),
        in_specs=[
            pl.BlockSpec((None, H + 4, Wt, Cin), lambda b: (b, 0, 0, 0)),
            pl.BlockSpec((K * K * Cin, Cmid), lambda b: (0, 0)),
            pl.BlockSpec((1, Cmid), lambda b: (0, 0)),
            pl.BlockSpec((K * K * Cmid, Cout), lambda b: (0, 0)),
            pl.BlockSpec((1, Cout), lambda b: (0, 0)),
        ],
        out_specs=pl.BlockSpec((None, H, W, Cout), lambda b: (b, 0, 0, 0)),
        scratch_shapes=[
            pltpu.VMEM((M, K * K * Cmax), jnp.bfloat16),      # shared im2col
            pltpu.VMEM((H + 4, Wt, Cmid), jnp.bfloat16),      # intermediate
        ],
        compiler_params=pltpu.CompilerParams(
            dimension_semantics=("parallel",),
            vmem_limit_bytes=vmem_limit),
        cost_estimate=pl.CostEstimate(
            flops=flops, transcendentals=0, bytes_accessed=bytes_accessed),
    )(xp, w1f, b1, w2f, b2)

    return jnp.transpose(out, (0, 3, 1, 2))      # NHWC -> NCHW (module API)


# --------------------------- pure-JAX reference ------------------------------
def _ref_step(x, w, b, g, be, m, v):
    y = lax.conv_general_dilated(
        x, w, window_strides=(1, 1), padding=((PAD, PAD), (PAD, PAD)),
        dimension_numbers=("NCHW", "OIHW", "NCHW"))
    y = y + b[None, :, None, None]
    y = (y - m[None, :, None, None]) * lax.rsqrt(v + EPS)[None, :, None, None]
    y = y * g[None, :, None, None] + be[None, :, None, None]
    return jnp.maximum(y, 0.0)


def double_conv_reference(x_nchw, p):
    y = _ref_step(x_nchw, p["w1"], p["b1"], p["g1"], p["be1"], p["m1"], p["v1"])
    y = _ref_step(y, p["w2"], p["b2"], p["g2"], p["be2"], p["m2"], p["v2"])
    return y


# --------------------------------- main --------------------------------------
if __name__ == "__main__":
    B, Cin, Cout, H, W = 2, 4, 8, 16, 16

    key = jax.random.PRNGKey(0)
    ks = jax.random.split(key, 13)

    params = {
        # conv1: Conv2d(Cin -> Cout, 3, 1, 1)   weight OIHW, bias (Cout,)
        "w1": 0.1 * jax.random.normal(ks[0], (Cout, Cin, K, K), jnp.float32),
        "b1": 0.1 * jax.random.normal(ks[1], (Cout,), jnp.float32),
        # bn1: SyncBatchNorm(Cout), inference running stats
        "g1": 1.0 + 0.1 * jax.random.normal(ks[2], (Cout,), jnp.float32),
        "be1": 0.1 * jax.random.normal(ks[3], (Cout,), jnp.float32),
        "m1": 0.05 * jax.random.normal(ks[4], (Cout,), jnp.float32),
        "v1": 0.5 + jnp.abs(jax.random.normal(ks[5], (Cout,), jnp.float32)),
        # conv2: Conv2d(Cout -> Cout, 3, 1, 1)
        "w2": 0.1 * jax.random.normal(ks[6], (Cout, Cout, K, K), jnp.float32),
        "b2": 0.1 * jax.random.normal(ks[7], (Cout,), jnp.float32),
        # bn2
        "g2": 1.0 + 0.1 * jax.random.normal(ks[8], (Cout,), jnp.float32),
        "be2": 0.1 * jax.random.normal(ks[9], (Cout,), jnp.float32),
        "m2": 0.05 * jax.random.normal(ks[10], (Cout,), jnp.float32),
        "v2": 0.5 + jnp.abs(jax.random.normal(ks[11], (Cout,), jnp.float32)),
    }

    x = jax.random.normal(ks[12], (B, Cin, H, W), jnp.float32)

    out = jax.jit(double_conv_forward)(x, params)
    out = jax.block_until_ready(out)

    ref = jax.block_until_ready(double_conv_reference(x, params))

    assert out.shape == (B, Cout, H, W), out.shape
    # bf16 MXU inputs / bf16 intermediate (f32 accumulation) -> relaxed
    # tolerance vs. the end-to-end f32 reference.
    assert jnp.allclose(out, ref, rtol=5e-2, atol=5e-2), float(
        jnp.max(jnp.abs(out - ref)))

    print("KERNEL_OK")
</pallas_src>

<mosaic_0001>
module attributes {stable_mosaic.version = 11 : i64} {
  func.func @_double_conv_kernel(%arg0: i32, %arg1: memref<1x20x24x4xbf16, #tpu.memory_space<vmem>>, %arg2: memref<36x8xbf16, #tpu.memory_space<vmem>>, %arg3: memref<1x8xf32, #tpu.memory_space<vmem>>, %arg4: memref<72x8xbf16, #tpu.memory_space<vmem>>, %arg5: memref<1x8xf32, #tpu.memory_space<vmem>>, %arg6: memref<1x16x16x8xf32, #tpu.memory_space<vmem>>, %arg7: memref<384x72xbf16, #tpu.memory_space<vmem>>, %arg8: memref<20x24x8xbf16, #tpu.memory_space<vmem>>) attributes {dimension_semantics = [#tpu.dimension_semantics<parallel>], iteration_bounds = array<i64: 2>, scalar_prefetch = 0 : i64, scratch_operands = 2 : i64, tpu.core_type = #tpu.core_type<tc>, window_params = [{transform_indices = @transform_0, window_bounds = array<i64: 1, 20, 24, 4>}, {pipeline_mode = #tpu.pipeline_mode<synchronous>, transform_indices = @transform_1, window_bounds = array<i64: 36, 8>}, {pipeline_mode = #tpu.pipeline_mode<synchronous>, transform_indices = @transform_2, window_bounds = array<i64: 1, 8>}, {pipeline_mode = #tpu.pipeline_mode<synchronous>, transform_indices = @transform_3, window_bounds = array<i64: 72, 8>}, {pipeline_mode = #tpu.pipeline_mode<synchronous>, transform_indices = @transform_4, window_bounds = array<i64: 1, 8>}, {transform_indices = @transform_5, window_bounds = array<i64: 1, 16, 16, 8>}]} {
    %c0 = arith.constant 0 : index
    %c0_0 = arith.constant 0 : index
    %c0_1 = arith.constant 0 : index
    %c0_2 = arith.constant 0 : index
    %0 = vector.load %arg1[%c0, %c0_0, %c0_1, %c0_2] : memref<1x20x24x4xbf16, #tpu.memory_space<vmem>>, vector<1x20x24x4xbf16>
    %1 = vector.shape_cast %0 : vector<1x20x24x4xbf16> to vector<20x24x4xbf16>
    %2 = vector.shape_cast %1 : vector<20x24x4xbf16> to vector<480x4xbf16>
    %3 = vector.extract_strided_slice %2 {offsets = [23, 0], sizes = [384, 4], strides = [1, 1]} : vector<480x4xbf16> to vector<384x4xbf16>
    %c0_3 = arith.constant 0 : index
    %c0_4 = arith.constant 0 : index
    %4 = vector.load %arg7[%c0_3, %c0_4] : memref<384x72xbf16, #tpu.memory_space<vmem>>, vector<384x4xbf16>
    tpu.vector_store %arg7[%c0_3, %c0_4], %3 {strides = array<i32>} : memref<384x72xbf16, #tpu.memory_space<vmem>>, vector<384x4xbf16>,
    %5 = vector.extract_strided_slice %2 {offsets = [24, 0], sizes = [384, 4], strides = [1, 1]} : vector<480x4xbf16> to vector<384x4xbf16>
    %c0_5 = arith.constant 0 : index
    %c4 = arith.constant 4 : index
    %6 = vector.load %arg7[%c0_5, %c4] : memref<384x72xbf16, #tpu.memory_space<vmem>>, vector<384x4xbf16>
    tpu.vector_store %arg7[%c0_5, %c4], %5 {strides = array<i32>} : memref<384x72xbf16, #tpu.memory_space<vmem>>, vector<384x4xbf16>,
    %7 = vector.extract_strided_slice %2 {offsets = [25, 0], sizes = [384, 4], strides = [1, 1]} : vector<480x4xbf16> to vector<384x4xbf16>
    %c0_6 = arith.constant 0 : index
    %c8 = arith.constant 8 : index
    %8 = vector.load %arg7[%c0_6, %c8] : memref<384x72xbf16, #tpu.memory_space<vmem>>, vector<384x4xbf16>
    tpu.vector_store %arg7[%c0_6, %c8], %7 {strides = array<i32>} : memref<384x72xbf16, #tpu.memory_space<vmem>>, vector<384x4xbf16>,
    %9 = vector.extract_strided_slice %2 {offsets = [47, 0], sizes = [384, 4], strides = [1, 1]} : vector<480x4xbf16> to vector<384x4xbf16>
    %c0_7 = arith.constant 0 : index
    %c12 = arith.constant 12 : index
    %10 = vector.load %arg7[%c0_7, %c12] : memref<384x72xbf16, #tpu.memory_space<vmem>>, vector<384x4xbf16>
    tpu.vector_store %arg7[%c0_7, %c12], %9 {strides = array<i32>} : memref<384x72xbf16, #tpu.memory_space<vmem>>, vector<384x4xbf16>,
    %11 = vector.extract_strided_slice %2 {offsets = [48, 0], sizes = [384, 4], strides = [1, 1]} : vector<480x4xbf16> to vector<384x4xbf16>
    %c0_8 = arith.constant 0 : index
    %c16 = arith.constant 16 : index
    %12 = vector.load %arg7[%c0_8, %c16] : memref<384x72xbf16, #tpu.memory_space<vmem>>, vector<384x4xbf16>
    tpu.vector_store %arg7[%c0_8, %c16], %11 {strides = array<i32>} : memref<384x72xbf16, #tpu.memory_space<vmem>>, vector<384x4xbf16>,
    %13 = vector.extract_strided_slice %2 {offsets = [49, 0], sizes = [384, 4], strides = [1, 1]} : vector<480x4xbf16> to vector<384x4xbf16>
    %c0_9 = arith.constant 0 : index
    %c20 = arith.constant 20 : index
    %14 = vector.load %arg7[%c0_9, %c20] : memref<384x72xbf16, #tpu.memory_space<vmem>>, vector<384x4xbf16>
    tpu.vector_store %arg7[%c0_9, %c20], %13 {strides = array<i32>} : memref<384x72xbf16, #tpu.memory_space<vmem>>, vector<384x4xbf16>,
    %15 = vector.extract_strided_slice %2 {offsets = [71, 0], sizes = [384, 4], strides = [1, 1]} : vector<480x4xbf16> to vector<384x4xbf16>
    %c0_10 = arith.constant 0 : index
    %c24 = arith.constant 24 : index
    %16 = vector.load %arg7[%c0_10, %c24] : memref<384x72xbf16, #tpu.memory_space<vmem>>, vector<384x4xbf16>
    tpu.vector_store %arg7[%c0_10, %c24], %15 {strides = array<i32>} : memref<384x72xbf16, #tpu.memory_space<vmem>>, vector<384x4xbf16>,
    %17 = vector.extract_strided_slice %2 {offsets = [72, 0], sizes = [384, 4], strides = [1, 1]} : vector<480x4xbf16> to vector<384x4xbf16>
    %c0_11 = arith.constant 0 : index
    %c28 = arith.constant 28 : index
    %18 = vector.load %arg7[%c0_11, %c28] : memref<384x72xbf16, #tpu.memory_space<vmem>>, vector<384x4xbf16>
    tpu.vector_store %arg7[%c0_11, %c28], %17 {strides = array<i32>} : memref<384x72xbf16, #tpu.memory_space<vmem>>, vector<384x4xbf16>,
    %19 = vector.extract_strided_slice %2 {offsets = [73, 0], sizes = [384, 4], strides = [1, 1]} : vector<480x4xbf16> to vector<384x4xbf16>
    %c0_12 = arith.constant 0 : index
    %c32 = arith.constant 32 : index
    %20 = vector.load %arg7[%c0_12, %c32] : memref<384x72xbf16, #tpu.memory_space<vmem>>, vector<384x4xbf16>
    tpu.vector_store %arg7[%c0_12, %c32], %19 {strides = array<i32>} : memref<384x72xbf16, #tpu.memory_space<vmem>>, vector<384x4xbf16>,
    %c0_13 = arith.constant 0 : index
    %c0_14 = arith.constant 0 : index
    %21 = vector.load %arg7[%c0_13, %c0_14] : memref<384x72xbf16, #tpu.memory_space<vmem>>, vector<384x36xbf16>
    %c0_15 = arith.constant 0 : index
    %c0_16 = arith.constant 0 : index
    %22 = vector.load %arg2[%c0_15, %c0_16] : memref<36x8xbf16, #tpu.memory_space<vmem>>, vector<36x8xbf16>
    %cst = arith.constant dense<0.000000e+00> : vector<384x8xf32>
    %23 = tpu.matmul %21, %22, %cst {dimension_numbers = #tpu.dot_dimension_numbers<[1], [0], [0], [1], [0, 0, 1, 1], [], []>} : vector<384x36xbf16>, vector<36x8xbf16>, vector<384x8xf32> -> vector<384x8xf32>
    %c0_17 = arith.constant 0 : index
    %c0_18 = arith.constant 0 : index
    %24 = vector.load %arg3[%c0_17, %c0_18] : memref<1x8xf32, #tpu.memory_space<vmem>>, vector<1x8xf32>
    %25 = vector.broadcast %24 : vector<1x8xf32> to vector<384x8xf32>
    %26 = arith.addf %23, %25 : vector<384x8xf32>
    %cst_19 = arith.constant 0.000000e+00 : f32
    %27 = vector.broadcast %cst_19 : f32 to vector<384x8xf32>
    %28 = arith.maximumf %26, %27 : vector<384x8xf32>
    %29 = vector.shape_cast %28 : vector<384x8xf32> to vector<16x24x8xf32>
    %30 = arith.truncf %29 : vector<16x24x8xf32> to vector<16x24x8xbf16>
    %c2 = arith.constant 2 : index
    %c0_20 = arith.constant 0 : index
    %c0_21 = arith.constant 0 : index
    %31 = vector.load %arg8[%c2, %c0_20, %c0_21] : memref<20x24x8xbf16, #tpu.memory_space<vmem>>, vector<16x24x8xbf16>
    tpu.vector_store %arg8[%c2, %c0_20, %c0_21], %30 {strides = array<i32>} : memref<20x24x8xbf16, #tpu.memory_space<vmem>>, vector<16x24x8xbf16>,
    %cst_22 = arith.constant 0.000000e+00 : bf16
    %32 = vector.broadcast %cst_22 : bf16 to vector<1x24x8xbf16>
    %cst_23 = arith.constant 0.000000e+00 : bf16
    %33 = vector.broadcast %cst_23 : bf16 to vector<20x1x8xbf16>
    %c1 = arith.constant 1 : index
    %c0_24 = arith.constant 0 : index
    %c0_25 = arith.constant 0 : index
    %34 = vector.load %arg8[%c1, %c0_24, %c0_25] : memref<20x24x8xbf16, #tpu.memory_space<vmem>>, vector<1x24x8xbf16>
    tpu.vector_store %arg8[%c1, %c0_24, %c0_25], %32 {strides = array<i32>} : memref<20x24x8xbf16, #tpu.memory_space<vmem>>, vector<1x24x8xbf16>,
    %c18 = arith.constant 18 : index
    %c0_26 = arith.constant 0 : index
    %c0_27 = arith.constant 0 : index
    %35 = vector.load %arg8[%c18, %c0_26, %c0_27] : memref<20x24x8xbf16, #tpu.memory_space<vmem>>, vector<1x24x8xbf16>
    tpu.vector_store %arg8[%c18, %c0_26, %c0_27], %32 {strides = array<i32>} : memref<20x24x8xbf16, #tpu.memory_space<vmem>>, vector<1x24x8xbf16>,
    %c0_28 = arith.constant 0 : index
    %c1_29 = arith.constant 1 : index
    %c0_30 = arith.constant 0 : index
    %36 = vector.load %arg8[%c0_28, %c1_29, %c0_30] : memref<20x24x8xbf16, #tpu.memory_space<vmem>>, vector<20x1x8xbf16>
    tpu.vector_store %arg8[%c0_28, %c1_29, %c0_30], %33 {strides = array<i32>} : memref<20x24x8xbf16, #tpu.memory_space<vmem>>, vector<20x1x8xbf16>,
    %c0_31 = arith.constant 0 : index
    %c18_32 = arith.constant 18 : index
    %c0_33 = arith.constant 0 : index
    %37 = vector.load %arg8[%c0_31, %c18_32, %c0_33] : memref<20x24x8xbf16, #tpu.memory_space<vmem>>, vector<20x1x8xbf16>
    tpu.vector_store %arg8[%c0_31, %c18_32, %c0_33], %33 {strides = array<i32>} : memref<20x24x8xbf16, #tpu.memory_space<vmem>>, vector<20x1x8xbf16>,
    %c0_34 = arith.constant 0 : index
    %c0_35 = arith.constant 0 : index
    %c0_36 = arith.constant 0 : index
    %38 = vector.load %arg8[%c0_34, %c0_35, %c0_36] : memref<20x24x8xbf16, #tpu.memory_space<vmem>>, vector<20x24x8xbf16>
    %39 = vector.shape_cast %38 : vector<20x24x8xbf16> to vector<480x8xbf16>
    %40 = vector.extract_strided_slice %39 {offsets = [23, 0], sizes = [384, 8], strides = [1, 1]} : vector<480x8xbf16> to vector<384x8xbf16>
    %c0_37 = arith.constant 0 : index
    %c0_38 = arith.constant 0 : index
    %41 = vector.load %arg7[%c0_37, %c0_38] : memref<384x72xbf16, #tpu.memory_space<vmem>>, vector<384x8xbf16>
    tpu.vector_store %arg7[%c0_37, %c0_38], %40 {strides = array<i32>} : memref<384x72xbf16, #tpu.memory_space<vmem>>, vector<384x8xbf16>,
    %42 = vector.extract_strided_slice %39 {offsets = [24, 0], sizes = [384, 8], strides = [1, 1]} : vector<480x8xbf16> to vector<384x8xbf16>
    %c0_39 = arith.constant 0 : index
    %c8_40 = arith.constant 8 : index
    %43 = vector.load %arg7[%c0_39, %c8_40] : memref<384x72xbf16, #tpu.memory_space<vmem>>, vector<384x8xbf16>
    tpu.vector_store %arg7[%c0_39, %c8_40], %42 {strides = array<i32>} : memref<384x72xbf16, #tpu.memory_space<vmem>>, vector<384x8xbf16>,
    %44 = vector.extract_strided_slice %39 {offsets = [25, 0], sizes = [384, 8], strides = [1, 1]} : vector<480x8xbf16> to vector<384x8xbf16>
    %c0_41 = arith.constant 0 : index
    %c16_42 = arith.constant 16 : index
    %45 = vector.load %arg7[%c0_41, %c16_42] : memref<384x72xbf16, #tpu.memory_space<vmem>>, vector<384x8xbf16>
    tpu.vector_store %arg7[%c0_41, %c16_42], %44 {strides = array<i32>} : memref<384x72xbf16, #tpu.memory_space<vmem>>, vector<384x8xbf16>,
    %46 = vector.extract_strided_slice %39 {offsets = [47, 0], sizes = [384, 8], strides = [1, 1]} : vector<480x8xbf16> to vector<384x8xbf16>
    %c0_43 = arith.constant 0 : index
    %c24_44 = arith.constant 24 : index
    %47 = vector.load %arg7[%c0_43, %c24_44] : memref<384x72xbf16, #tpu.memory_space<vmem>>, vector<384x8xbf16>
    tpu.vector_store %arg7[%c0_43, %c24_44], %46 {strides = array<i32>} : memref<384x72xbf16, #tpu.memory_space<vmem>>, vector<384x8xbf16>,
    %48 = vector.extract_strided_slice %39 {offsets = [48, 0], sizes = [384, 8], strides = [1, 1]} : vector<480x8xbf16> to vector<384x8xbf16>
    %c0_45 = arith.constant 0 : index
    %c32_46 = arith.constant 32 : index
    %49 = vector.load %arg7[%c0_45, %c32_46] : memref<384x72xbf16, #tpu.memory_space<vmem>>, vector<384x8xbf16>
    tpu.vector_store %arg7[%c0_45, %c32_46], %48 {strides = array<i32>} : memref<384x72xbf16, #tpu.memory_space<vmem>>, vector<384x8xbf16>,
    %50 = vector.extract_strided_slice %39 {offsets = [49, 0], sizes = [384, 8], strides = [1, 1]} : vector<480x8xbf16> to vector<384x8xbf16>
    %c0_47 = arith.constant 0 : index
    %c40 = arith.constant 40 : index
    %51 = vector.load %arg7[%c0_47, %c40] : memref<384x72xbf16, #tpu.memory_space<vmem>>, vector<384x8xbf16>
    tpu.vector_store %arg7[%c0_47, %c40], %50 {strides = array<i32>} : memref<384x72xbf16, #tpu.memory_space<vmem>>, vector<384x8xbf16>,
    %52 = vector.extract_strided_slice %39 {offsets = [71, 0], sizes = [384, 8], strides = [1, 1]} : vector<480x8xbf16> to vector<384x8xbf16>
    %c0_48 = arith.constant 0 : index
    %c48 = arith.constant 48 : index
    %53 = vector.load %arg7[%c0_48, %c48] : memref<384x72xbf16, #tpu.memory_space<vmem>>, vector<384x8xbf16>
    tpu.vector_store %arg7[%c0_48, %c48], %52 {strides = array<i32>} : memref<384x72xbf16, #tpu.memory_space<vmem>>, vector<384x8xbf16>,
    %54 = vector.extract_strided_slice %39 {offsets = [72, 0], sizes = [384, 8], strides = [1, 1]} : vector<480x8xbf16> to vector<384x8xbf16>
    %c0_49 = arith.constant 0 : index
    %c56 = arith.constant 56 : index
    %55 = vector.load %arg7[%c0_49, %c56] : memref<384x72xbf16, #tpu.memory_space<vmem>>, vector<384x8xbf16>
    tpu.vector_store %arg7[%c0_49, %c56], %54 {strides = array<i32>} : memref<384x72xbf16, #tpu.memory_space<vmem>>, vector<384x8xbf16>,
    %56 = vector.extract_strided_slice %39 {offsets = [73, 0], sizes = [384, 8], strides = [1, 1]} : vector<480x8xbf16> to vector<384x8xbf16>
    %c0_50 = arith.constant 0 : index
    %c64 = arith.constant 64 : index
    %57 = vector.load %arg7[%c0_50, %c64] : memref<384x72xbf16, #tpu.memory_space<vmem>>, vector<384x8xbf16>
    tpu.vector_store %arg7[%c0_50, %c64], %56 {strides = array<i32>} : memref<384x72xbf16, #tpu.memory_space<vmem>>, vector<384x8xbf16>,
    %c0_51 = arith.constant 0 : index
    %c0_52 = arith.constant 0 : index
    %58 = vector.load %arg7[%c0_51, %c0_52] : memref<384x72xbf16, #tpu.memory_space<vmem>>, vector<384x72xbf16>
    %c0_53 = arith.constant 0 : index
    %c0_54 = arith.constant 0 : index
    %59 = vector.load %arg4[%c0_53, %c0_54] : memref<72x8xbf16, #tpu.memory_space<vmem>>, vector<72x8xbf16>
    %cst_55 = arith.constant dense<0.000000e+00> : vector<384x8xf32>
    %60 = tpu.matmul %58, %59, %cst_55 {dimension_numbers = #tpu.dot_dimension_numbers<[1], [0], [0], [1], [0, 0, 1, 1], [], []>} : vector<384x72xbf16>, vector<72x8xbf16>, vector<384x8xf32> -> vector<384x8xf32>
    %c0_56 = arith.constant 0 : index
    %c0_57 = arith.constant 0 : index
    %61 = vector.load %arg5[%c0_56, %c0_57] : memref<1x8xf32, #tpu.memory_space<vmem>>, vector<1x8xf32>
    %62 = vector.broadcast %61 : vector<1x8xf32> to vector<384x8xf32>
    %63 = arith.addf %60, %62 : vector<384x8xf32>
    %cst_58 = arith.constant 0.000000e+00 : f32
    %64 = vector.broadcast %cst_58 : f32 to vector<384x8xf32>
    %65 = arith.maximumf %63, %64 : vector<384x8xf32>
    %66 = vector.shape_cast %65 : vector<384x8xf32> to vector<16x24x8xf32>
    %67 = vector.extract_strided_slice %66 {offsets = [0, 2, 0], sizes = [16, 16, 8], strides = [1, 1, 1]} : vector<16x24x8xf32> to vector<16x16x8xf32>
    %c0_59 = arith.constant 0 : index
    %c0_60 = arith.constant 0 : index
    %c0_61 = arith.constant 0 : index
    %c0_62 = arith.constant 0 : index
    %68 = vector.load %arg6[%c0_59, %c0_60, %c0_61, %c0_62] : memref<1x16x16x8xf32, #tpu.memory_space<vmem>>, vector<1x16x16x8xf32>
    %69 = vector.shape_cast %68 : vector<1x16x16x8xf32> to vector<16x16x8xf32>
    %70 = vector.shape_cast %67 : vector<16x16x8xf32> to vector<1x16x16x8xf32>
    tpu.vector_store %arg6[%c0_59, %c0_60, %c0_61, %c0_62], %70 {strides = array<i32>} : memref<1x16x16x8xf32, #tpu.memory_space<vmem>>, vector<1x16x16x8xf32>,
    return
  }
  func.func @transform_0(%arg0: i32) -> (i32, i32, i32, i32) {
    %c0_i32 = arith.constant 0 : i32
    %c0_i32_0 = arith.constant 0 : i32
    %c0_i32_1 = arith.constant 0 : i32
    %c0_i32_2 = arith.constant 0 : i32
    return %arg0, %c0_i32, %c0_i32_0, %c0_i32_1 : i32, i32, i32, i32
  }
  func.func @transform_1(%arg0: i32) -> (i32, i32) {
    %c0_i32 = arith.constant 0 : i32
    %c0_i32_0 = arith.constant 0 : i32
    %c0_i32_1 = arith.constant 0 : i32
    return %c0_i32, %c0_i32_0 : i32, i32
  }
  func.func @transform_2(%arg0: i32) -> (i32, i32) {
    %c0_i32 = arith.constant 0 : i32
    %c0_i32_0 = arith.constant 0 : i32
    %c0_i32_1 = arith.constant 0 : i32
    return %c0_i32, %c0_i32_0 : i32, i32
  }
  func.func @transform_3(%arg0: i32) -> (i32, i32) {
    %c0_i32 = arith.constant 0 : i32
    %c0_i32_0 = arith.constant 0 : i32
    %c0_i32_1 = arith.constant 0 : i32
    return %c0_i32, %c0_i32_0 : i32, i32
  }
  func.func @transform_4(%arg0: i32) -> (i32, i32) {
    %c0_i32 = arith.constant 0 : i32
    %c0_i32_0 = arith.constant 0 : i32
    %c0_i32_1 = arith.constant 0 : i32
    return %c0_i32, %c0_i32_0 : i32, i32
  }
  func.func @transform_5(%arg0: i32) -> (i32, i32, i32, i32) {
    %c0_i32 = arith.constant 0 : i32
    %c0_i32_0 = arith.constant 0 : i32
    %c0_i32_1 = arith.constant 0 : i32
    %c0_i32_2 = arith.constant 0 : i32
    return %arg0, %c0_i32, %c0_i32_0, %c0_i32_1 : i32, i32, i32, i32
  }
}

</mosaic_0001>

<llo_original>
// kernel: double_conv_forward.1
$region0: #{double_conv_forward.1}
  #allocation0 [shape = 'u32[]', space=smem, size = 0x4, offset = 0x4, fixed_abs, tag = 'smem constant byte address 0x4 - core index']
  #allocation1 [shape = 'u32[144,128]{1,0:T(1,128)}', space=vmem, size = 0x12000, scoped, tag = 'internal scratch']
  #allocation2 [shape = 'bf16[384,72]{1,0:T(8,128)(2,1)}', space=vmem, size = 0x18000, scoped, tag = 'scratch operand']
  #allocation3 [shape = 'bf16[20,24,8]{2,1,0:T(8,128)(2,1)}', space=vmem, size = 0x1e000, scoped, tag = 'scratch operand']
  %s0 = inlined_call_operand.vmem [shape: bf16[2,20,24,4], index: 0, kind: input, shape index: {}]
  %s1 = inlined_call_operand.vmem [shape: bf16[36,8], index: 1, kind: input, shape index: {}]
  %s2 = inlined_call_operand.vmem [shape: f32[1,8], index: 2, kind: input, shape index: {}]
  %s3 = inlined_call_operand.vmem [shape: bf16[72,8], index: 3, kind: input, shape index: {}]
  %s4 = inlined_call_operand.vmem [shape: f32[1,8], index: 4, kind: input, shape index: {}]
  %s5 = inlined_call_operand.vmem [shape: f32[2,16,16,8], index: 5, kind: output, shape index: {}]
  %s6 = sld [smem:[#allocation0]]
  $region53: #{double_conv_forward.1} parent=0
    _
  %s8 = ssub.s32 1, %s6
  %s9 = scalar_select 0, %s8, %s6
  loop: start=0, step=1, limit=4
  $region2: #{double_conv_forward.1} parent=0 // loop_pre_header
    _
  $region3: #{double_conv_forward.1} parent=0 // loop_header
    %s11 = sphi 0, %s15
    %p12 = scmp.ge.s32.totalorder %s11, 4
    %s21 = sphi 0, %s23
    %s24 = sphi 0, %s21
    %s25 = sphi 0, %s24
    %s41 = sphi 0, %s25
    %s45 = sphi 0, %s45
    %s47 = sphi 0, %s45
    %s48 = sphi 0, %s47
    %s62 = sphi 0, %s48
    %s66 = sphi 0, %s66
    %s68 = sphi 0, %s66
    %s69 = sphi 0, %s68
    %s83 = sphi 0, %s69
    %s87 = sphi 0, %s87
    %s89 = sphi 0, %s87
    %s90 = sphi 0, %s89
    %s104 = sphi 0, %s90
    %s108 = sphi 0, %s108
    %s110 = sphi 0, %s108
    %s111 = sphi 0, %s110
    %s125 = sphi 0, %s111
    %s131 = sphi 0, %s133
    %s134 = sphi 0, %s131
    %s135 = sphi 0, %s134
    %s151 = sphi 0, %s135
  $region4: #{double_conv_forward.1} parent=0 // loop_header_branch
    %14 = sbr.rel (%p12) target = $region8
  $region5: #{double_conv_forward.1} parent=0 // loop_body
    %s16 = ssub.s32 %s11, 1
    %s17 = ssub.s32 %s11, 2
    %s18 = sadd.s32 %s11, 1
    %s19 = ssub.s32 %s11, %s18
    %p20 = scmp.eq.s32.totalorder %s19, 0
    %s22 = sadd.s32 %s21, 1
    %s23 = scalar_select %p20, %s21, %s22
    %p26 = pneg %p20
    %p27 = scmp.eq.s32.totalorder %s11, 1
    %p28 = por %p26, %p27
    %p29 = scmp.ne.s32.totalorder %s21, %s24
    %p30 = scmp.eq.s32.totalorder %s11, 0
    %p31 = por %p29, %p30
    %p32 = scmp.ne.s32.totalorder %s21, %s24
    %p33 = scmp.eq.s32.totalorder %s16, 1
    %p34 = por %p32, %p33
    %p35 = scmp.ne.s32.totalorder %s24, %s25
    %p36 = scmp.eq.s32.totalorder %s16, 0
    %p37 = por %p35, %p36
    %p38 = scmp.ne.s32.totalorder %s24, %s25
    %p39 = scmp.eq.s32.totalorder %s17, 1
    %p40 = por %p38, %p39
    %p42 = scmp.ne.s32.totalorder %s25, %s41
    %p43 = scmp.eq.s32.totalorder %s17, 0
    %p44 = por %p42, %p43
    %s46 = sadd.s32 %s45, 1
    %p49 = scmp.eq.s32.totalorder %s11, 1
    %p50 = scmp.ne.s32.totalorder %s45, %s47
    %p51 = scmp.eq.s32.totalorder %s11, 0
    %p52 = por %p50, %p51
    %p53 = scmp.ne.s32.totalorder %s45, %s47
    %p54 = scmp.eq.s32.totalorder %s16, 1
    %p55 = por %p53, %p54
    %p56 = scmp.ne.s32.totalorder %s47, %s48
    %p57 = scmp.eq.s32.totalorder %s16, 0
    %p58 = por %p56, %p57
    %p59 = scmp.ne.s32.totalorder %s47, %s48
    %p60 = scmp.eq.s32.totalorder %s17, 1
    %p61 = por %p59, %p60
    %p63 = scmp.ne.s32.totalorder %s48, %s62
    %p64 = scmp.eq.s32.totalorder %s17, 0
    %p65 = por %p63, %p64
    %s67 = sadd.s32 %s66, 1
    %p70 = scmp.eq.s32.totalorder %s11, 1
    %p71 = scmp.ne.s32.totalorder %s66, %s68
    %p72 = scmp.eq.s32.totalorder %s11, 0
    %p73 = por %p71, %p72
    %p74 = scmp.ne.s32.totalorder %s66, %s68
    %p75 = scmp.eq.s32.totalorder %s16, 1
    %p76 = por %p74, %p75
    %p77 = scmp.ne.s32.totalorder %s68, %s69
    %p78 = scmp.eq.s32.totalorder %s16, 0
    %p79 = por %p77, %p78
    %p80 = scmp.ne.s32.totalorder %s68, %s69
    %p81 = scmp.eq.s32.totalorder %s17, 1
    %p82 = por %p80, %p81
    %p84 = scmp.ne.s32.totalorder %s69, %s83
    %p85 = scmp.eq.s32.totalorder %s17, 0
    %p86 = por %p84, %p85
    %s88 = sadd.s32 %s87, 1
    %p91 = scmp.eq.s32.totalorder %s11, 1
    %p92 = scmp.ne.s32.totalorder %s87, %s89
    %p93 = scmp.eq.s32.totalorder %s11, 0
    %p94 = por %p92, %p93
    %p95 = scmp.ne.s32.totalorder %s87, %s89
    %p96 = scmp.eq.s32.totalorder %s16, 1
    %p97 = por %p95, %p96
    %p98 = scmp.ne.s32.totalorder %s89, %s90
    %p99 = scmp.eq.s32.totalorder %s16, 0
    %p100 = por %p98, %p99
    %p101 = scmp.ne.s32.totalorder %s89, %s90
    %p102 = scmp.eq.s32.totalorder %s17, 1
    %p103 = por %p101, %p102
    %p105 = scmp.ne.s32.totalorder %s90, %s104
    %p106 = scmp.eq.s32.totalorder %s17, 0
    %p107 = por %p105, %p106
    %s109 = sadd.s32 %s108, 1
    %p112 = scmp.eq.s32.totalorder %s11, 1
    %p113 = scmp.ne.s32.totalorder %s108, %s110
    %p114 = scmp.eq.s32.totalorder %s11, 0
    %p115 = por %p113, %p114
    %p116 = scmp.ne.s32.totalorder %s108, %s110
    %p117 = scmp.eq.s32.totalorder %s16, 1
    %p118 = por %p116, %p117
    %p119 = scmp.ne.s32.totalorder %s110, %s111
    %p120 = scmp.eq.s32.totalorder %s16, 0
    %p121 = por %p119, %p120
    %p122 = scmp.ne.s32.totalorder %s110, %s111
    %p123 = scmp.eq.s32.totalorder %s17, 1
    %p124 = por %p122, %p123
    %p126 = scmp.ne.s32.totalorder %s111, %s125
    %p127 = scmp.eq.s32.totalorder %s17, 0
    %p128 = por %p126, %p127
    %s129 = ssub.s32 %s11, %s18
    %p130 = scmp.eq.s32.totalorder %s129, 0
    %s132 = sadd.s32 %s131, 1
    %s133 = scalar_select %p130, %s131, %s132
    %p136 = pneg %p130
    %p137 = scmp.eq.s32.totalorder %s11, 1
    %p138 = por %p136, %p137
    %p139 = scmp.ne.s32.totalorder %s131, %s134
    %p140 = scmp.eq.s32.totalorder %s11, 0
    %p141 = por %p139, %p140
    %p142 = scmp.ne.s32.totalorder %s131, %s134
    %p143 = scmp.eq.s32.totalorder %s16, 1
    %p144 = por %p142, %p143
    %p145 = scmp.ne.s32.totalorder %s134, %s135
    %p146 = scmp.eq.s32.totalorder %s16, 0
    %p147 = por %p145, %p146
    %p148 = scmp.ne.s32.totalorder %s134, %s135
    %p149 = scmp.eq.s32.totalorder %s17, 1
    %p150 = por %p148, %p149
    %p152 = scmp.ne.s32.totalorder %s135, %s151
    %p153 = scmp.eq.s32.totalorder %s17, 0
    %p154 = por %p152, %p153
    %p155 = scmp.le.s32.totalorder 1, %s11
    %p156 = scmp.lt.s32.totalorder %s11, 3
    %p157 = pnand %p155, %p156
    %p158 = pneg %p157
    // Predicated region
    $region9: #{double_conv_forward.1} parent=5 // pred_check
      _
    $region10: #{double_conv_forward.1} parent=5 // pred_check_branch
      %160 = sbr.rel (%p157) target = $region12
    $region11: #{double_conv_forward.1} parent=5 // pred_region
      %s161 = ssub.s32 %s11, 1
      // Predicated region
      $region13: #{double_conv_forward.1} parent=11 // pred_check
        %p162 = pneg %p58
      $region14: #{double_conv_forward.1} parent=11 // pred_check_branch
        %164 = sbr.rel (%p162) target = $region16
      $region15: #{double_conv_forward.1} parent=11 // pred_region
        _
      $region16: #{double_conv_forward.1} parent=11 // pred_fallthru
        _
      // Predicated region
      $region17: #{double_conv_forward.1} parent=11 // pred_check
        %p165 = pneg %p79
      $region18: #{double_conv_forward.1} parent=11 // pred_check_branch
        %167 = sbr.rel (%p165) target = $region20
      $region19: #{double_conv_forward.1} parent=11 // pred_region
        _
      $region20: #{double_conv_forward.1} parent=11 // pred_fallthru
        _
      // Predicated region
      $region21: #{double_conv_forward.1} parent=11 // pred_check
        %p168 = pneg %p100
      $region22: #{double_conv_forward.1} parent=11 // pred_check_branch
        %170 = sbr.rel (%p168) target = $region24
      $region23: #{double_conv_forward.1} parent=11 // pred_region
        _
      $region24: #{double_conv_forward.1} parent=11 // pred_fallthru
        _
      // Predicated region
      $region25: #{double_conv_forward.1} parent=11 // pred_check
        %p171 = pneg %p121
      $region26: #{double_conv_forward.1} parent=11 // pred_check_branch
        %173 = sbr.rel (%p171) target = $region28
      $region27: #{double_conv_forward.1} parent=11 // pred_region
        _
      $region28: #{double_conv_forward.1} parent=11 // pred_fallthru
        _
    $region12: #{double_conv_forward.1} parent=5 // pred_fallthru
      _
    %p174 = scmp.lt.s32.totalorder %s11, 2
    // Predicated region
    $region29: #{double_conv_forward.1} parent=5 // pred_check
      %p175 = pneg %p174
    $region30: #{double_conv_forward.1} parent=5 // pred_check_branch
      %177 = sbr.rel (%p175) target = $region32
    $region31: #{double_conv_forward.1} parent=5 // pred_region
      // Predicated region
      $region33: #{double_conv_forward.1} parent=31 // pred_check
        %p178 = pneg %p31
      $region34: #{double_conv_forward.1} parent=31 // pred_check_branch
        %180 = sbr.rel (%p178) target = $region36
      $region35: #{double_conv_forward.1} parent=31 // pred_region
        %p181 = scmp.lt.s32.totalorder %s11, 1
        %s182 = scalar_select %p181, %s11, 1
        %s183 = smul.addr %s182, 60
        %s184 = smul.addr %s183, 4
        %s185 = scalar_lea.vmem %s0, %s184
      $region36: #{double_conv_forward.1} parent=31 // pred_fallthru
        _
    $region32: #{double_conv_forward.1} parent=5 // pred_fallthru
      _
    %p186 = scmp.le.s32.totalorder 1, %s11
    %p187 = scmp.lt.s32.totalorder %s11, 3
    %p188 = pnand %p186, %p187
    %p189 = pneg %p188
    // Predicated region
    $region37: #{double_conv_forward.1} parent=5 // pred_check
      _
    $region38: #{double_conv_forward.1} parent=5 // pred_check_branch
      %191 = sbr.rel (%p188) target = $region40
    $region39: #{double_conv_forward.1} parent=5 // pred_region
      %s192 = ssub.s32 %s11, 1
      %p193 = scmp.lt.s32.totalorder %s16, 1
      %s194 = scalar_select %p193, %s16, 1
      %s195 = smul.addr %s194, 60
      %s196 = smul.addr %s195, 4
      %s197 = scalar_lea.vmem %s0, %s196
      %p198 = pneg %p37
      %p199 = pneg %p34
      %p200 = pneg %p58
      %p201 = pneg %p55
      %p202 = pneg %p79
      %p203 = pneg %p76
      %p204 = pneg %p100
      %p205 = pneg %p97
      %p206 = pneg %p121
      %p207 = pneg %p118
      %p208 = pneg %p147
      %p209 = pneg %p144
      %p210 = scmp.lt.s32.totalorder %s16, 1
      %s211 = scalar_select %p210, %s16, 1
      %s212 = smul.addr %s211, 32
      %s213 = smul.addr %s212, 8
      %s214 = scalar_lea.vmem %s5, %s213
      %p215 = scmp.lt.s32.totalorder %s16, 1
      %s216 = scalar_select %p215, %s16, 1
      %s217 = smul.addr %s216, 60
      %s218 = smul.addr %s217, 4
      %s219 = scalar_lea.vmem %s0, %s218
      %p220 = scmp.lt.s32.totalorder %s16, 1
      %s221 = scalar_select %p220, %s16, 1
      %s222 = smul.addr %s221, 32
      %s223 = smul.addr %s222, 8
      %s224 = scalar_lea.vmem %s5, %s223
      %v226 = vld [vmem:[%s219 + $0x8] sm:$0xf]
      %v227 = vld [vmem:[%s219 + $0xc] sm:$0xf]
      %v228 = vld [vmem:[%s219 + $0x10] sm:$0xf]
      %v229 = vld [vmem:[%s219 + $0x14] sm:$0xf]
      %v230 = vld [vmem:[%s219 + $0x18] sm:$0xf]
      %v231 = vld [vmem:[%s219 + $0x1c] sm:$0xf]
      %v232 = vld [vmem:[%s219 + $0x20] sm:$0xf]
      %v233 = vld [vmem:[%s219 + $0x24] sm:$0xf]
      %v234 = vld [vmem:[%s219 + $0x28] sm:$0xf]
      %v235 = vld [vmem:[%s219 + $0x2c] sm:$0xf]
      %v236 = vld [vmem:[%s219 + $0x30] sm:$0xf]
      %v237 = vld [vmem:[%s219 + $0x34] sm:$0xf]
      %v238 = vld [vmem:[%s219 + $0x38] sm:$0xf]
      %v239 = vld [vmem:[%s219 + $0x3c] sm:$0xf]
      %v240 = vld [vmem:[%s219 + $0x40] sm:$0xf]
      %v241 = vld [vmem:[%s219 + $0x44] sm:$0xf]
      %v242 = vld [vmem:[%s219 + $0x48] sm:$0xf]
      %v243 = vld [vmem:[%s219 + $0x4c] sm:$0xf]
      %v244 = vld [vmem:[%s219 + $0x50] sm:$0xf]
      %v245 = vld [vmem:[%s219 + $0x54] sm:$0xf]
      %v246 = vld [vmem:[%s219 + $0x58] sm:$0xf]
      %v247 = vld [vmem:[%s219 + $0x5c] sm:$0xf]
      %v248 = vld [vmem:[%s219 + $0x60] sm:$0xf]
      %v249 = vld [vmem:[%s219 + $0x64] sm:$0xf]
      %v250 = vld [vmem:[%s219 + $0x68] sm:$0xf]
      %v251 = vld [vmem:[%s219 + $0x6c] sm:$0xf]
      %v252 = vld [vmem:[%s219 + $0x70] sm:$0xf]
      %v253 = vld [vmem:[%s219 + $0x74] sm:$0xf]
      %v254 = vld [vmem:[%s219 + $0x78] sm:$0xf]
      %v255 = vld [vmem:[%s219 + $0x7c] sm:$0xf]
      %v256 = vld [vmem:[%s219 + $0x80] sm:$0xf]
      %v257 = vld [vmem:[%s219 + $0x84] sm:$0xf]
      %v258 = vld [vmem:[%s219 + $0x88] sm:$0xf]
      %v259 = vld [vmem:[%s219 + $0x8c] sm:$0xf]
      %v260 = vld [vmem:[%s219 + $0x90] sm:$0xf]
      %v261 = vld [vmem:[%s219 + $0x94] sm:$0xf]
      %v262 = vld [vmem:[%s219 + $0x98] sm:$0xf]
      %v263 = vld [vmem:[%s219 + $0x9c] sm:$0xf]
      %v264 = vld [vmem:[%s219 + $0xa0] sm:$0xf]
      %v265 = vld [vmem:[%s219 + $0xa4] sm:$0xf]
      %v266 = vld [vmem:[%s219 + $0xa8] sm:$0xf]
      %v267 = vld [vmem:[%s219 + $0xac] sm:$0xf]
      %v268 = vld [vmem:[%s219 + $0xb0] sm:$0xf]
      %v269 = vld [vmem:[%s219 + $0xb4] sm:$0xf]
      %v270 = vld [vmem:[%s219 + $0xb8] sm:$0xf]
      %v271 = vld [vmem:[%s219 + $0xbc] sm:$0xf]
      %v272 = vld [vmem:[%s219 + $0xc0] sm:$0xf]
      %v273 = vld [vmem:[%s219 + $0xc4] sm:$0xf]
      %v274 = vld [vmem:[%s219 + $0xc8] sm:$0xf]
      %v275 = vld [vmem:[%s219 + $0xcc] sm:$0xf]
      %v276 = vld [vmem:[%s219 + $0xd0] sm:$0xf]
      %v277 = vld [vmem:[%s219 + $0xd4] sm:$0xf]
      %v278 = vld [vmem:[%s219 + $0xd8] sm:$0xf]
      %v279 = vld [vmem:[%s219 + $0xdc] sm:$0xf]
      %v280 = vld [vmem:[%s219 + $0xe0] sm:$0xf]
      %v281 = vld [vmem:[%s219 + $0xe4] sm:$0xf]
      %vm282 = vsmask.f32 256
      %vm283 = vsmask.f32 4368
      %vm284 = vmor %vm282, %vm283
      %v286 = vshrl.u32 %v226, 16
      %v288 = vrot.slane %v286, 7
      %v289 = vrot.slane %v288, 4
      %v291 = vshrl.u32 %v227, 16
      %v293 = vrot.slane %v291, 7
      %v294 = vshll.u32 %v227, 16
      %v296 = vor.u32 %v293, %v294
      %v297 = vsel %vm284, %v289, %v296
      %v298 = vrot.slane %v293, 4
      %v300 = vshrl.u32 %v228, 16
      %v302 = vrot.slane %v300, 7
      %v303 = vshll.u32 %v228, 16
      %v305 = vor.u32 %v302, %v303
      %v306 = vsel %vm284, %v298, %v305
      %v307 = vrot.slane %v302, 4
      %v309 = vshrl.u32 %v229, 16
      %v311 = vrot.slane %v309, 7
      %v312 = vshll.u32 %v229, 16
      %v314 = vor.u32 %v311, %v312
      %v315 = vsel %vm284, %v307, %v314
      %v316 = vrot.slane %v311, 4
      %v318 = vshrl.u32 %v230, 16
      %v320 = vrot.slane %v318, 7
      %v321 = vshll.u32 %v230, 16
      %v323 = vor.u32 %v320, %v321
      %v324 = vsel %vm284, %v316, %v323
      %v325 = vrot.slane %v320, 4
      %v327 = vshrl.u32 %v231, 16
      %v329 = vrot.slane %v327, 7
      %v330 = vshll.u32 %v231, 16
      %v332 = vor.u32 %v329, %v330
      %v333 = vsel %vm284, %v325, %v332
      %v334 = vrot.slane %v329, 4
      %v336 = vshrl.u32 %v232, 16
      %v338 = vrot.slane %v336, 7
      %v339 = vshll.u32 %v232, 16
      %v341 = vor.u32 %v338, %v339
      %v342 = vsel %vm284, %v334, %v341
      %v343 = vrot.slane %v338, 4
      %v345 = vshrl.u32 %v233, 16
      %v347 = vrot.slane %v345, 7
      %v348 = vshll.u32 %v233, 16
      %v350 = vor.u32 %v347, %v348
      %v351 = vsel %vm284, %v343, %v350
      %v352 = vrot.slane %v347, 4
      %v354 = vshrl.u32 %v234, 16
      %v356 = vrot.slane %v354, 7
      %v357 = vshll.u32 %v234, 16
      %v359 = vor.u32 %v356, %v357
      %v360 = vsel %vm284, %v352, %v359
      %v361 = vrot.slane %v356, 4
      %v363 = vshrl.u32 %v235, 16
      %v365 = vrot.slane %v363, 7
      %v366 = vshll.u32 %v235, 16
      %v368 = vor.u32 %v365, %v366
      %v369 = vsel %vm284, %v361, %v368
      %v370 = vrot.slane %v365, 4
      %v372 = vshrl.u32 %v236, 16
      %v374 = vrot.slane %v372, 7
      %v375 = vshll.u32 %v236, 16
      %v377 = vor.u32 %v374, %v375
      %v378 = vsel %vm284, %v370, %v377
      %v379 = vrot.slane %v374, 4
      %v381 = vshrl.u32 %v237, 16
      %v383 = vrot.slane %v381, 7
      %v384 = vshll.u32 %v237, 16
      %v386 = vor.u32 %v383, %v384
      %v387 = vsel %vm284, %v379, %v386
      %v388 = vrot.slane %v383, 4
      %v390 = vshrl.u32 %v238, 16
      %v392 = vrot.slane %v390, 7
      %v393 = vshll.u32 %v238, 16
      %v395 = vor.u32 %v392, %v393
      %v396 = vsel %vm284, %v388, %v395
      %v397 = vrot.slane %v392, 4
      %v399 = vshrl.u32 %v239, 16
      %v401 = vrot.slane %v399, 7
      %v402 = vshll.u32 %v239, 16
      %v404 = vor.u32 %v401, %v402
      %v405 = vsel %vm284, %v397, %v404
      %v406 = vrot.slane %v401, 4
      %v408 = vshrl.u32 %v240, 16
      %v410 = vrot.slane %v408, 7
      %v411 = vshll.u32 %v240, 16
      %v413 = vor.u32 %v410, %v411
      %v414 = vsel %vm284, %v406, %v413
      %v415 = vrot.slane %v410, 4
      %v417 = vshrl.u32 %v241, 16
      %v419 = vrot.slane %v417, 7
      %v420 = vshll.u32 %v241, 16
      %v422 = vor.u32 %v419, %v420
      %v423 = vsel %vm284, %v415, %v422
      %v424 = vrot.slane %v419, 4
      %v426 = vshrl.u32 %v242, 16
      %v428 = vrot.slane %v426, 7
      %v429 = vshll.u32 %v242, 16
      %v431 = vor.u32 %v428, %v429
      %v432 = vsel %vm284, %v424, %v431
      %v433 = vrot.slane %v428, 4
      %v435 = vshrl.u32 %v243, 16
      %v437 = vrot.slane %v435, 7
      %v438 = vshll.u32 %v243, 16
      %v440 = vor.u32 %v437, %v438
      %v441 = vsel %vm284, %v433, %v440
      %v442 = vrot.slane %v437, 4
      %v444 = vshrl.u32 %v244, 16
      %v446 = vrot.slane %v444, 7
      %v447 = vshll.u32 %v244, 16
      %v449 = vor.u32 %v446, %v447
      %v450 = vsel %vm284, %v442, %v449
      %v451 = vrot.slane %v446, 4
      %v453 = vshrl.u32 %v245, 16
      %v455 = vrot.slane %v453, 7
      %v456 = vshll.u32 %v245, 16
      %v458 = vor.u32 %v455, %v456
      %v459 = vsel %vm284, %v451, %v458
      %v460 = vrot.slane %v455, 4
      %v462 = vshrl.u32 %v246, 16
      %v464 = vrot.slane %v462, 7
      %v465 = vshll.u32 %v246, 16
      %v467 = vor.u32 %v464, %v465
      %v468 = vsel %vm284, %v460, %v467
      %v469 = vrot.slane %v464, 4
      %v471 = vshrl.u32 %v247, 16
      %v473 = vrot.slane %v471, 7
      %v474 = vshll.u32 %v247, 16
      %v476 = vor.u32 %v473, %v474
      %v477 = vsel %vm284, %v469, %v476
      %v478 = vrot.slane %v473, 4
      %v480 = vshrl.u32 %v248, 16
      %v482 = vrot.slane %v480, 7
      %v483 = vshll.u32 %v248, 16
      %v485 = vor.u32 %v482, %v483
      %v486 = vsel %vm284, %v478, %v485
      %v487 = vrot.slane %v482, 4
      %v489 = vshrl.u32 %v249, 16
      %v491 = vrot.slane %v489, 7
      %v492 = vshll.u32 %v249, 16
      %v494 = vor.u32 %v491, %v492
      %v495 = vsel %vm284, %v487, %v494
      %v496 = vrot.slane %v491, 4
      %v498 = vshrl.u32 %v250, 16
      %v500 = vrot.slane %v498, 7
      %v501 = vshll.u32 %v250, 16
      %v503 = vor.u32 %v500, %v501
      %v504 = vsel %vm284, %v496, %v503
      %v505 = vrot.slane %v500, 4
      %v507 = vshrl.u32 %v251, 16
      %v509 = vrot.slane %v507, 7
      %v510 = vshll.u32 %v251, 16
      %v512 = vor.u32 %v509, %v510
      %v513 = vsel %vm284, %v505, %v512
      %v514 = vrot.slane %v509, 4
      %v516 = vshrl.u32 %v252, 16
      %v518 = vrot.slane %v516, 7
      %v519 = vshll.u32 %v252, 16
      %v521 = vor.u32 %v518, %v519
      %v522 = vsel %vm284, %v514, %v521
      %v523 = vrot.slane %v518, 4
      %v525 = vshrl.u32 %v253, 16
      %v527 = vrot.slane %v525, 7
      %v528 = vshll.u32 %v253, 16
      %v530 = vor.u32 %v527, %v528
      %v531 = vsel %vm284, %v523, %v530
      %v532 = vrot.slane %v527, 4
      %v534 = vshrl.u32 %v254, 16
      %v536 = vrot.slane %v534, 7
      %v537 = vshll.u32 %v254, 16
      %v539 = vor.u32 %v536, %v537
      %v540 = vsel %vm284, %v532, %v539
      %v541 = vrot.slane %v536, 4
      %v543 = vshrl.u32 %v255, 16
      %v545 = vrot.slane %v543, 7
      %v546 = vshll.u32 %v255, 16
      %v548 = vor.u32 %v545, %v546
      %v549 = vsel %vm284, %v541, %v548
      %v550 = vrot.slane %v545, 4
      %v552 = vshrl.u32 %v256, 16
      %v554 = vrot.slane %v552, 7
      %v555 = vshll.u32 %v256, 16
      %v557 = vor.u32 %v554, %v555
      %v558 = vsel %vm284, %v550, %v557
      %v559 = vrot.slane %v554, 4
      %v561 = vshrl.u32 %v257, 16
      %v563 = vrot.slane %v561, 7
      %v564 = vshll.u32 %v257, 16
      %v566 = vor.u32 %v563, %v564
      %v567 = vsel %vm284, %v559, %v566
      %v568 = vrot.slane %v563, 4
      %v570 = vshrl.u32 %v258, 16
      %v572 = vrot.slane %v570, 7
      %v573 = vshll.u32 %v258, 16
      %v575 = vor.u32 %v572, %v573
      %v576 = vsel %vm284, %v568, %v575
      %v577 = vrot.slane %v572, 4
      %v579 = vshrl.u32 %v259, 16
      %v581 = vrot.slane %v579, 7
      %v582 = vshll.u32 %v259, 16
      %v584 = vor.u32 %v581, %v582
      %v585 = vsel %vm284, %v577, %v584
      %v586 = vrot.slane %v581, 4
      %v588 = vshrl.u32 %v260, 16
      %v590 = vrot.slane %v588, 7
      %v591 = vshll.u32 %v260, 16
      %v593 = vor.u32 %v590, %v591
      %v594 = vsel %vm284, %v586, %v593
      %v595 = vrot.slane %v590, 4
      %v597 = vshrl.u32 %v261, 16
      %v599 = vrot.slane %v597, 7
      %v600 = vshll.u32 %v261, 16
      %v602 = vor.u32 %v599, %v600
      %v603 = vsel %vm284, %v595, %v602
      %v604 = vrot.slane %v599, 4
      %v606 = vshrl.u32 %v262, 16
      %v608 = vrot.slane %v606, 7
      %v609 = vshll.u32 %v262, 16
      %v611 = vor.u32 %v608, %v609
      %v612 = vsel %vm284, %v604, %v611
      %v613 = vrot.slane %v608, 4
      %v615 = vshrl.u32 %v263, 16
      %v617 = vrot.slane %v615, 7
      %v618 = vshll.u32 %v263, 16
      %v620 = vor.u32 %v617, %v618
      %v621 = vsel %vm284, %v613, %v620
      %v622 = vrot.slane %v617, 4
      %v624 = vshrl.u32 %v264, 16
      %v626 = vrot.slane %v624, 7
      %v627 = vshll.u32 %v264, 16
      %v629 = vor.u32 %v626, %v627
      %v630 = vsel %vm284, %v622, %v629
      %v631 = vrot.slane %v626, 4
      %v633 = vshrl.u32 %v265, 16
      %v635 = vrot.slane %v633, 7
      %v636 = vshll.u32 %v265, 16
      %v638 = vor.u32 %v635, %v636
      %v639 = vsel %vm284, %v631, %v638
      %v640 = vrot.slane %v635, 4
      %v642 = vshrl.u32 %v266, 16
      %v644 = vrot.slane %v642, 7
      %v645 = vshll.u32 %v266, 16
      %v647 = vor.u32 %v644, %v645
      %v648 = vsel %vm284, %v640, %v647
      %v649 = vrot.slane %v644, 4
      %v651 = vshrl.u32 %v267, 16
      %v653 = vrot.slane %v651, 7
      %v654 = vshll.u32 %v267, 16
      %v656 = vor.u32 %v653, %v654
      %v657 = vsel %vm284, %v649, %v656
      %v658 = vrot.slane %v653, 4
      %v660 = vshrl.u32 %v268, 16
      %v662 = vrot.slane %v660, 7
      %v663 = vshll.u32 %v268, 16
      %v665 = vor.u32 %v662, %v663
      %v666 = vsel %vm284, %v658, %v665
      %v667 = vrot.slane %v662, 4
      %v669 = vshrl.u32 %v269, 16
      %v671 = vrot.slane %v669, 7
      %v672 = vshll.u32 %v269, 16
      %v674 = vor.u32 %v671, %v672
      %v675 = vsel %vm284, %v667, %v674
      %v676 = vrot.slane %v671, 4
      %v678 = vshrl.u32 %v270, 16
      %v680 = vrot.slane %v678, 7
      %v681 = vshll.u32 %v270, 16
      %v683 = vor.u32 %v680, %v681
      %v684 = vsel %vm284, %v676, %v683
      %v685 = vrot.slane %v680, 4
      %v687 = vshrl.u32 %v271, 16
      %v689 = vrot.slane %v687, 7
      %v690 = vshll.u32 %v271, 16
      %v692 = vor.u32 %v689, %v690
      %v693 = vsel %vm284, %v685, %v692
      %v694 = vrot.slane %v689, 4
      %v696 = vshrl.u32 %v272, 16
      %v698 = vrot.slane %v696, 7
      %v699 = vshll.u32 %v272, 16
      %v701 = vor.u32 %v698, %v699
      %v702 = vsel %vm284, %v694, %v701
      %v703 = vrot.slane %v698, 4
      %v705 = vshrl.u32 %v273, 16
      %v707 = vrot.slane %v705, 7
      %v708 = vshll.u32 %v273, 16
      %v710 = vor.u32 %v707, %v708
      %v711 = vsel %vm284, %v703, %v710
      %v712 = vrot.slane %v707, 4
      %v714 = vshrl.u32 %v274, 16
      %v716 = vrot.slane %v714, 7
      %v717 = vshll.u32 %v274, 16
      %v719 = vor.u32 %v716, %v717
      %v720 = vsel %vm284, %v712, %v719
      %vm769 = vcmask 27648
      %770 = vst.msk [vmem:[#allocation2] sm:$0xf] %vm769, %v297
      %771 = vst.msk [vmem:[#allocation2 + $0x4] sm:$0xf] %vm769, %v306
      %772 = vst.msk [vmem:[#allocation2 + $0x8] sm:$0xf] %vm769, %v315
      %773 = vst.msk [vmem:[#allocation2 + $0xc] sm:$0xf] %vm769, %v324
      %774 = vst.msk [vmem:[#allocation2 + $0x10] sm:$0xf] %vm769, %v333
      %775 = vst.msk [vmem:[#allocation2 + $0x14] sm:$0xf] %vm769, %v342
      %776 = vst.msk [vmem:[#allocation2 + $0x18] sm:$0xf] %vm769, %v351
      %777 = vst.msk [vmem:[#allocation2 + $0x1c] sm:$0xf] %vm769, %v360
      %778 = vst.msk [vmem:[#allocation2 + $0x20] sm:$0xf] %vm769, %v369
      %779 = vst.msk [vmem:[#allocation2 + $0x24] sm:$0xf] %vm769, %v378
      %780 = vst.msk [vmem:[#allocation2 + $0x28] sm:$0xf] %vm769, %v387
      %781 = vst.msk [vmem:[#allocation2 + $0x2c] sm:$0xf] %vm769, %v396
      %782 = vst.msk [vmem:[#allocation2 + $0x30] sm:$0xf] %vm769, %v405
      %783 = vst.msk [vmem:[#allocation2 + $0x34] sm:$0xf] %vm769, %v414
      %784 = vst.msk [vmem:[#allocation2 + $0x38] sm:$0xf] %vm769, %v423
      %785 = vst.msk [vmem:[#allocation2 + $0x3c] sm:$0xf] %vm769, %v432
      %786 = vst.msk [vmem:[#allocation2 + $0x40] sm:$0xf] %vm769, %v441
      %787 = vst.msk [vmem:[#allocation2 + $0x44] sm:$0xf] %vm769, %v450
      %788 = vst.msk [vmem:[#allocation2 + $0x48] sm:$0xf] %vm769, %v459
      %789 = vst.msk [vmem:[#allocation2 + $0x4c] sm:$0xf] %vm769, %v468
      %790 = vst.msk [vmem:[#allocation2 + $0x50] sm:$0xf] %vm769, %v477
      %791 = vst.msk [vmem:[#allocation2 + $0x54] sm:$0xf] %vm769, %v486
      %792 = vst.msk [vmem:[#allocation2 + $0x58] sm:$0xf] %vm769, %v495
      %793 = vst.msk [vmem:[#allocation2 + $0x5c] sm:$0xf] %vm769, %v504
      %794 = vst.msk [vmem:[#allocation2 + $0x60] sm:$0xf] %vm769, %v513
      %795 = vst.msk [vmem:[#allocation2 + $0x64] sm:$0xf] %vm769, %v522
      %796 = vst.msk [vmem:[#allocation2 + $0x68] sm:$0xf] %vm769, %v531
      %797 = vst.msk [vmem:[#allocation2 + $0x6c] sm:$0xf] %vm769, %v540
      %798 = vst.msk [vmem:[#allocation2 + $0x70] sm:$0xf] %vm769, %v549
      %799 = vst.msk [vmem:[#allocation2 + $0x74] sm:$0xf] %vm769, %v558
      %800 = vst.msk [vmem:[#allocation2 + $0x78] sm:$0xf] %vm769, %v567
      %801 = vst.msk [vmem:[#allocation2 + $0x7c] sm:$0xf] %vm769, %v576
      %802 = vst.msk [vmem:[#allocation2 + $0x80] sm:$0xf] %vm769, %v585
      %803 = vst.msk [vmem:[#allocation2 + $0x84] sm:$0xf] %vm769, %v594
      %804 = vst.msk [vmem:[#allocation2 + $0x88] sm:$0xf] %vm769, %v603
      %805 = vst.msk [vmem:[#allocation2 + $0x8c] sm:$0xf] %vm769, %v612
      %806 = vst.msk [vmem:[#allocation2 + $0x90] sm:$0xf] %vm769, %v621
      %807 = vst.msk [vmem:[#allocation2 + $0x94] sm:$0xf] %vm769, %v630
      %808 = vst.msk [vmem:[#allocation2 + $0x98] sm:$0xf] %vm769, %v639
      %809 = vst.msk [vmem:[#allocation2 + $0x9c] sm:$0xf] %vm769, %v648
      %810 = vst.msk [vmem:[#allocation2 + $0xa0] sm:$0xf] %vm769, %v657
      %811 = vst.msk [vmem:[#allocation2 + $0xa4] sm:$0xf] %vm769, %v666
      %812 = vst.msk [vmem:[#allocation2 + $0xa8] sm:$0xf] %vm769, %v675
      %813 = vst.msk [vmem:[#allocation2 + $0xac] sm:$0xf] %vm769, %v684
      %814 = vst.msk [vmem:[#allocation2 + $0xb0] sm:$0xf] %vm769, %v693
      %815 = vst.msk [vmem:[#allocation2 + $0xb4] sm:$0xf] %vm769, %v702
      %816 = vst.msk [vmem:[#allocation2 + $0xb8] sm:$0xf] %vm769, %v711
      %817 = vst.msk [vmem:[#allocation2 + $0xbc] sm:$0xf] %vm769, %v720
      %866 = vrot.lane.b32.xlu0 %v227, 4
      %v867 = vpop.permute.xlu0 %866
      %868 = vrot.lane.b32.xlu0 %v228, 4
      %v869 = vpop.permute.xlu0 %868
      %870 = vrot.lane.b32.xlu0 %v229, 4
      %v871 = vpop.permute.xlu0 %870
      %872 = vrot.lane.b32.xlu0 %v230, 4
      %v873 = vpop.permute.xlu0 %872
      %874 = vrot.lane.b32.xlu0 %v231, 4
      %v875 = vpop.permute.xlu0 %874
      %876 = vrot.lane.b32.xlu0 %v232, 4
      %v877 = vpop.permute.xlu0 %876
      %878 = vrot.lane.b32.xlu0 %v233, 4
      %v879 = vpop.permute.xlu0 %878
      %880 = vrot.lane.b32.xlu0 %v234, 4
      %v881 = vpop.permute.xlu0 %880
      %882 = vrot.lane.b32.xlu0 %v235, 4
      %v883 = vpop.permute.xlu0 %882
      %884 = vrot.lane.b32.xlu0 %v236, 4
      %v885 = vpop.permute.xlu0 %884
      %886 = vrot.lane.b32.xlu0 %v237, 4
      %v887 = vpop.permute.xlu0 %886
      %888 = vrot.lane.b32.xlu0 %v238, 4
      %v889 = vpop.permute.xlu0 %888
      %890 = vrot.lane.b32.xlu0 %v239, 4
      %v891 = vpop.permute.xlu0 %890
      %892 = vrot.lane.b32.xlu0 %v240, 4
      %v893 = vpop.permute.xlu0 %892
      %894 = vrot.lane.b32.xlu0 %v241, 4
      %v895 = vpop.permute.xlu0 %894
      %896 = vrot.lane.b32.xlu0 %v242, 4
      %v897 = vpop.permute.xlu0 %896
      %898 = vrot.lane.b32.xlu0 %v243, 4
      %v899 = vpop.permute.xlu0 %898
      %900 = vrot.lane.b32.xlu0 %v244, 4
      %v901 = vpop.permute.xlu0 %900
      %902 = vrot.lane.b32.xlu0 %v245, 4
      %v903 = vpop.permute.xlu0 %902
      %904 = vrot.lane.b32.xlu0 %v246, 4
      %v905 = vpop.permute.xlu0 %904
      %906 = vrot.lane.b32.xlu0 %v247, 4
      %v907 = vpop.permute.xlu0 %906
      %908 = vrot.lane.b32.xlu0 %v248, 4
      %v909 = vpop.permute.xlu0 %908
      %910 = vrot.lane.b32.xlu0 %v249, 4
      %v911 = vpop.permute.xlu0 %910
      %912 = vrot.lane.b32.xlu0 %v250, 4
      %v913 = vpop.permute.xlu0 %912
      %914 = vrot.lane.b32.xlu0 %v251, 4
      %v915 = vpop.permute.xlu0 %914
      %916 = vrot.lane.b32.xlu0 %v252, 4
      %v917 = vpop.permute.xlu0 %916
      %918 = vrot.lane.b32.xlu0 %v253, 4
      %v919 = vpop.permute.xlu0 %918
      %920 = vrot.lane.b32.xlu0 %v254, 4
      %v921 = vpop.permute.xlu0 %920
      %922 = vrot.lane.b32.xlu0 %v255, 4
      %v923 = vpop.permute.xlu0 %922
      %924 = vrot.lane.b32.xlu0 %v256, 4
      %v925 = vpop.permute.xlu0 %924
      %926 = vrot.lane.b32.xlu0 %v257, 4
      %v927 = vpop.permute.xlu0 %926
      %928 = vrot.lane.b32.xlu0 %v258, 4
      %v929 = vpop.permute.xlu0 %928
      %930 = vrot.lane.b32.xlu0 %v259, 4
      %v931 = vpop.permute.xlu0 %930
      %932 = vrot.lane.b32.xlu0 %v260, 4
      %v933 = vpop.permute.xlu0 %932
      %934 = vrot.lane.b32.xlu0 %v261, 4
      %v935 = vpop.permute.xlu0 %934
      %936 = vrot.lane.b32.xlu0 %v262, 4
      %v937 = vpop.permute.xlu0 %936
      %938 = vrot.lane.b32.xlu0 %v263, 4
      %v939 = vpop.permute.xlu0 %938
      %940 = vrot.lane.b32.xlu0 %v264, 4
      %v941 = vpop.permute.xlu0 %940
      %942 = vrot.lane.b32.xlu0 %v265, 4
      %v943 = vpop.permute.xlu0 %942
      %944 = vrot.lane.b32.xlu0 %v266, 4
      %v945 = vpop.permute.xlu0 %944
      %946 = vrot.lane.b32.xlu0 %v267, 4
      %v947 = vpop.permute.xlu0 %946
      %948 = vrot.lane.b32.xlu0 %v268, 4
      %v949 = vpop.permute.xlu0 %948
      %950 = vrot.lane.b32.xlu0 %v269, 4
      %v951 = vpop.permute.xlu0 %950
      %952 = vrot.lane.b32.xlu0 %v270, 4
      %v953 = vpop.permute.xlu0 %952
      %954 = vrot.lane.b32.xlu0 %v271, 4
      %v955 = vpop.permute.xlu0 %954
      %956 = vrot.lane.b32.xlu0 %v272, 4
      %v957 = vpop.permute.xlu0 %956
      %958 = vrot.lane.b32.xlu0 %v273, 4
      %v959 = vpop.permute.xlu0 %958
      %960 = vrot.lane.b32.xlu0 %v274, 4
      %v961 = vpop.permute.xlu0 %960
      %vm1010 = vcmask 60448
      %1011 = vst.msk [vmem:[#allocation2] sm:$0xf] %vm1010, %v867
      %1012 = vst.msk [vmem:[#allocation2 + $0x4] sm:$0xf] %vm1010, %v869
      %1013 = vst.msk [vmem:[#allocation2 + $0x8] sm:$0xf] %vm1010, %v871
      %1014 = vst.msk [vmem:[#allocation2 + $0xc] sm:$0xf] %vm1010, %v873
      %1015 = vst.msk [vmem:[#allocation2 + $0x10] sm:$0xf] %vm1010, %v875
      %1016 = vst.msk [vmem:[#allocation2 + $0x14] sm:$0xf] %vm1010, %v877
      %1017 = vst.msk [vmem:[#allocation2 + $0x18] sm:$0xf] %vm1010, %v879
      %1018 = vst.msk [vmem:[#allocation2 + $0x1c] sm:$0xf] %vm1010, %v881
      %1019 = vst.msk [vmem:[#allocation2 + $0x20] sm:$0xf] %vm1010, %v883
      %1020 = vst.msk [vmem:[#allocation2 + $0x24] sm:$0xf] %vm1010, %v885
      %1021 = vst.msk [vmem:[#allocation2 + $0x28] sm:$0xf] %vm1010, %v887
      %1022 = vst.msk [vmem:[#allocation2 + $0x2c] sm:$0xf] %vm1010, %v889
      %1023 = vst.msk [vmem:[#allocation2 + $0x30] sm:$0xf] %vm1010, %v891
      %1024 = vst.msk [vmem:[#allocation2 + $0x34] sm:$0xf] %vm1010, %v893
      %1025 = vst.msk [vmem:[#allocation2 + $0x38] sm:$0xf] %vm1010, %v895
      %1026 = vst.msk [vmem:[#allocation2 + $0x3c] sm:$0xf] %vm1010, %v897
      %1027 = vst.msk [vmem:[#allocation2 + $0x40] sm:$0xf] %vm1010, %v899
      %1028 = vst.msk [vmem:[#allocation2 + $0x44] sm:$0xf] %vm1010, %v901
      %1029 = vst.msk [vmem:[#allocation2 + $0x48] sm:$0xf] %vm1010, %v903
      %1030 = vst.msk [vmem:[#allocation2 + $0x4c] sm:$0xf] %vm1010, %v905
      %1031 = vst.msk [vmem:[#allocation2 + $0x50] sm:$0xf] %vm1010, %v907
      %1032 = vst.msk [vmem:[#allocation2 + $0x54] sm:$0xf] %vm1010, %v909
      %1033 = vst.msk [vmem:[#allocation2 + $0x58] sm:$0xf] %vm1010, %v911
      %1034 = vst.msk [vmem:[#allocation2 + $0x5c] sm:$0xf] %vm1010, %v913
      %1035 = vst.msk [vmem:[#allocation2 + $0x60] sm:$0xf] %vm1010, %v915
      %1036 = vst.msk [vmem:[#allocation2 + $0x64] sm:$0xf] %vm1010, %v917
      %1037 = vst.msk [vmem:[#allocation2 + $0x68] sm:$0xf] %vm1010, %v919
      %1038 = vst.msk [vmem:[#allocation2 + $0x6c] sm:$0xf] %vm1010, %v921
      %1039 = vst.msk [vmem:[#allocation2 + $0x70] sm:$0xf] %vm1010, %v923
      %1040 = vst.msk [vmem:[#allocation2 + $0x74] sm:$0xf] %vm1010, %v925
      %1041 = vst.msk [vmem:[#allocation2 + $0x78] sm:$0xf] %vm1010, %v927
      %1042 = vst.msk [vmem:[#allocation2 + $0x7c] sm:$0xf] %vm1010, %v929
      %1043 = vst.msk [vmem:[#allocation2 + $0x80] sm:$0xf] %vm1010, %v931
      %1044 = vst.msk [vmem:[#allocation2 + $0x84] sm:$0xf] %vm1010, %v933
      %1045 = vst.msk [vmem:[#allocation2 + $0x88] sm:$0xf] %vm1010, %v935
      %1046 = vst.msk [vmem:[#allocation2 + $0x8c] sm:$0xf] %vm1010, %v937
      %1047 = vst.msk [vmem:[#allocation2 + $0x90] sm:$0xf] %vm1010, %v939
      %1048 = vst.msk [vmem:[#allocation2 + $0x94] sm:$0xf] %vm1010, %v941
      %1049 = vst.msk [vmem:[#allocation2 + $0x98] sm:$0xf] %vm1010, %v943
      %1050 = vst.msk [vmem:[#allocation2 + $0x9c] sm:$0xf] %vm1010, %v945
      %1051 = vst.msk [vmem:[#allocation2 + $0xa0] sm:$0xf] %vm1010, %v947
      %1052 = vst.msk [vmem:[#allocation2 + $0xa4] sm:$0xf] %vm1010, %v949
      %1053 = vst.msk [vmem:[#allocation2 + $0xa8] sm:$0xf] %vm1010, %v951
      %1054 = vst.msk [vmem:[#allocation2 + $0xac] sm:$0xf] %vm1010, %v953
      %1055 = vst.msk [vmem:[#allocation2 + $0xb0] sm:$0xf] %vm1010, %v955
      %1056 = vst.msk [vmem:[#allocation2 + $0xb4] sm:$0xf] %vm1010, %v957
      %1057 = vst.msk [vmem:[#allocation2 + $0xb8] sm:$0xf] %vm1010, %v959
      %1058 = vst.msk [vmem:[#allocation2 + $0xbc] sm:$0xf] %vm1010, %v961
      %vm1059 = vsmask.f32 3328
      %vm1060 = vsmask.f32 7440
      %vm1061 = vmor %vm1059, %vm1060
      %v1062 = vrot.slane %v291, 4
      %v1063 = vrot.slane %v294, 5
      %v1064 = vor.u32 %v1062, %v1063
      %v1065 = vrot.slane %v1064, 4
      %v1066 = vrot.slane %v303, 5
      %v1067 = vsel %vm1061, %v1065, %v1066
      %v1068 = vrot.slane %v300, 4
      %v1069 = vor.u32 %v1068, %v1066
      %v1070 = vrot.slane %v1069, 4
      %v1071 = vrot.slane %v312, 5
      %v1072 = vsel %vm1061, %v1070, %v1071
      %v1073 = vrot.slane %v309, 4
      %v1074 = vor.u32 %v1073, %v1071
      %v1075 = vrot.slane %v1074, 4
      %v1076 = vrot.slane %v321, 5
      %v1077 = vsel %vm1061, %v1075, %v1076
      %v1078 = vrot.slane %v318, 4
      %v1079 = vor.u32 %v1078, %v1076
      %v1080 = vrot.slane %v1079, 4
      %v1081 = vrot.slane %v330, 5
      %v1082 = vsel %vm1061, %v1080, %v1081
      %v1083 = vrot.slane %v327, 4
      %v1084 = vor.u32 %v1083, %v1081
      %v1085 = vrot.slane %v1084, 4
      %v1086 = vrot.slane %v339, 5
      %v1087 = vsel %vm1061, %v1085, %v1086
      %v1088 = vrot.slane %v336, 4
      %v1089 = vor.u32 %v1088, %v1086
      %v1090 = vrot.slane %v1089, 4
      %v1091 = vrot.slane %v348, 5
      %v1092 = vsel %vm1061, %v1090, %v1091
      %v1093 = vrot.slane %v345, 4
      %v1094 = vor.u32 %v1093, %v1091
      %v1095 = vrot.slane %v1094, 4
      %v1096 = vrot.slane %v357, 5
      %v1097 = vsel %vm1061, %v1095, %v1096
      %v1098 = vrot.slane %v354, 4
      %v1099 = vor.u32 %v1098, %v1096
      %v1100 = vrot.slane %v1099, 4
      %v1101 = vrot.slane %v366, 5
      %v1102 = vsel %vm1061, %v1100, %v1101
      %v1103 = vrot.slane %v363, 4
      %v1104 = vor.u32 %v1103, %v1101
      %v1105 = vrot.slane %v1104, 4
      %v1106 = vrot.slane %v375, 5
      %v1107 = vsel %vm1061, %v1105, %v1106
      %v1108 = vrot.slane %v372, 4
      %v1109 = vor.u32 %v1108, %v1106
      %v1110 = vrot.slane %v1109, 4
      %v1111 = vrot.slane %v384, 5
      %v1112 = vsel %vm1061, %v1110, %v1111
      %v1113 = vrot.slane %v381, 4
      %v1114 = vor.u32 %v1113, %v1111
      %v1115 = vrot.slane %v1114, 4
      %v1116 = vrot.slane %v393, 5
      %v1117 = vsel %vm1061, %v1115, %v1116
      %v1118 = vrot.slane %v390, 4
      %v1119 = vor.u32 %v1118, %v1116
      %v1120 = vrot.slane %v1119, 4
      %v1121 = vrot.slane %v402, 5
      %v1122 = vsel %vm1061, %v1120, %v1121
      %v1123 = vrot.slane %v399, 4
      %v1124 = vor.u32 %v1123, %v1121
      %v1125 = vrot.slane %v1124, 4
      %v1126 = vrot.slane %v411, 5
      %v1127 = vsel %vm1061, %v1125, %v1126
      %v1128 = vrot.slane %v408, 4
      %v1129 = vor.u32 %v1128, %v1126
      %v1130 = vrot.slane %v1129, 4
      %v1131 = vrot.slane %v420, 5
      %v1132 = vsel %vm1061, %v1130, %v1131
      %v1133 = vrot.slane %v417, 4
      %v1134 = vor.u32 %v1133, %v1131
      %v1135 = vrot.slane %v1134, 4
      %v1136 = vrot.slane %v429, 5
      %v1137 = vsel %vm1061, %v1135, %v1136
      %v1138 = vrot.slane %v426, 4
      %v1139 = vor.u32 %v1138, %v1136
      %v1140 = vrot.slane %v1139, 4
      %v1141 = vrot.slane %v438, 5
      %v1142 = vsel %vm1061, %v1140, %v1141
      %v1143 = vrot.slane %v435, 4
      %v1144 = vor.u32 %v1143, %v1141
      %v1145 = vrot.slane %v1144, 4
      %v1146 = vrot.slane %v447, 5
      %v1147 = vsel %vm1061, %v1145, %v1146
      %v1148 = vrot.slane %v444, 4
      %v1149 = vor.u32 %v1148, %v1146
      %v1150 = vrot.slane %v1149, 4
      %v1151 = vrot.slane %v456, 5
      %v1152 = vsel %vm1061, %v1150, %v1151
      %v1153 = vrot.slane %v453, 4
      %v1154 = vor.u32 %v1153, %v1151
      %v1155 = vrot.slane %v1154, 4
      %v1156 = vrot.slane %v465, 5
      %v1157 = vsel %vm1061, %v1155, %v1156
      %v1158 = vrot.slane %v462, 4
      %v1159 = vor.u32 %v1158, %v1156
      %v1160 = vrot.slane %v1159, 4
      %v1161 = vrot.slane %v474, 5
      %v1162 = vsel %vm1061, %v1160, %v1161
      %v1163 = vrot.slane %v471, 4
      %v1164 = vor.u32 %v1163, %v1161
      %v1165 = vrot.slane %v1164, 4
      %v1166 = vrot.slane %v483, 5
      %v1167 = vsel %vm1061, %v1165, %v1166
      %v1168 = vrot.slane %v480, 4
      %v1169 = vor.u32 %v1168, %v1166
      %v1170 = vrot.slane %v1169, 4
      %v1171 = vrot.slane %v492, 5
      %v1172 = vsel %vm1061, %v1170, %v1171
      %v1173 = vrot.slane %v489, 4
      %v1174 = vor.u32 %v1173, %v1171
      %v1175 = vrot.slane %v1174, 4
      %v1176 = vrot.slane %v501, 5
      %v1177 = vsel %vm1061, %v1175, %v1176
      %v1178 = vrot.slane %v498, 4
      %v1179 = vor.u32 %v1178, %v1176
      %v1180 = vrot.slane %v1179, 4
      %v1181 = vrot.slane %v510, 5
      %v1182 = vsel %vm1061, %v1180, %v1181
      %v1183 = vrot.slane %v507, 4
      %v1184 = vor.u32 %v1183, %v1181
      %v1185 = vrot.slane %v1184, 4
      %v1186 = vrot.slane %v519, 5
      %v1187 = vsel %vm1061, %v1185, %v1186
      %v1188 = vrot.slane %v516, 4
      %v1189 = vor.u32 %v1188, %v1186
      %v1190 = vrot.slane %v1189, 4
      %v1191 = vrot.slane %v528, 5
      %v1192 = vsel %vm1061, %v1190, %v1191
      %v1193 = vrot.slane %v525, 4
      %v1194 = vor.u32 %v1193, %v1191
      %v1195 = vrot.slane %v1194, 4
      %v1196 = vrot.slane %v537, 5
      %v1197 = vsel %vm1061, %v1195, %v1196
      %v1198 = vrot.slane %v534, 4
      %v1199 = vor.u32 %v1198, %v1196
      %v1200 = vrot.slane %v1199, 4
      %v1201 = vrot.slane %v546, 5
      %v1202 = vsel %vm1061, %v1200, %v1201
      %v1203 = vrot.slane %v543, 4
      %v1204 = vor.u32 %v1203, %v1201
      %v1205 = vrot.slane %v1204, 4
      %v1206 = vrot.slane %v555, 5
      %v1207 = vsel %vm1061, %v1205, %v1206
      %v1208 = vrot.slane %v552, 4
      %v1209 = vor.u32 %v1208, %v1206
      %v1210 = vrot.slane %v1209, 4
      %v1211 = vrot.slane %v564, 5
      %v1212 = vsel %vm1061, %v1210, %v1211
      %v1213 = vrot.slane %v561, 4
      %v1214 = vor.u32 %v1213, %v1211
      %v1215 = vrot.slane %v1214, 4
      %v1216 = vrot.slane %v573, 5
      %v1217 = vsel %vm1061, %v1215, %v1216
      %v1218 = vrot.slane %v570, 4
      %v1219 = vor.u32 %v1218, %v1216
      %v1220 = vrot.slane %v1219, 4
      %v1221 = vrot.slane %v582, 5
      %v1222 = vsel %vm1061, %v1220, %v1221
      %v1223 = vrot.slane %v579, 4
      %v1224 = vor.u32 %v1223, %v1221
      %v1225 = vrot.slane %v1224, 4
      %v1226 = vrot.slane %v591, 5
      %v1227 = vsel %vm1061, %v1225, %v1226
      %v1228 = vrot.slane %v588, 4
      %v1229 = vor.u32 %v1228, %v1226
      %v1230 = vrot.slane %v1229, 4
      %v1231 = vrot.slane %v600, 5
      %v1232 = vsel %vm1061, %v1230, %v1231
      %v1233 = vrot.slane %v597, 4
      %v1234 = vor.u32 %v1233, %v1231
      %v1235 = vrot.slane %v1234, 4
      %v1236 = vrot.slane %v609, 5
      %v1237 = vsel %vm1061, %v1235, %v1236
      %v1238 = vrot.slane %v606, 4
      %v1239 = vor.u32 %v1238, %v1236
      %v1240 = vrot.slane %v1239, 4
      %v1241 = vrot.slane %v618, 5
      %v1242 = vsel %vm1061, %v1240, %v1241
      %v1243 = vrot.slane %v615, 4
      %v1244 = vor.u32 %v1243, %v1241
      %v1245 = vrot.slane %v1244, 4
      %v1246 = vrot.slane %v627, 5
      %v1247 = vsel %vm1061, %v1245, %v1246
      %v1248 = vrot.slane %v624, 4
      %v1249 = vor.u32 %v1248, %v1246
      %v1250 = vrot.slane %v1249, 4
      %v1251 = vrot.slane %v636, 5
      %v1252 = vsel %vm1061, %v1250, %v1251
      %v1253 = vrot.slane %v633, 4
      %v1254 = vor.u32 %v1253, %v1251
      %v1255 = vrot.slane %v1254, 4
      %v1256 = vrot.slane %v645, 5
      %v1257 = vsel %vm1061, %v1255, %v1256
      %v1258 = vrot.slane %v642, 4
      %v1259 = vor.u32 %v1258, %v1256
      %v1260 = vrot.slane %v1259, 4
      %v1261 = vrot.slane %v654, 5
      %v1262 = vsel %vm1061, %v1260, %v1261
      %v1263 = vrot.slane %v651, 4
      %v1264 = vor.u32 %v1263, %v1261
      %v1265 = vrot.slane %v1264, 4
      %v1266 = vrot.slane %v663, 5
      %v1267 = vsel %vm1061, %v1265, %v1266
      %v1268 = vrot.slane %v660, 4
      %v1269 = vor.u32 %v1268, %v1266
      %v1270 = vrot.slane %v1269, 4
      %v1271 = vrot.slane %v672, 5
      %v1272 = vsel %vm1061, %v1270, %v1271
      %v1273 = vrot.slane %v669, 4
      %v1274 = vor.u32 %v1273, %v1271
      %v1275 = vrot.slane %v1274, 4
      %v1276 = vrot.slane %v681, 5
      %v1277 = vsel %vm1061, %v1275, %v1276
      %v1278 = vrot.slane %v678, 4
      %v1279 = vor.u32 %v1278, %v1276
      %v1280 = vrot.slane %v1279, 4
      %v1281 = vrot.slane %v690, 5
      %v1282 = vsel %vm1061, %v1280, %v1281
      %v1283 = vrot.slane %v687, 4
      %v1284 = vor.u32 %v1283, %v1281
      %v1285 = vrot.slane %v1284, 4
      %v1286 = vrot.slane %v699, 5
      %v1287 = vsel %vm1061, %v1285, %v1286
      %v1288 = vrot.slane %v696, 4
      %v1289 = vor.u32 %v1288, %v1286
      %v1290 = vrot.slane %v1289, 4
      %v1291 = vrot.slane %v708, 5
      %v1292 = vsel %vm1061, %v1290, %v1291
      %v1293 = vrot.slane %v705, 4
      %v1294 = vor.u32 %v1293, %v1291
      %v1295 = vrot.slane %v1294, 4
      %v1296 = vrot.slane %v717, 5
      %v1297 = vsel %vm1061, %v1295, %v1296
      %v1298 = vrot.slane %v714, 4
      %v1299 = vor.u32 %v1298, %v1296
      %v1300 = vrot.slane %v1299, 4
      %v1302 = vshll.u32 %v275, 16
      %v1304 = vrot.slane %v1302, 5
      %v1305 = vsel %vm1061, %v1300, %v1304
      %1306 = vrot.lane.b32.xlu0 %v1067, 8
      %v1307 = vpop.permute.xlu0 %1306
      %1308 = vrot.lane.b32.xlu0 %v1072, 8
      %v1309 = vpop.permute.xlu0 %1308
      %1310 = vrot.lane.b32.xlu0 %v1077, 8
      %v1311 = vpop.permute.xlu0 %1310
      %1312 = vrot.lane.b32.xlu0 %v1082, 8
      %v1313 = vpop.permute.xlu0 %1312
      %1314 = vrot.lane.b32.xlu0 %v1087, 8
      %v1315 = vpop.permute.xlu0 %1314
      %1316 = vrot.lane.b32.xlu0 %v1092, 8
      %v1317 = vpop.permute.xlu0 %1316
      %1318 = vrot.lane.b32.xlu0 %v1097, 8
      %v1319 = vpop.permute.xlu0 %1318
      %1320 = vrot.lane.b32.xlu0 %v1102, 8
      %v1321 = vpop.permute.xlu0 %1320
      %1322 = vrot.lane.b32.xlu0 %v1107, 8
      %v1323 = vpop.permute.xlu0 %1322
      %1324 = vrot.lane.b32.xlu0 %v1112, 8
      %v1325 = vpop.permute.xlu0 %1324
      %1326 = vrot.lane.b32.xlu0 %v1117, 8
      %v1327 = vpop.permute.xlu0 %1326
      %1328 = vrot.lane.b32.xlu0 %v1122, 8
      %v1329 = vpop.permute.xlu0 %1328
      %1330 = vrot.lane.b32.xlu0 %v1127, 8
      %v1331 = vpop.permute.xlu0 %1330
      %1332 = vrot.lane.b32.xlu0 %v1132, 8
      %v1333 = vpop.permute.xlu0 %1332
      %1334 = vrot.lane.b32.xlu0 %v1137, 8
      %v1335 = vpop.permute.xlu0 %1334
      %1336 = vrot.lane.b32.xlu0 %v1142, 8
      %v1337 = vpop.permute.xlu0 %1336
      %1338 = vrot.lane.b32.xlu0 %v1147, 8
      %v1339 = vpop.permute.xlu0 %1338
      %1340 = vrot.lane.b32.xlu0 %v1152, 8
      %v1341 = vpop.permute.xlu0 %1340
      %1342 = vrot.lane.b32.xlu0 %v1157, 8
      %v1343 = vpop.permute.xlu0 %1342
      %1344 = vrot.lane.b32.xlu0 %v1162, 8
      %v1345 = vpop.permute.xlu0 %1344
      %1346 = vrot.lane.b32.xlu0 %v1167, 8
      %v1347 = vpop.permute.xlu0 %1346
      %1348 = vrot.lane.b32.xlu0 %v1172, 8
      %v1349 = vpop.permute.xlu0 %1348
      %1350 = vrot.lane.b32.xlu0 %v1177, 8
      %v1351 = vpop.permute.xlu0 %1350
      %1352 = vrot.lane.b32.xlu0 %v1182, 8
      %v1353 = vpop.permute.xlu0 %1352
      %1354 = vrot.lane.b32.xlu0 %v1187, 8
      %v1355 = vpop.permute.xlu0 %1354
      %1356 = vrot.lane.b32.xlu0 %v1192, 8
      %v1357 = vpop.permute.xlu0 %1356
      %1358 = vrot.lane.b32.xlu0 %v1197, 8
      %v1359 = vpop.permute.xlu0 %1358
      %1360 = vrot.lane.b32.xlu0 %v1202, 8
      %v1361 = vpop.permute.xlu0 %1360
      %1362 = vrot.lane.b32.xlu0 %v1207, 8
      %v1363 = vpop.permute.xlu0 %1362
      %1364 = vrot.lane.b32.xlu0 %v1212, 8
      %v1365 = vpop.permute.xlu0 %1364
      %1366 = vrot.lane.b32.xlu0 %v1217, 8
      %v1367 = vpop.permute.xlu0 %1366
      %1368 = vrot.lane.b32.xlu0 %v1222, 8
      %v1369 = vpop.permute.xlu0 %1368
      %1370 = vrot.lane.b32.xlu0 %v1227, 8
      %v1371 = vpop.permute.xlu0 %1370
      %1372 = vrot.lane.b32.xlu0 %v1232, 8
      %v1373 = vpop.permute.xlu0 %1372
      %1374 = vrot.lane.b32.xlu0 %v1237, 8
      %v1375 = vpop.permute.xlu0 %1374
      %1376 = vrot.lane.b32.xlu0 %v1242, 8
      %v1377 = vpop.permute.xlu0 %1376
      %1378 = vrot.lane.b32.xlu0 %v1247, 8
      %v1379 = vpop.permute.xlu0 %1378
      %1380 = vrot.lane.b32.xlu0 %v1252, 8
      %v1381 = vpop.permute.xlu0 %1380
      %1382 = vrot.lane.b32.xlu0 %v1257, 8
      %v1383 = vpop.permute.xlu0 %1382
      %1384 = vrot.lane.b32.xlu0 %v1262, 8
      %v1385 = vpop.permute.xlu0 %1384
      %1386 = vrot.lane.b32.xlu0 %v1267, 8
      %v1387 = vpop.permute.xlu0 %1386
      %1388 = vrot.lane.b32.xlu0 %v1272, 8
      %v1389 = vpop.permute.xlu0 %1388
      %1390 = vrot.lane.b32.xlu0 %v1277, 8
      %v1391 = vpop.permute.xlu0 %1390
      %1392 = vrot.lane.b32.xlu0 %v1282, 8
      %v1393 = vpop.permute.xlu0 %1392
      %1394 = vrot.lane.b32.xlu0 %v1287, 8
      %v1395 = vpop.permute.xlu0 %1394
      %1396 = vrot.lane.b32.xlu0 %v1292, 8
      %v1397 = vpop.permute.xlu0 %1396
      %1398 = vrot.lane.b32.xlu0 %v1297, 8
      %v1399 = vpop.permute.xlu0 %1398
      %1400 = vrot.lane.b32.xlu0 %v1305, 8
      %v1401 = vpop.permute.xlu0 %1400
      %vm1450 = vcmask 93248
      %1451 = vst.msk [vmem:[#allocation2] sm:$0xf] %vm1450, %v1307
      %1452 = vst.msk [vmem:[#allocation2 + $0x4] sm:$0xf] %vm1450, %v1309
      %1453 = vst.msk [vmem:[#allocation2 + $0x8] sm:$0xf] %vm1450, %v1311
      %1454 = vst.msk [vmem:[#allocation2 + $0xc] sm:$0xf] %vm1450, %v1313
      %1455 = vst.msk [vmem:[#allocation2 + $0x10] sm:$0xf] %vm1450, %v1315
      %1456 = vst.msk [vmem:[#allocation2 + $0x14] sm:$0xf] %vm1450, %v1317
      %1457 = vst.msk [vmem:[#allocation2 + $0x18] sm:$0xf] %vm1450, %v1319
      %1458 = vst.msk [vmem:[#allocation2 + $0x1c] sm:$0xf] %vm1450, %v1321
      %1459 = vst.msk [vmem:[#allocation2 + $0x20] sm:$0xf] %vm1450, %v1323
      %1460 = vst.msk [vmem:[#allocation2 + $0x24] sm:$0xf] %vm1450, %v1325
      %1461 = vst.msk [vmem:[#allocation2 + $0x28] sm:$0xf] %vm1450, %v1327
      %1462 = vst.msk [vmem:[#allocation2 + $0x2c] sm:$0xf] %vm1450, %v1329
      %1463 = vst.msk [vmem:[#allocation2 + $0x30] sm:$0xf] %vm1450, %v1331
      %1464 = vst.msk [vmem:[#allocation2 + $0x34] sm:$0xf] %vm1450, %v1333
      %1465 = vst.msk [vmem:[#allocation2 + $0x38] sm:$0xf] %vm1450, %v1335
      %1466 = vst.msk [vmem:[#allocation2 + $0x3c] sm:$0xf] %vm1450, %v1337
      %1467 = vst.msk [vmem:[#allocation2 + $0x40] sm:$0xf] %vm1450, %v1339
      %1468 = vst.msk [vmem:[#allocation2 + $0x44] sm:$0xf] %vm1450, %v1341
      %1469 = vst.msk [vmem:[#allocation2 + $0x48] sm:$0xf] %vm1450, %v1343
      %1470 = vst.msk [vmem:[#allocation2 + $0x4c] sm:$0xf] %vm1450, %v1345
      %1471 = vst.msk [vmem:[#allocation2 + $0x50] sm:$0xf] %vm1450, %v1347
      %1472 = vst.msk [vmem:[#allocation2 + $0x54] sm:$0xf] %vm1450, %v1349
      %1473 = vst.msk [vmem:[#allocation2 + $0x58] sm:$0xf] %vm1450, %v1351
      %1474 = vst.msk [vmem:[#allocation2 + $0x5c] sm:$0xf] %vm1450, %v1353
      %1475 = vst.msk [vmem:[#allocation2 + $0x60] sm:$0xf] %vm1450, %v1355
      %1476 = vst.msk [vmem:[#allocation2 + $0x64] sm:$0xf] %vm1450, %v1357
      %1477 = vst.msk [vmem:[#allocation2 + $0x68] sm:$0xf] %vm1450, %v1359
      %1478 = vst.msk [vmem:[#allocation2 + $0x6c] sm:$0xf] %vm1450, %v1361
      %1479 = vst.msk [vmem:[#allocation2 + $0x70] sm:$0xf] %vm1450, %v1363
      %1480 = vst.msk [vmem:[#allocation2 + $0x74] sm:$0xf] %vm1450, %v1365
      %1481 = vst.msk [vmem:[#allocation2 + $0x78] sm:$0xf] %vm1450, %v1367
      %1482 = vst.msk [vmem:[#allocation2 + $0x7c] sm:$0xf] %vm1450, %v1369
      %1483 = vst.msk [vmem:[#allocation2 + $0x80] sm:$0xf] %vm1450, %v1371
      %1484 = vst.msk [vmem:[#allocation2 + $0x84] sm:$0xf] %vm1450, %v1373
      %1485 = vst.msk [vmem:[#allocation2 + $0x88] sm:$0xf] %vm1450, %v1375
      %1486 = vst.msk [vmem:[#allocation2 + $0x8c] sm:$0xf] %vm1450, %v1377
      %1487 = vst.msk [vmem:[#allocation2 + $0x90] sm:$0xf] %vm1450, %v1379
      %1488 = vst.msk [vmem:[#allocation2 + $0x94] sm:$0xf] %vm1450, %v1381
      %1489 = vst.msk [vmem:[#allocation2 + $0x98] sm:$0xf] %vm1450, %v1383
      %1490 = vst.msk [vmem:[#allocation2 + $0x9c] sm:$0xf] %vm1450, %v1385
      %1491 = vst.msk [vmem:[#allocation2 + $0xa0] sm:$0xf] %vm1450, %v1387
      %1492 = vst.msk [vmem:[#allocation2 + $0xa4] sm:$0xf] %vm1450, %v1389
      %1493 = vst.msk [vmem:[#allocation2 + $0xa8] sm:$0xf] %vm1450, %v1391
      %1494 = vst.msk [vmem:[#allocation2 + $0xac] sm:$0xf] %vm1450, %v1393
      %1495 = vst.msk [vmem:[#allocation2 + $0xb0] sm:$0xf] %vm1450, %v1395
      %1496 = vst.msk [vmem:[#allocation2 + $0xb4] sm:$0xf] %vm1450, %v1397
      %1497 = vst.msk [vmem:[#allocation2 + $0xb8] sm:$0xf] %vm1450, %v1399
      %1498 = vst.msk [vmem:[#allocation2 + $0xbc] sm:$0xf] %vm1450, %v1401
      %v1499 = vrot.slane %v716, 4
      %v1500 = vshrl.u32 %v275, 16
      %v1502 = vrot.slane %v1500, 7
      %v1503 = vor.u32 %v1502, %v1302
      %v1504 = vsel %vm284, %v1499, %v1503
      %v1505 = vrot.slane %v1502, 4
      %v1507 = vshrl.u32 %v276, 16
      %v1509 = vrot.slane %v1507, 7
      %v1510 = vshll.u32 %v276, 16
      %v1512 = vor.u32 %v1509, %v1510
      %v1513 = vsel %vm284, %v1505, %v1512
      %v1514 = vrot.slane %v1509, 4
      %v1516 = vshrl.u32 %v277, 16
      %v1518 = vrot.slane %v1516, 7
      %v1519 = vshll.u32 %v277, 16
      %v1521 = vor.u32 %v1518, %v1519
      %v1522 = vsel %vm284, %v1514, %v1521
      %1523 = vrot.lane.b32.xlu0 %v324, 12
      %v1524 = vpop.permute.xlu0 %1523
      %1525 = vrot.lane.b32.xlu0 %v333, 12
      %v1526 = vpop.permute.xlu0 %1525
      %1527 = vrot.lane.b32.xlu0 %v342, 12
      %v1528 = vpop.permute.xlu0 %1527
      %1529 = vrot.lane.b32.xlu0 %v351, 12
      %v1530 = vpop.permute.xlu0 %1529
      %1531 = vrot.lane.b32.xlu0 %v360, 12
      %v1532 = vpop.permute.xlu0 %1531
      %1533 = vrot.lane.b32.xlu0 %v369, 12
      %v1534 = vpop.permute.xlu0 %1533
      %1535 = vrot.lane.b32.xlu0 %v378, 12
      %v1536 = vpop.permute.xlu0 %1535
      %1537 = vrot.lane.b32.xlu0 %v387, 12
      %v1538 = vpop.permute.xlu0 %1537
      %1539 = vrot.lane.b32.xlu0 %v396, 12
      %v1540 = vpop.permute.xlu0 %1539
      %1541 = vrot.lane.b32.xlu0 %v405, 12
      %v1542 = vpop.permute.xlu0 %1541
      %1543 = vrot.lane.b32.xlu0 %v414, 12
      %v1544 = vpop.permute.xlu0 %1543
      %1545 = vrot.lane.b32.xlu0 %v423, 12
      %v1546 = vpop.permute.xlu0 %1545
      %1547 = vrot.lane.b32.xlu0 %v432, 12
      %v1548 = vpop.permute.xlu0 %1547
      %1549 = vrot.lane.b32.xlu0 %v441, 12
      %v1550 = vpop.permute.xlu0 %1549
      %1551 = vrot.lane.b32.xlu0 %v450, 12
      %v1552 = vpop.permute.xlu0 %1551
      %1553 = vrot.lane.b32.xlu0 %v459, 12
      %v1554 = vpop.permute.xlu0 %1553
      %1555 = vrot.lane.b32.xlu0 %v468, 12
      %v1556 = vpop.permute.xlu0 %1555
      %1557 = vrot.lane.b32.xlu0 %v477, 12
      %v1558 = vpop.permute.xlu0 %1557
      %1559 = vrot.lane.b32.xlu0 %v486, 12
      %v1560 = vpop.permute.xlu0 %1559
      %1561 = vrot.lane.b32.xlu0 %v495, 12
      %v1562 = vpop.permute.xlu0 %1561
      %1563 = vrot.lane.b32.xlu0 %v504, 12
      %v1564 = vpop.permute.xlu0 %1563
      %1565 = vrot.lane.b32.xlu0 %v513, 12
      %v1566 = vpop.permute.xlu0 %1565
      %1567 = vrot.lane.b32.xlu0 %v522, 12
      %v1568 = vpop.permute.xlu0 %1567
      %1569 = vrot.lane.b32.xlu0 %v531, 12
      %v1570 = vpop.permute.xlu0 %1569
      %1571 = vrot.lane.b32.xlu0 %v540, 12
      %v1572 = vpop.permute.xlu0 %1571
      %1573 = vrot.lane.b32.xlu0 %v549, 12
      %v1574 = vpop.permute.xlu0 %1573
      %1575 = vrot.lane.b32.xlu0 %v558, 12
      %v1576 = vpop.permute.xlu0 %1575
      %1577 = vrot.lane.b32.xlu0 %v567, 12
      %v1578 = vpop.permute.xlu0 %1577
      %1579 = vrot.lane.b32.xlu0 %v576, 12
      %v1580 = vpop.permute.xlu0 %1579
      %1581 = vrot.lane.b32.xlu0 %v585, 12
      %v1582 = vpop.permute.xlu0 %1581
      %1583 = vrot.lane.b32.xlu0 %v594, 12
      %v1584 = vpop.permute.xlu0 %1583
      %1585 = vrot.lane.b32.xlu0 %v603, 12
      %v1586 = vpop.permute.xlu0 %1585
      %1587 = vrot.lane.b32.xlu0 %v612, 12
      %v1588 = vpop.permute.xlu0 %1587
      %1589 = vrot.lane.b32.xlu0 %v621, 12
      %v1590 = vpop.permute.xlu0 %1589
      %1591 = vrot.lane.b32.xlu0 %v630, 12
      %v1592 = vpop.permute.xlu0 %1591
      %1593 = vrot.lane.b32.xlu0 %v639, 12
      %v1594 = vpop.permute.xlu0 %1593
      %1595 = vrot.lane.b32.xlu0 %v648, 12
      %v1596 = vpop.permute.xlu0 %1595
      %1597 = vrot.lane.b32.xlu0 %v657, 12
      %v1598 = vpop.permute.xlu0 %1597
      %1599 = vrot.lane.b32.xlu0 %v666, 12
      %v1600 = vpop.permute.xlu0 %1599
      %1601 = vrot.lane.b32.xlu0 %v675, 12
      %v1602 = vpop.permute.xlu0 %1601
      %1603 = vrot.lane.b32.xlu0 %v684, 12
      %v1604 = vpop.permute.xlu0 %1603
      %1605 = vrot.lane.b32.xlu0 %v693, 12
      %v1606 = vpop.permute.xlu0 %1605
      %1607 = vrot.lane.b32.xlu0 %v702, 12
      %v1608 = vpop.permute.xlu0 %1607
      %1609 = vrot.lane.b32.xlu0 %v711, 12
      %v1610 = vpop.permute.xlu0 %1609
      %1611 = vrot.lane.b32.xlu0 %v720, 12
      %v1612 = vpop.permute.xlu0 %1611
      %1613 = vrot.lane.b32.xlu0 %v1504, 12
      %v1614 = vpop.permute.xlu0 %1613
      %1615 = vrot.lane.b32.xlu0 %v1513, 12
      %v1616 = vpop.permute.xlu0 %1615
      %1617 = vrot.lane.b32.xlu0 %v1522, 12
      %v1618 = vpop.permute.xlu0 %1617
      %vm1667 = vcmask 126048
      %1668 = vst.msk [vmem:[#allocation2] sm:$0xf] %vm1667, %v1524
      %1669 = vst.msk [vmem:[#allocation2 + $0x4] sm:$0xf] %vm1667, %v1526
      %1670 = vst.msk [vmem:[#allocation2 + $0x8] sm:$0xf] %vm1667, %v1528
      %1671 = vst.msk [vmem:[#allocation2 + $0xc] sm:$0xf] %vm1667, %v1530
      %1672 = vst.msk [vmem:[#allocation2 + $0x10] sm:$0xf] %vm1667, %v1532
      %1673 = vst.msk [vmem:[#allocation2 + $0x14] sm:$0xf] %vm1667, %v1534
      %1674 = vst.msk [vmem:[#allocation2 + $0x18] sm:$0xf] %vm1667, %v1536
      %1675 = vst.msk [vmem:[#allocation2 + $0x1c] sm:$0xf] %vm1667, %v1538
      %1676 = vst.msk [vmem:[#allocation2 + $0x20] sm:$0xf] %vm1667, %v1540
      %1677 = vst.msk [vmem:[#allocation2 + $0x24] sm:$0xf] %vm1667, %v1542
      %1678 = vst.msk [vmem:[#allocation2 + $0x28] sm:$0xf] %vm1667, %v1544
      %1679 = vst.msk [vmem:[#allocation2 + $0x2c] sm:$0xf] %vm1667, %v1546
      %1680 = vst.msk [vmem:[#allocation2 + $0x30] sm:$0xf] %vm1667, %v1548
      %1681 = vst.msk [vmem:[#allocation2 + $0x34] sm:$0xf] %vm1667, %v1550
      %1682 = vst.msk [vmem:[#allocation2 + $0x38] sm:$0xf] %vm1667, %v1552
      %1683 = vst.msk [vmem:[#allocation2 + $0x3c] sm:$0xf] %vm1667, %v1554
      %1684 = vst.msk [vmem:[#allocation2 + $0x40] sm:$0xf] %vm1667, %v1556
      %1685 = vst.msk [vmem:[#allocation2 + $0x44] sm:$0xf] %vm1667, %v1558
      %1686 = vst.msk [vmem:[#allocation2 + $0x48] sm:$0xf] %vm1667, %v1560
      %1687 = vst.msk [vmem:[#allocation2 + $0x4c] sm:$0xf] %vm1667, %v1562
      %1688 = vst.msk [vmem:[#allocation2 + $0x50] sm:$0xf] %vm1667, %v1564
      %1689 = vst.msk [vmem:[#allocation2 + $0x54] sm:$0xf] %vm1667, %v1566
      %1690 = vst.msk [vmem:[#allocation2 + $0x58] sm:$0xf] %vm1667, %v1568
      %1691 = vst.msk [vmem:[#allocation2 + $0x5c] sm:$0xf] %vm1667, %v1570
      %1692 = vst.msk [vmem:[#allocation2 + $0x60] sm:$0xf] %vm1667, %v1572
      %1693 = vst.msk [vmem:[#allocation2 + $0x64] sm:$0xf] %vm1667, %v1574
      %1694 = vst.msk [vmem:[#allocation2 + $0x68] sm:$0xf] %vm1667, %v1576
      %1695 = vst.msk [vmem:[#allocation2 + $0x6c] sm:$0xf] %vm1667, %v1578
      %1696 = vst.msk [vmem:[#allocation2 + $0x70] sm:$0xf] %vm1667, %v1580
      %1697 = vst.msk [vmem:[#allocation2 + $0x74] sm:$0xf] %vm1667, %v1582
      %1698 = vst.msk [vmem:[#allocation2 + $0x78] sm:$0xf] %vm1667, %v1584
      %1699 = vst.msk [vmem:[#allocation2 + $0x7c] sm:$0xf] %vm1667, %v1586
      %1700 = vst.msk [vmem:[#allocation2 + $0x80] sm:$0xf] %vm1667, %v1588
      %1701 = vst.msk [vmem:[#allocation2 + $0x84] sm:$0xf] %vm1667, %v1590
      %1702 = vst.msk [vmem:[#allocation2 + $0x88] sm:$0xf] %vm1667, %v1592
      %1703 = vst.msk [vmem:[#allocation2 + $0x8c] sm:$0xf] %vm1667, %v1594
      %1704 = vst.msk [vmem:[#allocation2 + $0x90] sm:$0xf] %vm1667, %v1596
      %1705 = vst.msk [vmem:[#allocation2 + $0x94] sm:$0xf] %vm1667, %v1598
      %1706 = vst.msk [vmem:[#allocation2 + $0x98] sm:$0xf] %vm1667, %v1600
      %1707 = vst.msk [vmem:[#allocation2 + $0x9c] sm:$0xf] %vm1667, %v1602
      %1708 = vst.msk [vmem:[#allocation2 + $0xa0] sm:$0xf] %vm1667, %v1604
      %1709 = vst.msk [vmem:[#allocation2 + $0xa4] sm:$0xf] %vm1667, %v1606
      %1710 = vst.msk [vmem:[#allocation2 + $0xa8] sm:$0xf] %vm1667, %v1608
      %1711 = vst.msk [vmem:[#allocation2 + $0xac] sm:$0xf] %vm1667, %v1610
      %1712 = vst.msk [vmem:[#allocation2 + $0xb0] sm:$0xf] %vm1667, %v1612
      %1713 = vst.msk [vmem:[#allocation2 + $0xb4] sm:$0xf] %vm1667, %v1614
      %1714 = vst.msk [vmem:[#allocation2 + $0xb8] sm:$0xf] %vm1667, %v1616
      %1715 = vst.msk [vmem:[#allocation2 + $0xbc] sm:$0xf] %vm1667, %v1618
      %1719 = vrot.lane.b32.xlu0 %v230, 16
      %v1720 = vpop.permute.xlu0 %1719
      %1721 = vrot.lane.b32.xlu0 %v231, 16
      %v1722 = vpop.permute.xlu0 %1721
      %1723 = vrot.lane.b32.xlu0 %v232, 16
      %v1724 = vpop.permute.xlu0 %1723
      %1725 = vrot.lane.b32.xlu0 %v233, 16
      %v1726 = vpop.permute.xlu0 %1725
      %1727 = vrot.lane.b32.xlu0 %v234, 16
      %v1728 = vpop.permute.xlu0 %1727
      %1729 = vrot.lane.b32.xlu0 %v235, 16
      %v1730 = vpop.permute.xlu0 %1729
      %1731 = vrot.lane.b32.xlu0 %v236, 16
      %v1732 = vpop.permute.xlu0 %1731
      %1733 = vrot.lane.b32.xlu0 %v237, 16
      %v1734 = vpop.permute.xlu0 %1733
      %1735 = vrot.lane.b32.xlu0 %v238, 16
      %v1736 = vpop.permute.xlu0 %1735
      %1737 = vrot.lane.b32.xlu0 %v239, 16
      %v1738 = vpop.permute.xlu0 %1737
      %1739 = vrot.lane.b32.xlu0 %v240, 16
      %v1740 = vpop.permute.xlu0 %1739
      %1741 = vrot.lane.b32.xlu0 %v241, 16
      %v1742 = vpop.permute.xlu0 %1741
      %1743 = vrot.lane.b32.xlu0 %v242, 16
      %v1744 = vpop.permute.xlu0 %1743
      %1745 = vrot.lane.b32.xlu0 %v243, 16
      %v1746 = vpop.permute.xlu0 %1745
      %1747 = vrot.lane.b32.xlu0 %v244, 16
      %v1748 = vpop.permute.xlu0 %1747
      %1749 = vrot.lane.b32.xlu0 %v245, 16
      %v1750 = vpop.permute.xlu0 %1749
      %1751 = vrot.lane.b32.xlu0 %v246, 16
      %v1752 = vpop.permute.xlu0 %1751
      %1753 = vrot.lane.b32.xlu0 %v247, 16
      %v1754 = vpop.permute.xlu0 %1753
      %1755 = vrot.lane.b32.xlu0 %v248, 16
      %v1756 = vpop.permute.xlu0 %1755
      %1757 = vrot.lane.b32.xlu0 %v249, 16
      %v1758 = vpop.permute.xlu0 %1757
      %1759 = vrot.lane.b32.xlu0 %v250, 16
      %v1760 = vpop.permute.xlu0 %1759
      %1761 = vrot.lane.b32.xlu0 %v251, 16
      %v1762 = vpop.permute.xlu0 %1761
      %1763 = vrot.lane.b32.xlu0 %v252, 16
      %v1764 = vpop.permute.xlu0 %1763
      %1765 = vrot.lane.b32.xlu0 %v253, 16
      %v1766 = vpop.permute.xlu0 %1765
      %1767 = vrot.lane.b32.xlu0 %v254, 16
      %v1768 = vpop.permute.xlu0 %1767
      %1769 = vrot.lane.b32.xlu0 %v255, 16
      %v1770 = vpop.permute.xlu0 %1769
      %1771 = vrot.lane.b32.xlu0 %v256, 16
      %v1772 = vpop.permute.xlu0 %1771
      %1773 = vrot.lane.b32.xlu0 %v257, 16
      %v1774 = vpop.permute.xlu0 %1773
      %1775 = vrot.lane.b32.xlu0 %v258, 16
      %v1776 = vpop.permute.xlu0 %1775
      %1777 = vrot.lane.b32.xlu0 %v259, 16
      %v1778 = vpop.permute.xlu0 %1777
      %1779 = vrot.lane.b32.xlu0 %v260, 16
      %v1780 = vpop.permute.xlu0 %1779
      %1781 = vrot.lane.b32.xlu0 %v261, 16
      %v1782 = vpop.permute.xlu0 %1781
      %1783 = vrot.lane.b32.xlu0 %v262, 16
      %v1784 = vpop.permute.xlu0 %1783
      %1785 = vrot.lane.b32.xlu0 %v263, 16
      %v1786 = vpop.permute.xlu0 %1785
      %1787 = vrot.lane.b32.xlu0 %v264, 16
      %v1788 = vpop.permute.xlu0 %1787
      %1789 = vrot.lane.b32.xlu0 %v265, 16
      %v1790 = vpop.permute.xlu0 %1789
      %1791 = vrot.lane.b32.xlu0 %v266, 16
      %v1792 = vpop.permute.xlu0 %1791
      %1793 = vrot.lane.b32.xlu0 %v267, 16
      %v1794 = vpop.permute.xlu0 %1793
      %1795 = vrot.lane.b32.xlu0 %v268, 16
      %v1796 = vpop.permute.xlu0 %1795
      %1797 = vrot.lane.b32.xlu0 %v269, 16
      %v1798 = vpop.permute.xlu0 %1797
      %1799 = vrot.lane.b32.xlu0 %v270, 16
      %v1800 = vpop.permute.xlu0 %1799
      %1801 = vrot.lane.b32.xlu0 %v271, 16
      %v1802 = vpop.permute.xlu0 %1801
      %1803 = vrot.lane.b32.xlu0 %v272, 16
      %v1804 = vpop.permute.xlu0 %1803
      %1805 = vrot.lane.b32.xlu0 %v273, 16
      %v1806 = vpop.permute.xlu0 %1805
      %1807 = vrot.lane.b32.xlu0 %v274, 16
      %v1808 = vpop.permute.xlu0 %1807
      %1809 = vrot.lane.b32.xlu0 %v275, 16
      %v1810 = vpop.permute.xlu0 %1809
      %1811 = vrot.lane.b32.xlu0 %v276, 16
      %v1812 = vpop.permute.xlu0 %1811
      %1813 = vrot.lane.b32.xlu0 %v277, 16
      %v1814 = vpop.permute.xlu0 %1813
      %vm1863 = vcmask 158848
      %1864 = vst.msk [vmem:[#allocation2] sm:$0xf] %vm1863, %v1720
      %1865 = vst.msk [vmem:[#allocation2 + $0x4] sm:$0xf] %vm1863, %v1722
      %1866 = vst.msk [vmem:[#allocation2 + $0x8] sm:$0xf] %vm1863, %v1724
      %1867 = vst.msk [vmem:[#allocation2 + $0xc] sm:$0xf] %vm1863, %v1726
      %1868 = vst.msk [vmem:[#allocation2 + $0x10] sm:$0xf] %vm1863, %v1728
      %1869 = vst.msk [vmem:[#allocation2 + $0x14] sm:$0xf] %vm1863, %v1730
      %1870 = vst.msk [vmem:[#allocation2 + $0x18] sm:$0xf] %vm1863, %v1732
      %1871 = vst.msk [vmem:[#allocation2 + $0x1c] sm:$0xf] %vm1863, %v1734
      %1872 = vst.msk [vmem:[#allocation2 + $0x20] sm:$0xf] %vm1863, %v1736
      %1873 = vst.msk [vmem:[#allocation2 + $0x24] sm:$0xf] %vm1863, %v1738
      %1874 = vst.msk [vmem:[#allocation2 + $0x28] sm:$0xf] %vm1863, %v1740
      %1875 = vst.msk [vmem:[#allocation2 + $0x2c] sm:$0xf] %vm1863, %v1742
      %1876 = vst.msk [vmem:[#allocation2 + $0x30] sm:$0xf] %vm1863, %v1744
      %1877 = vst.msk [vmem:[#allocation2 + $0x34] sm:$0xf] %vm1863, %v1746
      %1878 = vst.msk [vmem:[#allocation2 + $0x38] sm:$0xf] %vm1863, %v1748
      %1879 = vst.msk [vmem:[#allocation2 + $0x3c] sm:$0xf] %vm1863, %v1750
      %1880 = vst.msk [vmem:[#allocation2 + $0x40] sm:$0xf] %vm1863, %v1752
      %1881 = vst.msk [vmem:[#allocation2 + $0x44] sm:$0xf] %vm1863, %v1754
      %1882 = vst.msk [vmem:[#allocation2 + $0x48] sm:$0xf] %vm1863, %v1756
      %1883 = vst.msk [vmem:[#allocation2 + $0x4c] sm:$0xf] %vm1863, %v1758
      %1884 = vst.msk [vmem:[#allocation2 + $0x50] sm:$0xf] %vm1863, %v1760
      %1885 = vst.msk [vmem:[#allocation2 + $0x54] sm:$0xf] %vm1863, %v1762
      %1886 = vst.msk [vmem:[#allocation2 + $0x58] sm:$0xf] %vm1863, %v1764
      %1887 = vst.msk [vmem:[#allocation2 + $0x5c] sm:$0xf] %vm1863, %v1766
      %1888 = vst.msk [vmem:[#allocation2 + $0x60] sm:$0xf] %vm1863, %v1768
      %1889 = vst.msk [vmem:[#allocation2 + $0x64] sm:$0xf] %vm1863, %v1770
      %1890 = vst.msk [vmem:[#allocation2 + $0x68] sm:$0xf] %vm1863, %v1772
      %1891 = vst.msk [vmem:[#allocation2 + $0x6c] sm:$0xf] %vm1863, %v1774
      %1892 = vst.msk [vmem:[#allocation2 + $0x70] sm:$0xf] %vm1863, %v1776
      %1893 = vst.msk [vmem:[#allocation2 + $0x74] sm:$0xf] %vm1863, %v1778
      %1894 = vst.msk [vmem:[#allocation2 + $0x78] sm:$0xf] %vm1863, %v1780
      %1895 = vst.msk [vmem:[#allocation2 + $0x7c] sm:$0xf] %vm1863, %v1782
      %1896 = vst.msk [vmem:[#allocation2 + $0x80] sm:$0xf] %vm1863, %v1784
      %1897 = vst.msk [vmem:[#allocation2 + $0x84] sm:$0xf] %vm1863, %v1786
      %1898 = vst.msk [vmem:[#allocation2 + $0x88] sm:$0xf] %vm1863, %v1788
      %1899 = vst.msk [vmem:[#allocation2 + $0x8c] sm:$0xf] %vm1863, %v1790
      %1900 = vst.msk [vmem:[#allocation2 + $0x90] sm:$0xf] %vm1863, %v1792
      %1901 = vst.msk [vmem:[#allocation2 + $0x94] sm:$0xf] %vm1863, %v1794
      %1902 = vst.msk [vmem:[#allocation2 + $0x98] sm:$0xf] %vm1863, %v1796
      %1903 = vst.msk [vmem:[#allocation2 + $0x9c] sm:$0xf] %vm1863, %v1798
      %1904 = vst.msk [vmem:[#allocation2 + $0xa0] sm:$0xf] %vm1863, %v1800
      %1905 = vst.msk [vmem:[#allocation2 + $0xa4] sm:$0xf] %vm1863, %v1802
      %1906 = vst.msk [vmem:[#allocation2 + $0xa8] sm:$0xf] %vm1863, %v1804
      %1907 = vst.msk [vmem:[#allocation2 + $0xac] sm:$0xf] %vm1863, %v1806
      %1908 = vst.msk [vmem:[#allocation2 + $0xb0] sm:$0xf] %vm1863, %v1808
      %1909 = vst.msk [vmem:[#allocation2 + $0xb4] sm:$0xf] %vm1863, %v1810
      %1910 = vst.msk [vmem:[#allocation2 + $0xb8] sm:$0xf] %vm1863, %v1812
      %1911 = vst.msk [vmem:[#allocation2 + $0xbc] sm:$0xf] %vm1863, %v1814
      %v1912 = vrot.slane %v1500, 4
      %v1913 = vor.u32 %v1912, %v1304
      %v1914 = vrot.slane %v1913, 4
      %v1915 = vrot.slane %v1510, 5
      %v1916 = vsel %vm1061, %v1914, %v1915
      %v1917 = vrot.slane %v1507, 4
      %v1918 = vor.u32 %v1917, %v1915
      %v1919 = vrot.slane %v1918, 4
      %v1920 = vrot.slane %v1519, 5
      %v1921 = vsel %vm1061, %v1919, %v1920
      %v1922 = vrot.slane %v1516, 4
      %v1923 = vor.u32 %v1922, %v1920
      %v1924 = vrot.slane %v1923, 4
      %v1926 = vshll.u32 %v278, 16
      %v1928 = vrot.slane %v1926, 5
      %v1929 = vsel %vm1061, %v1924, %v1928
      %1930 = vrot.lane.b32.xlu0 %v1082, 20
      %v1931 = vpop.permute.xlu0 %1930
      %1932 = vrot.lane.b32.xlu0 %v1087, 20
      %v1933 = vpop.permute.xlu0 %1932
      %1934 = vrot.lane.b32.xlu0 %v1092, 20
      %v1935 = vpop.permute.xlu0 %1934
      %1936 = vrot.lane.b32.xlu0 %v1097, 20
      %v1937 = vpop.permute.xlu0 %1936
      %1938 = vrot.lane.b32.xlu0 %v1102, 20
      %v1939 = vpop.permute.xlu0 %1938
      %1940 = vrot.lane.b32.xlu0 %v1107, 20
      %v1941 = vpop.permute.xlu0 %1940
      %1942 = vrot.lane.b32.xlu0 %v1112, 20
      %v1943 = vpop.permute.xlu0 %1942
      %1944 = vrot.lane.b32.xlu0 %v1117, 20
      %v1945 = vpop.permute.xlu0 %1944
      %1946 = vrot.lane.b32.xlu0 %v1122, 20
      %v1947 = vpop.permute.xlu0 %1946
      %1948 = vrot.lane.b32.xlu0 %v1127, 20
      %v1949 = vpop.permute.xlu0 %1948
      %1950 = vrot.lane.b32.xlu0 %v1132, 20
      %v1951 = vpop.permute.xlu0 %1950
      %1952 = vrot.lane.b32.xlu0 %v1137, 20
      %v1953 = vpop.permute.xlu0 %1952
      %1954 = vrot.lane.b32.xlu0 %v1142, 20
      %v1955 = vpop.permute.xlu0 %1954
      %1956 = vrot.lane.b32.xlu0 %v1147, 20
      %v1957 = vpop.permute.xlu0 %1956
      %1958 = vrot.lane.b32.xlu0 %v1152, 20
      %v1959 = vpop.permute.xlu0 %1958
      %1960 = vrot.lane.b32.xlu0 %v1157, 20
      %v1961 = vpop.permute.xlu0 %1960
      %1962 = vrot.lane.b32.xlu0 %v1162, 20
      %v1963 = vpop.permute.xlu0 %1962
      %1964 = vrot.lane.b32.xlu0 %v1167, 20
      %v1965 = vpop.permute.xlu0 %1964
      %1966 = vrot.lane.b32.xlu0 %v1172, 20
      %v1967 = vpop.permute.xlu0 %1966
      %1968 = vrot.lane.b32.xlu0 %v1177, 20
      %v1969 = vpop.permute.xlu0 %1968
      %1970 = vrot.lane.b32.xlu0 %v1182, 20
      %v1971 = vpop.permute.xlu0 %1970
      %1972 = vrot.lane.b32.xlu0 %v1187, 20
      %v1973 = vpop.permute.xlu0 %1972
      %1974 = vrot.lane.b32.xlu0 %v1192, 20
      %v1975 = vpop.permute.xlu0 %1974
      %1976 = vrot.lane.b32.xlu0 %v1197, 20
      %v1977 = vpop.permute.xlu0 %1976
      %1978 = vrot.lane.b32.xlu0 %v1202, 20
      %v1979 = vpop.permute.xlu0 %1978
      %1980 = vrot.lane.b32.xlu0 %v1207, 20
      %v1981 = vpop.permute.xlu0 %1980
      %1982 = vrot.lane.b32.xlu0 %v1212, 20
      %v1983 = vpop.permute.xlu0 %1982
      %1984 = vrot.lane.b32.xlu0 %v1217, 20
      %v1985 = vpop.permute.xlu0 %1984
      %1986 = vrot.lane.b32.xlu0 %v1222, 20
      %v1987 = vpop.permute.xlu0 %1986
      %1988 = vrot.lane.b32.xlu0 %v1227, 20
      %v1989 = vpop.permute.xlu0 %1988
      %1990 = vrot.lane.b32.xlu0 %v1232, 20
      %v1991 = vpop.permute.xlu0 %1990
      %1992 = vrot.lane.b32.xlu0 %v1237, 20
      %v1993 = vpop.permute.xlu0 %1992
      %1994 = vrot.lane.b32.xlu0 %v1242, 20
      %v1995 = vpop.permute.xlu0 %1994
      %1996 = vrot.lane.b32.xlu0 %v1247, 20
      %v1997 = vpop.permute.xlu0 %1996
      %1998 = vrot.lane.b32.xlu0 %v1252, 20
      %v1999 = vpop.permute.xlu0 %1998
      %2000 = vrot.lane.b32.xlu0 %v1257, 20
      %v2001 = vpop.permute.xlu0 %2000
      %2002 = vrot.lane.b32.xlu0 %v1262, 20
      %v2003 = vpop.permute.xlu0 %2002
      %2004 = vrot.lane.b32.xlu0 %v1267, 20
      %v2005 = vpop.permute.xlu0 %2004
      %2006 = vrot.lane.b32.xlu0 %v1272, 20
      %v2007 = vpop.permute.xlu0 %2006
      %2008 = vrot.lane.b32.xlu0 %v1277, 20
      %v2009 = vpop.permute.xlu0 %2008
      %2010 = vrot.lane.b32.xlu0 %v1282, 20
      %v2011 = vpop.permute.xlu0 %2010
      %2012 = vrot.lane.b32.xlu0 %v1287, 20
      %v2013 = vpop.permute.xlu0 %2012
      %2014 = vrot.lane.b32.xlu0 %v1292, 20
      %v2015 = vpop.permute.xlu0 %2014
      %2016 = vrot.lane.b32.xlu0 %v1297, 20
      %v2017 = vpop.permute.xlu0 %2016
      %2018 = vrot.lane.b32.xlu0 %v1305, 20
      %v2019 = vpop.permute.xlu0 %2018
      %2020 = vrot.lane.b32.xlu0 %v1916, 20
      %v2021 = vpop.permute.xlu0 %2020
      %2022 = vrot.lane.b32.xlu0 %v1921, 20
      %v2023 = vpop.permute.xlu0 %2022
      %2024 = vrot.lane.b32.xlu0 %v1929, 20
      %v2025 = vpop.permute.xlu0 %2024
      %vm2074 = vcmask 191648
      %2075 = vst.msk [vmem:[#allocation2] sm:$0xf] %vm2074, %v1931
      %2076 = vst.msk [vmem:[#allocation2 + $0x4] sm:$0xf] %vm2074, %v1933
      %2077 = vst.msk [vmem:[#allocation2 + $0x8] sm:$0xf] %vm2074, %v1935
      %2078 = vst.msk [vmem:[#allocation2 + $0xc] sm:$0xf] %vm2074, %v1937
      %2079 = vst.msk [vmem:[#allocation2 + $0x10] sm:$0xf] %vm2074, %v1939
      %2080 = vst.msk [vmem:[#allocation2 + $0x14] sm:$0xf] %vm2074, %v1941
      %2081 = vst.msk [vmem:[#allocation2 + $0x18] sm:$0xf] %vm2074, %v1943
      %2082 = vst.msk [vmem:[#allocation2 + $0x1c] sm:$0xf] %vm2074, %v1945
      %2083 = vst.msk [vmem:[#allocation2 + $0x20] sm:$0xf] %vm2074, %v1947
      %2084 = vst.msk [vmem:[#allocation2 + $0x24] sm:$0xf] %vm2074, %v1949
      %2085 = vst.msk [vmem:[#allocation2 + $0x28] sm:$0xf] %vm2074, %v1951
      %2086 = vst.msk [vmem:[#allocation2 + $0x2c] sm:$0xf] %vm2074, %v1953
      %2087 = vst.msk [vmem:[#allocation2 + $0x30] sm:$0xf] %vm2074, %v1955
      %2088 = vst.msk [vmem:[#allocation2 + $0x34] sm:$0xf] %vm2074, %v1957
      %2089 = vst.msk [vmem:[#allocation2 + $0x38] sm:$0xf] %vm2074, %v1959
      %2090 = vst.msk [vmem:[#allocation2 + $0x3c] sm:$0xf] %vm2074, %v1961
      %2091 = vst.msk [vmem:[#allocation2 + $0x40] sm:$0xf] %vm2074, %v1963
      %2092 = vst.msk [vmem:[#allocation2 + $0x44] sm:$0xf] %vm2074, %v1965
      %2093 = vst.msk [vmem:[#allocation2 + $0x48] sm:$0xf] %vm2074, %v1967
      %2094 = vst.msk [vmem:[#allocation2 + $0x4c] sm:$0xf] %vm2074, %v1969
      %2095 = vst.msk [vmem:[#allocation2 + $0x50] sm:$0xf] %vm2074, %v1971
      %2096 = vst.msk [vmem:[#allocation2 + $0x54] sm:$0xf] %vm2074, %v1973
      %2097 = vst.msk [vmem:[#allocation2 + $0x58] sm:$0xf] %vm2074, %v1975
      %2098 = vst.msk [vmem:[#allocation2 + $0x5c] sm:$0xf] %vm2074, %v1977
      %2099 = vst.msk [vmem:[#allocation2 + $0x60] sm:$0xf] %vm2074, %v1979
      %2100 = vst.msk [vmem:[#allocation2 + $0x64] sm:$0xf] %vm2074, %v1981
      %2101 = vst.msk [vmem:[#allocation2 + $0x68] sm:$0xf] %vm2074, %v1983
      %2102 = vst.msk [vmem:[#allocation2 + $0x6c] sm:$0xf] %vm2074, %v1985
      %2103 = vst.msk [vmem:[#allocation2 + $0x70] sm:$0xf] %vm2074, %v1987
      %2104 = vst.msk [vmem:[#allocation2 + $0x74] sm:$0xf] %vm2074, %v1989
      %2105 = vst.msk [vmem:[#allocation2 + $0x78] sm:$0xf] %vm2074, %v1991
      %2106 = vst.msk [vmem:[#allocation2 + $0x7c] sm:$0xf] %vm2074, %v1993
      %2107 = vst.msk [vmem:[#allocation2 + $0x80] sm:$0xf] %vm2074, %v1995
      %2108 = vst.msk [vmem:[#allocation2 + $0x84] sm:$0xf] %vm2074, %v1997
      %2109 = vst.msk [vmem:[#allocation2 + $0x88] sm:$0xf] %vm2074, %v1999
      %2110 = vst.msk [vmem:[#allocation2 + $0x8c] sm:$0xf] %vm2074, %v2001
      %2111 = vst.msk [vmem:[#allocation2 + $0x90] sm:$0xf] %vm2074, %v2003
      %2112 = vst.msk [vmem:[#allocation2 + $0x94] sm:$0xf] %vm2074, %v2005
      %2113 = vst.msk [vmem:[#allocation2 + $0x98] sm:$0xf] %vm2074, %v2007
      %2114 = vst.msk [vmem:[#allocation2 + $0x9c] sm:$0xf] %vm2074, %v2009
      %2115 = vst.msk [vmem:[#allocation2 + $0xa0] sm:$0xf] %vm2074, %v2011
      %2116 = vst.msk [vmem:[#allocation2 + $0xa4] sm:$0xf] %vm2074, %v2013
      %2117 = vst.msk [vmem:[#allocation2 + $0xa8] sm:$0xf] %vm2074, %v2015
      %2118 = vst.msk [vmem:[#allocation2 + $0xac] sm:$0xf] %vm2074, %v2017
      %2119 = vst.msk [vmem:[#allocation2 + $0xb0] sm:$0xf] %vm2074, %v2019
      %2120 = vst.msk [vmem:[#allocation2 + $0xb4] sm:$0xf] %vm2074, %v2021
      %2121 = vst.msk [vmem:[#allocation2 + $0xb8] sm:$0xf] %vm2074, %v2023
      %2122 = vst.msk [vmem:[#allocation2 + $0xbc] sm:$0xf] %vm2074, %v2025
      %v2123 = vrot.slane %v1518, 4
      %v2124 = vshrl.u32 %v278, 16
      %v2126 = vrot.slane %v2124, 7
      %v2127 = vor.u32 %v2126, %v1926
      %v2128 = vsel %vm284, %v2123, %v2127
      %v2129 = vrot.slane %v2126, 4
      %v2131 = vshrl.u32 %v279, 16
      %v2133 = vrot.slane %v2131, 7
      %v2134 = vshll.u32 %v279, 16
      %v2136 = vor.u32 %v2133, %v2134
      %v2137 = vsel %vm284, %v2129, %v2136
      %v2138 = vrot.slane %v2133, 4
      %v2140 = vshrl.u32 %v280, 16
      %v2142 = vrot.slane %v2140, 7
      %v2143 = vshll.u32 %v280, 16
      %v2145 = vor.u32 %v2142, %v2143
      %v2146 = vsel %vm284, %v2138, %v2145
      %2147 = vrot.lane.b32.xlu0 %v351, 24
      %v2148 = vpop.permute.xlu0 %2147
      %2149 = vrot.lane.b32.xlu0 %v360, 24
      %v2150 = vpop.permute.xlu0 %2149
      %2151 = vrot.lane.b32.xlu0 %v369, 24
      %v2152 = vpop.permute.xlu0 %2151
      %2153 = vrot.lane.b32.xlu0 %v378, 24
      %v2154 = vpop.permute.xlu0 %2153
      %2155 = vrot.lane.b32.xlu0 %v387, 24
      %v2156 = vpop.permute.xlu0 %2155
      %2157 = vrot.lane.b32.xlu0 %v396, 24
      %v2158 = vpop.permute.xlu0 %2157
      %2159 = vrot.lane.b32.xlu0 %v405, 24
      %v2160 = vpop.permute.xlu0 %2159
      %2161 = vrot.lane.b32.xlu0 %v414, 24
      %v2162 = vpop.permute.xlu0 %2161
      %2163 = vrot.lane.b32.xlu0 %v423, 24
      %v2164 = vpop.permute.xlu0 %2163
      %2165 = vrot.lane.b32.xlu0 %v432, 24
      %v2166 = vpop.permute.xlu0 %2165
      %2167 = vrot.lane.b32.xlu0 %v441, 24
      %v2168 = vpop.permute.xlu0 %2167
      %2169 = vrot.lane.b32.xlu0 %v450, 24
      %v2170 = vpop.permute.xlu0 %2169
      %2171 = vrot.lane.b32.xlu0 %v459, 24
      %v2172 = vpop.permute.xlu0 %2171
      %2173 = vrot.lane.b32.xlu0 %v468, 24
      %v2174 = vpop.permute.xlu0 %2173
      %2175 = vrot.lane.b32.xlu0 %v477, 24
      %v2176 = vpop.permute.xlu0 %2175
      %2177 = vrot.lane.b32.xlu0 %v486, 24
      %v2178 = vpop.permute.xlu0 %2177
      %2179 = vrot.lane.b32.xlu0 %v495, 24
      %v2180 = vpop.permute.xlu0 %2179
      %2181 = vrot.lane.b32.xlu0 %v504, 24
      %v2182 = vpop.permute.xlu0 %2181
      %2183 = vrot.lane.b32.xlu0 %v513, 24
      %v2184 = vpop.permute.xlu0 %2183
      %2185 = vrot.lane.b32.xlu0 %v522, 24
      %v2186 = vpop.permute.xlu0 %2185
      %2187 = vrot.lane.b32.xlu0 %v531, 24
      %v2188 = vpop.permute.xlu0 %2187
      %2189 = vrot.lane.b32.xlu0 %v540, 24
      %v2190 = vpop.permute.xlu0 %2189
      %2191 = vrot.lane.b32.xlu0 %v549, 24
      %v2192 = vpop.permute.xlu0 %2191
      %2193 = vrot.lane.b32.xlu0 %v558, 24
      %v2194 = vpop.permute.xlu0 %2193
      %2195 = vrot.lane.b32.xlu0 %v567, 24
      %v2196 = vpop.permute.xlu0 %2195
      %2197 = vrot.lane.b32.xlu0 %v576, 24
      %v2198 = vpop.permute.xlu0 %2197
      %2199 = vrot.lane.b32.xlu0 %v585, 24
      %v2200 = vpop.permute.xlu0 %2199
      %2201 = vrot.lane.b32.xlu0 %v594, 24
      %v2202 = vpop.permute.xlu0 %2201
      %2203 = vrot.lane.b32.xlu0 %v603, 24
      %v2204 = vpop.permute.xlu0 %2203
      %2205 = vrot.lane.b32.xlu0 %v612, 24
      %v2206 = vpop.permute.xlu0 %2205
      %2207 = vrot.lane.b32.xlu0 %v621, 24
      %v2208 = vpop.permute.xlu0 %2207
      %2209 = vrot.lane.b32.xlu0 %v630, 24
      %v2210 = vpop.permute.xlu0 %2209
      %2211 = vrot.lane.b32.xlu0 %v639, 24
      %v2212 = vpop.permute.xlu0 %2211
      %2213 = vrot.lane.b32.xlu0 %v648, 24
      %v2214 = vpop.permute.xlu0 %2213
      %2215 = vrot.lane.b32.xlu0 %v657, 24
      %v2216 = vpop.permute.xlu0 %2215
      %2217 = vrot.lane.b32.xlu0 %v666, 24
      %v2218 = vpop.permute.xlu0 %2217
      %2219 = vrot.lane.b32.xlu0 %v675, 24
      %v2220 = vpop.permute.xlu0 %2219
      %2221 = vrot.lane.b32.xlu0 %v684, 24
      %v2222 = vpop.permute.xlu0 %2221
      %2223 = vrot.lane.b32.xlu0 %v693, 24
      %v2224 = vpop.permute.xlu0 %2223
      %2225 = vrot.lane.b32.xlu0 %v702, 24
      %v2226 = vpop.permute.xlu0 %2225
      %2227 = vrot.lane.b32.xlu0 %v711, 24
      %v2228 = vpop.permute.xlu0 %2227
      %2229 = vrot.lane.b32.xlu0 %v720, 24
      %v2230 = vpop.permute.xlu0 %2229
      %2231 = vrot.lane.b32.xlu0 %v1504, 24
      %v2232 = vpop.permute.xlu0 %2231
      %2233 = vrot.lane.b32.xlu0 %v1513, 24
      %v2234 = vpop.permute.xlu0 %2233
      %2235 = vrot.lane.b32.xlu0 %v1522, 24
      %v2236 = vpop.permute.xlu0 %2235
      %2237 = vrot.lane.b32.xlu0 %v2128, 24
      %v2238 = vpop.permute.xlu0 %2237
      %2239 = vrot.lane.b32.xlu0 %v2137, 24
      %v2240 = vpop.permute.xlu0 %2239
      %2241 = vrot.lane.b32.xlu0 %v2146, 24
      %v2242 = vpop.permute.xlu0 %2241
      %vm2291 = vcmask 224448
      %2292 = vst.msk [vmem:[#allocation2] sm:$0xf] %vm2291, %v2148
      %2293 = vst.msk [vmem:[#allocation2 + $0x4] sm:$0xf] %vm2291, %v2150
      %2294 = vst.msk [vmem:[#allocation2 + $0x8] sm:$0xf] %vm2291, %v2152
      %2295 = vst.msk [vmem:[#allocation2 + $0xc] sm:$0xf] %vm2291, %v2154
      %2296 = vst.msk [vmem:[#allocation2 + $0x10] sm:$0xf] %vm2291, %v2156
      %2297 = vst.msk [vmem:[#allocation2 + $0x14] sm:$0xf] %vm2291, %v2158
      %2298 = vst.msk [vmem:[#allocation2 + $0x18] sm:$0xf] %vm2291, %v2160
      %2299 = vst.msk [vmem:[#allocation2 + $0x1c] sm:$0xf] %vm2291, %v2162
      %2300 = vst.msk [vmem:[#allocation2 + $0x20] sm:$0xf] %vm2291, %v2164
      %2301 = vst.msk [vmem:[#allocation2 + $0x24] sm:$0xf] %vm2291, %v2166
      %2302 = vst.msk [vmem:[#allocation2 + $0x28] sm:$0xf] %vm2291, %v2168
      %2303 = vst.msk [vmem:[#allocation2 + $0x2c] sm:$0xf] %vm2291, %v2170
      %2304 = vst.msk [vmem:[#allocation2 + $0x30] sm:$0xf] %vm2291, %v2172
      %2305 = vst.msk [vmem:[#allocation2 + $0x34] sm:$0xf] %vm2291, %v2174
      %2306 = vst.msk [vmem:[#allocation2 + $0x38] sm:$0xf] %vm2291, %v2176
      %2307 = vst.msk [vmem:[#allocation2 + $0x3c] sm:$0xf] %vm2291, %v2178
      %2308 = vst.msk [vmem:[#allocation2 + $0x40] sm:$0xf] %vm2291, %v2180
      %2309 = vst.msk [vmem:[#allocation2 + $0x44] sm:$0xf] %vm2291, %v2182
      %2310 = vst.msk [vmem:[#allocation2 + $0x48] sm:$0xf] %vm2291, %v2184
      %2311 = vst.msk [vmem:[#allocation2 + $0x4c] sm:$0xf] %vm2291, %v2186
      %2312 = vst.msk [vmem:[#allocation2 + $0x50] sm:$0xf] %vm2291, %v2188
      %2313 = vst.msk [vmem:[#allocation2 + $0x54] sm:$0xf] %vm2291, %v2190
      %2314 = vst.msk [vmem:[#allocation2 + $0x58] sm:$0xf] %vm2291, %v2192
      %2315 = vst.msk [vmem:[#allocation2 + $0x5c] sm:$0xf] %vm2291, %v2194
      %2316 = vst.msk [vmem:[#allocation2 + $0x60] sm:$0xf] %vm2291, %v2196
      %2317 = vst.msk [vmem:[#allocation2 + $0x64] sm:$0xf] %vm2291, %v2198
      %2318 = vst.msk [vmem:[#allocation2 + $0x68] sm:$0xf] %vm2291, %v2200
      %2319 = vst.msk [vmem:[#allocation2 + $0x6c] sm:$0xf] %vm2291, %v2202
      %2320 = vst.msk [vmem:[#allocation2 + $0x70] sm:$0xf] %vm2291, %v2204
      %2321 = vst.msk [vmem:[#allocation2 + $0x74] sm:$0xf] %vm2291, %v2206
      %2322 = vst.msk [vmem:[#allocation2 + $0x78] sm:$0xf] %vm2291, %v2208
      %2323 = vst.msk [vmem:[#allocation2 + $0x7c] sm:$0xf] %vm2291, %v2210
      %2324 = vst.msk [vmem:[#allocation2 + $0x80] sm:$0xf] %vm2291, %v2212
      %2325 = vst.msk [vmem:[#allocation2 + $0x84] sm:$0xf] %vm2291, %v2214
      %2326 = vst.msk [vmem:[#allocation2 + $0x88] sm:$0xf] %vm2291, %v2216
      %2327 = vst.msk [vmem:[#allocation2 + $0x8c] sm:$0xf] %vm2291, %v2218
      %2328 = vst.msk [vmem:[#allocation2 + $0x90] sm:$0xf] %vm2291, %v2220
      %2329 = vst.msk [vmem:[#allocation2 + $0x94] sm:$0xf] %vm2291, %v2222
      %2330 = vst.msk [vmem:[#allocation2 + $0x98] sm:$0xf] %vm2291, %v2224
      %2331 = vst.msk [vmem:[#allocation2 + $0x9c] sm:$0xf] %vm2291, %v2226
      %2332 = vst.msk [vmem:[#allocation2 + $0xa0] sm:$0xf] %vm2291, %v2228
      %2333 = vst.msk [vmem:[#allocation2 + $0xa4] sm:$0xf] %vm2291, %v2230
      %2334 = vst.msk [vmem:[#allocation2 + $0xa8] sm:$0xf] %vm2291, %v2232
      %2335 = vst.msk [vmem:[#allocation2 + $0xac] sm:$0xf] %vm2291, %v2234
      %2336 = vst.msk [vmem:[#allocation2 + $0xb0] sm:$0xf] %vm2291, %v2236
      %2337 = vst.msk [vmem:[#allocation2 + $0xb4] sm:$0xf] %vm2291, %v2238
      %2338 = vst.msk [vmem:[#allocation2 + $0xb8] sm:$0xf] %vm2291, %v2240
      %2339 = vst.msk [vmem:[#allocation2 + $0xbc] sm:$0xf] %vm2291, %v2242
      %2343 = vrot.lane.b32.xlu0 %v233, 28
      %v2344 = vpop.permute.xlu0 %2343
      %2345 = vrot.lane.b32.xlu0 %v234, 28
      %v2346 = vpop.permute.xlu0 %2345
      %2347 = vrot.lane.b32.xlu0 %v235, 28
      %v2348 = vpop.permute.xlu0 %2347
      %2349 = vrot.lane.b32.xlu0 %v236, 28
      %v2350 = vpop.permute.xlu0 %2349
      %2351 = vrot.lane.b32.xlu0 %v237, 28
      %v2352 = vpop.permute.xlu0 %2351
      %2353 = vrot.lane.b32.xlu0 %v238, 28
      %v2354 = vpop.permute.xlu0 %2353
      %2355 = vrot.lane.b32.xlu0 %v239, 28
      %v2356 = vpop.permute.xlu0 %2355
      %2357 = vrot.lane.b32.xlu0 %v240, 28
      %v2358 = vpop.permute.xlu0 %2357
      %2359 = vrot.lane.b32.xlu0 %v241, 28
      %v2360 = vpop.permute.xlu0 %2359
      %2361 = vrot.lane.b32.xlu0 %v242, 28
      %v2362 = vpop.permute.xlu0 %2361
      %2363 = vrot.lane.b32.xlu0 %v243, 28
      %v2364 = vpop.permute.xlu0 %2363
      %2365 = vrot.lane.b32.xlu0 %v244, 28
      %v2366 = vpop.permute.xlu0 %2365
      %2367 = vrot.lane.b32.xlu0 %v245, 28
      %v2368 = vpop.permute.xlu0 %2367
      %2369 = vrot.lane.b32.xlu0 %v246, 28
      %v2370 = vpop.permute.xlu0 %2369
      %2371 = vrot.lane.b32.xlu0 %v247, 28
      %v2372 = vpop.permute.xlu0 %2371
      %2373 = vrot.lane.b32.xlu0 %v248, 28
      %v2374 = vpop.permute.xlu0 %2373
      %2375 = vrot.lane.b32.xlu0 %v249, 28
      %v2376 = vpop.permute.xlu0 %2375
      %2377 = vrot.lane.b32.xlu0 %v250, 28
      %v2378 = vpop.permute.xlu0 %2377
      %2379 = vrot.lane.b32.xlu0 %v251, 28
      %v2380 = vpop.permute.xlu0 %2379
      %2381 = vrot.lane.b32.xlu0 %v252, 28
      %v2382 = vpop.permute.xlu0 %2381
      %2383 = vrot.lane.b32.xlu0 %v253, 28
      %v2384 = vpop.permute.xlu0 %2383
      %2385 = vrot.lane.b32.xlu0 %v254, 28
      %v2386 = vpop.permute.xlu0 %2385
      %2387 = vrot.lane.b32.xlu0 %v255, 28
      %v2388 = vpop.permute.xlu0 %2387
      %2389 = vrot.lane.b32.xlu0 %v256, 28
      %v2390 = vpop.permute.xlu0 %2389
      %2391 = vrot.lane.b32.xlu0 %v257, 28
      %v2392 = vpop.permute.xlu0 %2391
      %2393 = vrot.lane.b32.xlu0 %v258, 28
      %v2394 = vpop.permute.xlu0 %2393
      %2395 = vrot.lane.b32.xlu0 %v259, 28
      %v2396 = vpop.permute.xlu0 %2395
      %2397 = vrot.lane.b32.xlu0 %v260, 28
      %v2398 = vpop.permute.xlu0 %2397
      %2399 = vrot.lane.b32.xlu0 %v261, 28
      %v2400 = vpop.permute.xlu0 %2399
      %2401 = vrot.lane.b32.xlu0 %v262, 28
      %v2402 = vpop.permute.xlu0 %2401
      %2403 = vrot.lane.b32.xlu0 %v263, 28
      %v2404 = vpop.permute.xlu0 %2403
      %2405 = vrot.lane.b32.xlu0 %v264, 28
      %v2406 = vpop.permute.xlu0 %2405
      %2407 = vrot.lane.b32.xlu0 %v265, 28
      %v2408 = vpop.permute.xlu0 %2407
      %2409 = vrot.lane.b32.xlu0 %v266, 28
      %v2410 = vpop.permute.xlu0 %2409
      %2411 = vrot.lane.b32.xlu0 %v267, 28
      %v2412 = vpop.permute.xlu0 %2411
      %2413 = vrot.lane.b32.xlu0 %v268, 28
      %v2414 = vpop.permute.xlu0 %2413
      %2415 = vrot.lane.b32.xlu0 %v269, 28
      %v2416 = vpop.permute.xlu0 %2415
      %2417 = vrot.lane.b32.xlu0 %v270, 28
      %v2418 = vpop.permute.xlu0 %2417
      %2419 = vrot.lane.b32.xlu0 %v271, 28
      %v2420 = vpop.permute.xlu0 %2419
      %2421 = vrot.lane.b32.xlu0 %v272, 28
      %v2422 = vpop.permute.xlu0 %2421
      %2423 = vrot.lane.b32.xlu0 %v273, 28
      %v2424 = vpop.permute.xlu0 %2423
      %2425 = vrot.lane.b32.xlu0 %v274, 28
      %v2426 = vpop.permute.xlu0 %2425
      %2427 = vrot.lane.b32.xlu0 %v275, 28
      %v2428 = vpop.permute.xlu0 %2427
      %2429 = vrot.lane.b32.xlu0 %v276, 28
      %v2430 = vpop.permute.xlu0 %2429
      %2431 = vrot.lane.b32.xlu0 %v277, 28
      %v2432 = vpop.permute.xlu0 %2431
      %2433 = vrot.lane.b32.xlu0 %v278, 28
      %v2434 = vpop.permute.xlu0 %2433
      %2435 = vrot.lane.b32.xlu0 %v279, 28
      %v2436 = vpop.permute.xlu0 %2435
      %2437 = vrot.lane.b32.xlu0 %v280, 28
      %v2438 = vpop.permute.xlu0 %2437
      %vm2487 = vcmask 257248
      %2488 = vst.msk [vmem:[#allocation2] sm:$0xf] %vm2487, %v2344
      %2489 = vst.msk [vmem:[#allocation2 + $0x4] sm:$0xf] %vm2487, %v2346
      %2490 = vst.msk [vmem:[#allocation2 + $0x8] sm:$0xf] %vm2487, %v2348
      %2491 = vst.msk [vmem:[#allocation2 + $0xc] sm:$0xf] %vm2487, %v2350
      %2492 = vst.msk [vmem:[#allocation2 + $0x10] sm:$0xf] %vm2487, %v2352
      %2493 = vst.msk [vmem:[#allocation2 + $0x14] sm:$0xf] %vm2487, %v2354
      %2494 = vst.msk [vmem:[#allocation2 + $0x18] sm:$0xf] %vm2487, %v2356
      %2495 = vst.msk [vmem:[#allocation2 + $0x1c] sm:$0xf] %vm2487, %v2358
      %2496 = vst.msk [vmem:[#allocation2 + $0x20] sm:$0xf] %vm2487, %v2360
      %2497 = vst.msk [vmem:[#allocation2 + $0x24] sm:$0xf] %vm2487, %v2362
      %2498 = vst.msk [vmem:[#allocation2 + $0x28] sm:$0xf] %vm2487, %v2364
      %2499 = vst.msk [vmem:[#allocation2 + $0x2c] sm:$0xf] %vm2487, %v2366
      %2500 = vst.msk [vmem:[#allocation2 + $0x30] sm:$0xf] %vm2487, %v2368
      %2501 = vst.msk [vmem:[#allocation2 + $0x34] sm:$0xf] %vm2487, %v2370
      %2502 = vst.msk [vmem:[#allocation2 + $0x38] sm:$0xf] %vm2487, %v2372
      %2503 = vst.msk [vmem:[#allocation2 + $0x3c] sm:$0xf] %vm2487, %v2374
      %2504 = vst.msk [vmem:[#allocation2 + $0x40] sm:$0xf] %vm2487, %v2376
      %2505 = vst.msk [vmem:[#allocation2 + $0x44] sm:$0xf] %vm2487, %v2378
      %2506 = vst.msk [vmem:[#allocation2 + $0x48] sm:$0xf] %vm2487, %v2380
      %2507 = vst.msk [vmem:[#allocation2 + $0x4c] sm:$0xf] %vm2487, %v2382
      %2508 = vst.msk [vmem:[#allocation2 + $0x50] sm:$0xf] %vm2487, %v2384
      %2509 = vst.msk [vmem:[#allocation2 + $0x54] sm:$0xf] %vm2487, %v2386
      %2510 = vst.msk [vmem:[#allocation2 + $0x58] sm:$0xf] %vm2487, %v2388
      %2511 = vst.msk [vmem:[#allocation2 + $0x5c] sm:$0xf] %vm2487, %v2390
      %2512 = vst.msk [vmem:[#allocation2 + $0x60] sm:$0xf] %vm2487, %v2392
      %2513 = vst.msk [vmem:[#allocation2 + $0x64] sm:$0xf] %vm2487, %v2394
      %2514 = vst.msk [vmem:[#allocation2 + $0x68] sm:$0xf] %vm2487, %v2396
      %2515 = vst.msk [vmem:[#allocation2 + $0x6c] sm:$0xf] %vm2487, %v2398
      %2516 = vst.msk [vmem:[#allocation2 + $0x70] sm:$0xf] %vm2487, %v2400
      %2517 = vst.msk [vmem:[#allocation2 + $0x74] sm:$0xf] %vm2487, %v2402
      %2518 = vst.msk [vmem:[#allocation2 + $0x78] sm:$0xf] %vm2487, %v2404
      %2519 = vst.msk [vmem:[#allocation2 + $0x7c] sm:$0xf] %vm2487, %v2406
      %2520 = vst.msk [vmem:[#allocation2 + $0x80] sm:$0xf] %vm2487, %v2408
      %2521 = vst.msk [vmem:[#allocation2 + $0x84] sm:$0xf] %vm2487, %v2410
      %2522 = vst.msk [vmem:[#allocation2 + $0x88] sm:$0xf] %vm2487, %v2412
      %2523 = vst.msk [vmem:[#allocation2 + $0x8c] sm:$0xf] %vm2487, %v2414
      %2524 = vst.msk [vmem:[#allocation2 + $0x90] sm:$0xf] %vm2487, %v2416
      %2525 = vst.msk [vmem:[#allocation2 + $0x94] sm:$0xf] %vm2487, %v2418
      %2526 = vst.msk [vmem:[#allocation2 + $0x98] sm:$0xf] %vm2487, %v2420
      %2527 = vst.msk [vmem:[#allocation2 + $0x9c] sm:$0xf] %vm2487, %v2422
      %2528 = vst.msk [vmem:[#allocation2 + $0xa0] sm:$0xf] %vm2487, %v2424
      %2529 = vst.msk [vmem:[#allocation2 + $0xa4] sm:$0xf] %vm2487, %v2426
      %2530 = vst.msk [vmem:[#allocation2 + $0xa8] sm:$0xf] %vm2487, %v2428
      %2531 = vst.msk [vmem:[#allocation2 + $0xac] sm:$0xf] %vm2487, %v2430
      %2532 = vst.msk [vmem:[#allocation2 + $0xb0] sm:$0xf] %vm2487, %v2432
      %2533 = vst.msk [vmem:[#allocation2 + $0xb4] sm:$0xf] %vm2487, %v2434
      %2534 = vst.msk [vmem:[#allocation2 + $0xb8] sm:$0xf] %vm2487, %v2436
      %2535 = vst.msk [vmem:[#allocation2 + $0xbc] sm:$0xf] %vm2487, %v2438
      %v2536 = vrot.slane %v2124, 4
      %v2537 = vor.u32 %v2536, %v1928
      %v2538 = vrot.slane %v2537, 4
      %v2539 = vrot.slane %v2134, 5
      %v2540 = vsel %vm1061, %v2538, %v2539
      %v2541 = vrot.slane %v2131, 4
      %v2542 = vor.u32 %v2541, %v2539
      %v2543 = vrot.slane %v2542, 4
      %v2544 = vrot.slane %v2143, 5
      %v2545 = vsel %vm1061, %v2543, %v2544
      %v2546 = vrot.slane %v2140, 4
      %v2547 = vor.u32 %v2546, %v2544
      %v2548 = vrot.slane %v2547, 4
      %v2550 = vshll.u32 %v281, 16
      %v2552 = vrot.slane %v2550, 5
      %v2553 = vsel %vm1061, %v2548, %v2552
      %2554 = vrot.lane.b32.xlu0 %v1097, 32
      %v2555 = vpop.permute.xlu0 %2554
      %2556 = vrot.lane.b32.xlu0 %v1102, 32
      %v2557 = vpop.permute.xlu0 %2556
      %2558 = vrot.lane.b32.xlu0 %v1107, 32
      %v2559 = vpop.permute.xlu0 %2558
      %2560 = vrot.lane.b32.xlu0 %v1112, 32
      %v2561 = vpop.permute.xlu0 %2560
      %2562 = vrot.lane.b32.xlu0 %v1117, 32
      %v2563 = vpop.permute.xlu0 %2562
      %2564 = vrot.lane.b32.xlu0 %v1122, 32
      %v2565 = vpop.permute.xlu0 %2564
      %2566 = vrot.lane.b32.xlu0 %v1127, 32
      %v2567 = vpop.permute.xlu0 %2566
      %2568 = vrot.lane.b32.xlu0 %v1132, 32
      %v2569 = vpop.permute.xlu0 %2568
      %2570 = vrot.lane.b32.xlu0 %v1137, 32
      %v2571 = vpop.permute.xlu0 %2570
      %2572 = vrot.lane.b32.xlu0 %v1142, 32
      %v2573 = vpop.permute.xlu0 %2572
      %2574 = vrot.lane.b32.xlu0 %v1147, 32
      %v2575 = vpop.permute.xlu0 %2574
      %2576 = vrot.lane.b32.xlu0 %v1152, 32
      %v2577 = vpop.permute.xlu0 %2576
      %2578 = vrot.lane.b32.xlu0 %v1157, 32
      %v2579 = vpop.permute.xlu0 %2578
      %2580 = vrot.lane.b32.xlu0 %v1162, 32
      %v2581 = vpop.permute.xlu0 %2580
      %2582 = vrot.lane.b32.xlu0 %v1167, 32
      %v2583 = vpop.permute.xlu0 %2582
      %2584 = vrot.lane.b32.xlu0 %v1172, 32
      %v2585 = vpop.permute.xlu0 %2584
      %2586 = vrot.lane.b32.xlu0 %v1177, 32
      %v2587 = vpop.permute.xlu0 %2586
      %2588 = vrot.lane.b32.xlu0 %v1182, 32
      %v2589 = vpop.permute.xlu0 %2588
      %2590 = vrot.lane.b32.xlu0 %v1187, 32
      %v2591 = vpop.permute.xlu0 %2590
      %2592 = vrot.lane.b32.xlu0 %v1192, 32
      %v2593 = vpop.permute.xlu0 %2592
      %2594 = vrot.lane.b32.xlu0 %v1197, 32
      %v2595 = vpop.permute.xlu0 %2594
      %2596 = vrot.lane.b32.xlu0 %v1202, 32
      %v2597 = vpop.permute.xlu0 %2596
      %2598 = vrot.lane.b32.xlu0 %v1207, 32
      %v2599 = vpop.permute.xlu0 %2598
      %2600 = vrot.lane.b32.xlu0 %v1212, 32
      %v2601 = vpop.permute.xlu0 %2600
      %2602 = vrot.lane.b32.xlu0 %v1217, 32
      %v2603 = vpop.permute.xlu0 %2602
      %2604 = vrot.lane.b32.xlu0 %v1222, 32
      %v2605 = vpop.permute.xlu0 %2604
      %2606 = vrot.lane.b32.xlu0 %v1227, 32
      %v2607 = vpop.permute.xlu0 %2606
      %2608 = vrot.lane.b32.xlu0 %v1232, 32
      %v2609 = vpop.permute.xlu0 %2608
      %2610 = vrot.lane.b32.xlu0 %v1237, 32
      %v2611 = vpop.permute.xlu0 %2610
      %2612 = vrot.lane.b32.xlu0 %v1242, 32
      %v2613 = vpop.permute.xlu0 %2612
      %2614 = vrot.lane.b32.xlu0 %v1247, 32
      %v2615 = vpop.permute.xlu0 %2614
      %2616 = vrot.lane.b32.xlu0 %v1252, 32
      %v2617 = vpop.permute.xlu0 %2616
      %2618 = vrot.lane.b32.xlu0 %v1257, 32
      %v2619 = vpop.permute.xlu0 %2618
      %2620 = vrot.lane.b32.xlu0 %v1262, 32
      %v2621 = vpop.permute.xlu0 %2620
      %2622 = vrot.lane.b32.xlu0 %v1267, 32
      %v2623 = vpop.permute.xlu0 %2622
      %2624 = vrot.lane.b32.xlu0 %v1272, 32
      %v2625 = vpop.permute.xlu0 %2624
      %2626 = vrot.lane.b32.xlu0 %v1277, 32
      %v2627 = vpop.permute.xlu0 %2626
      %2628 = vrot.lane.b32.xlu0 %v1282, 32
      %v2629 = vpop.permute.xlu0 %2628
      %2630 = vrot.lane.b32.xlu0 %v1287, 32
      %v2631 = vpop.permute.xlu0 %2630
      %2632 = vrot.lane.b32.xlu0 %v1292, 32
      %v2633 = vpop.permute.xlu0 %2632
      %2634 = vrot.lane.b32.xlu0 %v1297, 32
      %v2635 = vpop.permute.xlu0 %2634
      %2636 = vrot.lane.b32.xlu0 %v1305, 32
      %v2637 = vpop.permute.xlu0 %2636
      %2638 = vrot.lane.b32.xlu0 %v1916, 32
      %v2639 = vpop.permute.xlu0 %2638
      %2640 = vrot.lane.b32.xlu0 %v1921, 32
      %v2641 = vpop.permute.xlu0 %2640
      %2642 = vrot.lane.b32.xlu0 %v1929, 32
      %v2643 = vpop.permute.xlu0 %2642
      %2644 = vrot.lane.b32.xlu0 %v2540, 32
      %v2645 = vpop.permute.xlu0 %2644
      %2646 = vrot.lane.b32.xlu0 %v2545, 32
      %v2647 = vpop.permute.xlu0 %2646
      %2648 = vrot.lane.b32.xlu0 %v2553, 32
      %v2649 = vpop.permute.xlu0 %2648
      %vm2698 = vcmask 290048
      %2699 = vst.msk [vmem:[#allocation2] sm:$0xf] %vm2698, %v2555
      %2700 = vst.msk [vmem:[#allocation2 + $0x4] sm:$0xf] %vm2698, %v2557
      %2701 = vst.msk [vmem:[#allocation2 + $0x8] sm:$0xf] %vm2698, %v2559
      %2702 = vst.msk [vmem:[#allocation2 + $0xc] sm:$0xf] %vm2698, %v2561
      %2703 = vst.msk [vmem:[#allocation2 + $0x10] sm:$0xf] %vm2698, %v2563
      %2704 = vst.msk [vmem:[#allocation2 + $0x14] sm:$0xf] %vm2698, %v2565
      %2705 = vst.msk [vmem:[#allocation2 + $0x18] sm:$0xf] %vm2698, %v2567
      %2706 = vst.msk [vmem:[#allocation2 + $0x1c] sm:$0xf] %vm2698, %v2569
      %2707 = vst.msk [vmem:[#allocation2 + $0x20] sm:$0xf] %vm2698, %v2571
      %2708 = vst.msk [vmem:[#allocation2 + $0x24] sm:$0xf] %vm2698, %v2573
      %2709 = vst.msk [vmem:[#allocation2 + $0x28] sm:$0xf] %vm2698, %v2575
      %2710 = vst.msk [vmem:[#allocation2 + $0x2c] sm:$0xf] %vm2698, %v2577
      %2711 = vst.msk [vmem:[#allocation2 + $0x30] sm:$0xf] %vm2698, %v2579
      %2712 = vst.msk [vmem:[#allocation2 + $0x34] sm:$0xf] %vm2698, %v2581
      %2713 = vst.msk [vmem:[#allocation2 + $0x38] sm:$0xf] %vm2698, %v2583
      %2714 = vst.msk [vmem:[#allocation2 + $0x3c] sm:$0xf] %vm2698, %v2585
      %2715 = vst.msk [vmem:[#allocation2 + $0x40] sm:$0xf] %vm2698, %v2587
      %2716 = vst.msk [vmem:[#allocation2 + $0x44] sm:$0xf] %vm2698, %v2589
      %2717 = vst.msk [vmem:[#allocation2 + $0x48] sm:$0xf] %vm2698, %v2591
      %2718 = vst.msk [vmem:[#allocation2 + $0x4c] sm:$0xf] %vm2698, %v2593
      %2719 = vst.msk [vmem:[#allocation2 + $0x50] sm:$0xf] %vm2698, %v2595
      %2720 = vst.msk [vmem:[#allocation2 + $0x54] sm:$0xf] %vm2698, %v2597
      %2721 = vst.msk [vmem:[#allocation2 + $0x58] sm:$0xf] %vm2698, %v2599
      %2722 = vst.msk [vmem:[#allocation2 + $0x5c] sm:$0xf] %vm2698, %v2601
      %2723 = vst.msk [vmem:[#allocation2 + $0x60] sm:$0xf] %vm2698, %v2603
      %2724 = vst.msk [vmem:[#allocation2 + $0x64] sm:$0xf] %vm2698, %v2605
      %2725 = vst.msk [vmem:[#allocation2 + $0x68] sm:$0xf] %vm2698, %v2607
      %2726 = vst.msk [vmem:[#allocation2 + $0x6c] sm:$0xf] %vm2698, %v2609
      %2727 = vst.msk [vmem:[#allocation2 + $0x70] sm:$0xf] %vm2698, %v2611
      %2728 = vst.msk [vmem:[#allocation2 + $0x74] sm:$0xf] %vm2698, %v2613
      %2729 = vst.msk [vmem:[#allocation2 + $0x78] sm:$0xf] %vm2698, %v2615
      %2730 = vst.msk [vmem:[#allocation2 + $0x7c] sm:$0xf] %vm2698, %v2617
      %2731 = vst.msk [vmem:[#allocation2 + $0x80] sm:$0xf] %vm2698, %v2619
      %2732 = vst.msk [vmem:[#allocation2 + $0x84] sm:$0xf] %vm2698, %v2621
      %2733 = vst.msk [vmem:[#allocation2 + $0x88] sm:$0xf] %vm2698, %v2623
      %2734 = vst.msk [vmem:[#allocation2 + $0x8c] sm:$0xf] %vm2698, %v2625
      %2735 = vst.msk [vmem:[#allocation2 + $0x90] sm:$0xf] %vm2698, %v2627
      %2736 = vst.msk [vmem:[#allocation2 + $0x94] sm:$0xf] %vm2698, %v2629
      %2737 = vst.msk [vmem:[#allocation2 + $0x98] sm:$0xf] %vm2698, %v2631
      %2738 = vst.msk [vmem:[#allocation2 + $0x9c] sm:$0xf] %vm2698, %v2633
      %2739 = vst.msk [vmem:[#allocation2 + $0xa0] sm:$0xf] %vm2698, %v2635
      %2740 = vst.msk [vmem:[#allocation2 + $0xa4] sm:$0xf] %vm2698, %v2637
      %2741 = vst.msk [vmem:[#allocation2 + $0xa8] sm:$0xf] %vm2698, %v2639
      %2742 = vst.msk [vmem:[#allocation2 + $0xac] sm:$0xf] %vm2698, %v2641
      %2743 = vst.msk [vmem:[#allocation2 + $0xb0] sm:$0xf] %vm2698, %v2643
      %2744 = vst.msk [vmem:[#allocation2 + $0xb4] sm:$0xf] %vm2698, %v2645
      %2745 = vst.msk [vmem:[#allocation2 + $0xb8] sm:$0xf] %vm2698, %v2647
      %2746 = vst.msk [vmem:[#allocation2 + $0xbc] sm:$0xf] %vm2698, %v2649
      %v2747 = vld [vmem:[#allocation2] sm:$0xf]
      %v2748 = vld [vmem:[#allocation2 + $0x4] sm:$0xf]
      %v2749 = vld [vmem:[#allocation2 + $0x8] sm:$0xf]
      %v2750 = vld [vmem:[#allocation2 + $0xc] sm:$0xf]
      %v2751 = vld [vmem:[#allocation2 + $0x10] sm:$0xf]
      %v2752 = vld [vmem:[#allocation2 + $0x14] sm:$0xf]
      %v2753 = vld [vmem:[#allocation2 + $0x18] sm:$0xf]
      %v2754 = vld [vmem:[#allocation2 + $0x1c] sm:$0xf]
      %v2755 = vld [vmem:[#allocation2 + $0x20] sm:$0xf]
      %v2756 = vld [vmem:[#allocation2 + $0x24] sm:$0xf]
      %v2757 = vld [vmem:[#allocation2 + $0x28] sm:$0xf]
      %v2758 = vld [vmem:[#allocation2 + $0x2c] sm:$0xf]
      %v2759 = vld [vmem:[#allocation2 + $0x30] sm:$0xf]
      %v2760 = vld [vmem:[#allocation2 + $0x34] sm:$0xf]
      %v2761 = vld [vmem:[#allocation2 + $0x38] sm:$0xf]
      %v2762 = vld [vmem:[#allocation2 + $0x3c] sm:$0xf]
      %v2763 = vld [vmem:[#allocation2 + $0x40] sm:$0xf]
      %v2764 = vld [vmem:[#allocation2 + $0x44] sm:$0xf]
      %v2765 = vld [vmem:[#allocation2 + $0x48] sm:$0xf]
      %v2766 = vld [vmem:[#allocation2 + $0x4c] sm:$0xf]
      %v2767 = vld [vmem:[#allocation2 + $0x50] sm:$0xf]
      %v2768 = vld [vmem:[#allocation2 + $0x54] sm:$0xf]
      %v2769 = vld [vmem:[#allocation2 + $0x58] sm:$0xf]
      %v2770 = vld [vmem:[#allocation2 + $0x5c] sm:$0xf]
      %v2771 = vld [vmem:[#allocation2 + $0x60] sm:$0xf]
      %v2772 = vld [vmem:[#allocation2 + $0x64] sm:$0xf]
      %v2773 = vld [vmem:[#allocation2 + $0x68] sm:$0xf]
      %v2774 = vld [vmem:[#allocation2 + $0x6c] sm:$0xf]
      %v2775 = vld [vmem:[#allocation2 + $0x70] sm:$0xf]
      %v2776 = vld [vmem:[#allocation2 + $0x74] sm:$0xf]
      %v2777 = vld [vmem:[#allocation2 + $0x78] sm:$0xf]
      %v2778 = vld [vmem:[#allocation2 + $0x7c] sm:$0xf]
      %v2779 = vld [vmem:[#allocation2 + $0x80] sm:$0xf]
      %v2780 = vld [vmem:[#allocation2 + $0x84] sm:$0xf]
      %v2781 = vld [vmem:[#allocation2 + $0x88] sm:$0xf]
      %v2782 = vld [vmem:[#allocation2 + $0x8c] sm:$0xf]
      %v2783 = vld [vmem:[#allocation2 + $0x90] sm:$0xf]
      %v2784 = vld [vmem:[#allocation2 + $0x94] sm:$0xf]
      %v2785 = vld [vmem:[#allocation2 + $0x98] sm:$0xf]
      %v2786 = vld [vmem:[#allocation2 + $0x9c] sm:$0xf]
      %v2787 = vld [vmem:[#allocation2 + $0xa0] sm:$0xf]
      %v2788 = vld [vmem:[#allocation2 + $0xa4] sm:$0xf]
      %v2789 = vld [vmem:[#allocation2 + $0xa8] sm:$0xf]
      %v2790 = vld [vmem:[#allocation2 + $0xac] sm:$0xf]
      %v2791 = vld [vmem:[#allocation2 + $0xb0] sm:$0xf]
      %v2792 = vld [vmem:[#allocation2 + $0xb4] sm:$0xf]
      %v2793 = vld [vmem:[#allocation2 + $0xb8] sm:$0xf]
      %v2794 = vld [vmem:[#allocation2 + $0xbc] sm:$0xf]
      %v2795 = vld [vmem:[%s1] sm:$0xf]
      %v2796 = vld [vmem:[%s1 + $0x4] sm:$0xf]
      %v2797 = vld [vmem:[%s1 + $0x8] sm:$0xf]
      %v2798 = vld [vmem:[%s1 + $0xc] sm:$0xf]
      %v2799 = vld [vmem:[%s1 + $0x10] sm:$0x3]
      %v2800 = vld [vmem:[%s2] sm:$0x1]
      %v2802 = vlaneseq
      %v2803 = vshrl.u32 %v2802, 7
      %v2804 = vsub.s32 0, %v2803
      %v2805 = vrot.slane %v2800, %v2804
      %v2855 = vunpack.c.l.b16 %v2747
      %v2856 = vunpack.c.l.b16 %v2748
      %v2857 = vunpack.c.l.b16 %v2749
      %v2858 = vunpack.c.l.b16 %v2750
      %v2859 = vunpack.c.l.b16 %v2751
      %v2860 = vunpack.c.l.b16 %v2752
      %v2861 = vunpack.c.l.b16 %v2753
      %v2862 = vunpack.c.l.b16 %v2754
      %v2863 = vunpack.c.l.b16 %v2755
      %v2864 = vunpack.c.l.b16 %v2756
      %v2865 = vunpack.c.l.b16 %v2757
      %v2866 = vunpack.c.l.b16 %v2758
      %v2867 = vunpack.c.l.b16 %v2759
      %v2868 = vunpack.c.l.b16 %v2760
      %v2869 = vunpack.c.l.b16 %v2761
      %v2870 = vunpack.c.l.b16 %v2762
      %v2871 = vunpack.c.l.b16 %v2763
      %v2872 = vunpack.c.l.b16 %v2764
      %v2873 = vunpack.c.l.b16 %v2765
      %v2874 = vunpack.c.l.b16 %v2766
      %v2875 = vunpack.c.l.b16 %v2767
      %v2876 = vunpack.c.l.b16 %v2768
      %v2877 = vunpack.c.l.b16 %v2769
      %v2878 = vunpack.c.l.b16 %v2770
      %v2879 = vunpack.c.l.b16 %v2771
      %v2880 = vunpack.c.l.b16 %v2772
      %v2881 = vunpack.c.l.b16 %v2773
      %v2882 = vunpack.c.l.b16 %v2774
      %v2883 = vunpack.c.l.b16 %v2775
      %v2884 = vunpack.c.l.b16 %v2776
      %v2885 = vunpack.c.l.b16 %v2777
      %v2886 = vunpack.c.l.b16 %v2778
      %v2887 = vunpack.c.l.b16 %v2779
      %v2888 = vunpack.c.l.b16 %v2780
      %v2889 = vunpack.c.l.b16 %v2781
      %v2890 = vunpack.c.l.b16 %v2782
      %v2891 = vunpack.c.l.b16 %v2783
      %v2892 = vunpack.c.l.b16 %v2784
      %v2893 = vunpack.c.l.b16 %v2785
      %v2894 = vunpack.c.l.b16 %v2786
      %v2895 = vunpack.c.l.b16 %v2787
      %v2896 = vunpack.c.l.b16 %v2788
      %v2897 = vunpack.c.l.b16 %v2789
      %v2898 = vunpack.c.l.b16 %v2790
      %v2899 = vunpack.c.l.b16 %v2791
      %v2900 = vunpack.c.l.b16 %v2792
      %v2901 = vunpack.c.l.b16 %v2793
      %v2902 = vunpack.c.l.b16 %v2794
      %v2903 = vpack.c.b16 %v2856, %v2855
      %v2904 = vpack.c.b16 %v2858, %v2857
      %v2905 = vpack.c.b16 %v2860, %v2859
      %v2906 = vpack.c.b16 %v2862, %v2861
      %v2907 = vpack.c.b16 %v2864, %v2863
      %v2908 = vpack.c.b16 %v2866, %v2865
      %v2909 = vpack.c.b16 %v2868, %v2867
      %v2910 = vpack.c.b16 %v2870, %v2869
      %v2911 = vpack.c.b16 %v2872, %v2871
      %v2912 = vpack.c.b16 %v2874, %v2873
      %v2913 = vpack.c.b16 %v2876, %v2875
      %v2914 = vpack.c.b16 %v2878, %v2877
      %v2915 = vpack.c.b16 %v2880, %v2879
      %v2916 = vpack.c.b16 %v2882, %v2881
      %v2917 = vpack.c.b16 %v2884, %v2883
      %v2918 = vpack.c.b16 %v2886, %v2885
      %v2919 = vpack.c.b16 %v2888, %v2887
      %v2920 = vpack.c.b16 %v2890, %v2889
      %v2921 = vpack.c.b16 %v2892, %v2891
      %v2922 = vpack.c.b16 %v2894, %v2893
      %v2923 = vpack.c.b16 %v2896, %v2895
      %v2924 = vpack.c.b16 %v2898, %v2897
      %v2925 = vpack.c.b16 %v2900, %v2899
      %v2926 = vpack.c.b16 %v2902, %v2901
      %v2932 = vunpack.c.l.b16 %v2795
      %v2933 = vunpack.c.l.b16 %v2796
      %v2934 = vunpack.c.l.b16 %v2797
      %v2935 = vunpack.c.l.b16 %v2798
      %v2936 = vunpack.c.l.b16 %v2799
      %v2937 = vpack.c.b16 %v2933, %v2932
      %v2938 = vpack.c.b16 %v2935, %v2934
      %v2939 = vpack.c.b16 %v2936, %v2936
      %vm2942 = vcmask 293888
      %v2944 = vsel %vm2942, %v2903, 0
      %v2947 = vsel %vm2942, %v2904, 0
      %v2950 = vsel %vm2942, %v2905, 0
      %v2953 = vsel %vm2942, %v2906, 0
      %v2956 = vsel %vm2942, %v2907, 0
      %v2959 = vsel %vm2942, %v2908, 0
      %v2962 = vsel %vm2942, %v2909, 0
      %v2965 = vsel %vm2942, %v2910, 0
      %v2968 = vsel %vm2942, %v2911, 0
      %v2971 = vsel %vm2942, %v2912, 0
      %v2974 = vsel %vm2942, %v2913, 0
      %v2977 = vsel %vm2942, %v2914, 0
      %v2980 = vsel %vm2942, %v2915, 0
      %v2983 = vsel %vm2942, %v2916, 0
      %v2986 = vsel %vm2942, %v2917, 0
      %v2989 = vsel %vm2942, %v2918, 0
      %v2992 = vsel %vm2942, %v2919, 0
      %v2995 = vsel %vm2942, %v2920, 0
      %v2998 = vsel %vm2942, %v2921, 0
      %v3001 = vsel %vm2942, %v2922, 0
      %v3004 = vsel %vm2942, %v2923, 0
      %v3007 = vsel %vm2942, %v2924, 0
      %v3010 = vsel %vm2942, %v2925, 0
      %v3013 = vsel %vm2942, %v2926, 0
      %vm3015 = vcmask 1041408
      %v3017 = vsel %vm3015, %v2939, 0
      %3019 = vmatprep.subr.bf16.mxu0 0
      %3020 = vmatpush1.bf16.msra.mxu0 0
      %3021 = vmatprep.subr.bf16.mxu0 0
      %3022 = vmatpush1.bf16.msra.mxu0 0
      %3023 = vmatprep.subr.bf16.mxu0 0
      %3024 = vmatpush1.bf16.msra.mxu0 0
      %3025 = vmatprep.subr.bf16.mxu0 0
      %3026 = vmatpush1.bf16.msra.mxu0 0
      %3027 = vmatprep.subr.bf16.mxu0 0
      %3028 = vmatpush1.bf16.msra.mxu0 0
      %3029 = vmatprep.subr.bf16.mxu0 0
      %3030 = vmatpush1.bf16.msra.mxu0 %v3017
      %3031 = vmatprep.subr.bf16.mxu0 0
      %3032 = vmatpush1.bf16.msra.mxu0 %v2938
      %3033 = vmatprep.subr.bf16.mxu0 0
      %3034 = vmatpush1.bf16.msra.mxu0 %v2937
      %3035 = vmatprep.subr.bf16.mxu0 0
      %3036 = vmatpush2.bf16.msra.mxu0 0
      %3037 = vmatprep.subr.bf16.mxu0 0
      %3038 = vmatpush2.bf16.msra.mxu0 0
      %3039 = vmatprep.subr.bf16.mxu0 0
      %3040 = vmatpush2.bf16.msra.mxu0 0
      %3041 = vmatprep.subr.bf16.mxu0 0
      %3042 = vmatpush2.bf16.msra.mxu0 0
      %3043 = vmatprep.subr.bf16.mxu0 0
      %3044 = vmatpush2.bf16.msra.mxu0 0
      %3045 = vmatprep.subr.bf16.mxu0 0
      %3046 = vmatpush2.bf16.msra.mxu0 0
      %3047 = vmatprep.subr.bf16.mxu0 0
      %3048 = vmatpush2.bf16.msra.mxu0 0
      %3049 = vmatprep.subr.bf16.mxu0 0
      %3050 = vmatpush2.bf16.msra.mxu0 0
      %3051 = vmatprep.mubr.bf16.mxu0 0
      %3052 = vmatmul.mubr.bf16.gmra.mxu0 %v2944
      %v3053 = vpop.f32.mrf.mxu0
      %v3054 = vadd.f32 %v2805, %v3053
      %v3055 = vpop.f32.mrf.mxu0
      %v3056 = vpop.f32.mrf.mxu0
      %v3057 = vadd.f32 %v2805, %v3056
      %v3058 = vpop.f32.mrf.mxu0
      %3059 = vmatprep.mubr.bf16.mxu0 0
      %3060 = vmatmul.mubr.bf16.gmra.mxu0 %v2947
      %v3061 = vpop.f32.mrf.mxu0
      %v3062 = vadd.f32 %v2805, %v3061
      %v3063 = vpop.f32.mrf.mxu0
      %v3064 = vpop.f32.mrf.mxu0
      %v3065 = vadd.f32 %v2805, %v3064
      %v3066 = vpop.f32.mrf.mxu0
      %3067 = vmatprep.mubr.bf16.mxu0 0
      %3068 = vmatmul.mubr.bf16.gmra.mxu0 %v2950
      %v3069 = vpop.f32.mrf.mxu0
      %v3070 = vadd.f32 %v2805, %v3069
      %v3071 = vpop.f32.mrf.mxu0
      %v3072 = vpop.f32.mrf.mxu0
      %v3073 = vadd.f32 %v2805, %v3072
      %v3074 = vpop.f32.mrf.mxu0
      %3075 = vmatprep.mubr.bf16.mxu0 0
      %3076 = vmatmul.mubr.bf16.gmra.mxu0 %v2953
      %v3077 = vpop.f32.mrf.mxu0
      %v3078 = vadd.f32 %v2805, %v3077
      %v3079 = vpop.f32.mrf.mxu0
      %v3080 = vpop.f32.mrf.mxu0
      %v3081 = vadd.f32 %v2805, %v3080
      %v3082 = vpop.f32.mrf.mxu0
      %3083 = vmatprep.mubr.bf16.mxu0 0
      %3084 = vmatmul.mubr.bf16.gmra.mxu0 %v2956
      %v3085 = vpop.f32.mrf.mxu0
      %v3086 = vadd.f32 %v2805, %v3085
      %v3087 = vpop.f32.mrf.mxu0
      %v3088 = vpop.f32.mrf.mxu0
      %v3089 = vadd.f32 %v2805, %v3088
      %v3090 = vpop.f32.mrf.mxu0
      %3091 = vmatprep.mubr.bf16.mxu0 0
      %3092 = vmatmul.mubr.bf16.gmra.mxu0 %v2959
      %v3093 = vpop.f32.mrf.mxu0
      %v3094 = vadd.f32 %v2805, %v3093
      %v3095 = vpop.f32.mrf.mxu0
      %v3096 = vpop.f32.mrf.mxu0
      %v3097 = vadd.f32 %v2805, %v3096
      %v3098 = vpop.f32.mrf.mxu0
      %3099 = vmatprep.mubr.bf16.mxu0 0
      %3100 = vmatmul.mubr.bf16.gmra.mxu0 %v2962
      %v3101 = vpop.f32.mrf.mxu0
      %v3102 = vadd.f32 %v2805, %v3101
      %v3103 = vpop.f32.mrf.mxu0
      %v3104 = vpop.f32.mrf.mxu0
      %v3105 = vadd.f32 %v2805, %v3104
      %v3106 = vpop.f32.mrf.mxu0
      %3107 = vmatprep.mubr.bf16.mxu0 0
      %3108 = vmatmul.mubr.bf16.gmra.mxu0 %v2965
      %v3109 = vpop.f32.mrf.mxu0
      %v3110 = vadd.f32 %v2805, %v3109
      %v3111 = vpop.f32.mrf.mxu0
      %v3112 = vpop.f32.mrf.mxu0
      %v3113 = vadd.f32 %v2805, %v3112
      %v3114 = vpop.f32.mrf.mxu0
      %3115 = vmatprep.mubr.bf16.mxu0 0
      %3116 = vmatmul.mubr.bf16.gmra.mxu0 %v2968
      %v3117 = vpop.f32.mrf.mxu0
      %v3118 = vadd.f32 %v2805, %v3117
      %v3119 = vpop.f32.mrf.mxu0
      %v3120 = vpop.f32.mrf.mxu0
      %v3121 = vadd.f32 %v2805, %v3120
      %v3122 = vpop.f32.mrf.mxu0
      %3123 = vmatprep.mubr.bf16.mxu0 0
      %3124 = vmatmul.mubr.bf16.gmra.mxu0 %v2971
      %v3125 = vpop.f32.mrf.mxu0
      %v3126 = vadd.f32 %v2805, %v3125
      %v3127 = vpop.f32.mrf.mxu0
      %v3128 = vpop.f32.mrf.mxu0
      %v3129 = vadd.f32 %v2805, %v3128
      %v3130 = vpop.f32.mrf.mxu0
      %3131 = vmatprep.mubr.bf16.mxu0 0
      %3132 = vmatmul.mubr.bf16.gmra.mxu0 %v2974
      %v3133 = vpop.f32.mrf.mxu0
      %v3134 = vadd.f32 %v2805, %v3133
      %v3135 = vpop.f32.mrf.mxu0
      %v3136 = vpop.f32.mrf.mxu0
      %v3137 = vadd.f32 %v2805, %v3136
      %v3138 = vpop.f32.mrf.mxu0
      %3139 = vmatprep.mubr.bf16.mxu0 0
      %3140 = vmatmul.mubr.bf16.gmra.mxu0 %v2977
      %v3141 = vpop.f32.mrf.mxu0
      %v3142 = vadd.f32 %v2805, %v3141
      %v3143 = vpop.f32.mrf.mxu0
      %v3144 = vpop.f32.mrf.mxu0
      %v3145 = vadd.f32 %v2805, %v3144
      %v3146 = vpop.f32.mrf.mxu0
      %3147 = vmatprep.mubr.bf16.mxu0 0
      %3148 = vmatmul.mubr.bf16.gmra.mxu0 %v2980
      %v3149 = vpop.f32.mrf.mxu0
      %v3150 = vadd.f32 %v2805, %v3149
      %v3151 = vpop.f32.mrf.mxu0
      %v3152 = vpop.f32.mrf.mxu0
      %v3153 = vadd.f32 %v2805, %v3152
      %v3154 = vpop.f32.mrf.mxu0
      %3155 = vmatprep.mubr.bf16.mxu0 0
      %3156 = vmatmul.mubr.bf16.gmra.mxu0 %v2983
      %v3157 = vpop.f32.mrf.mxu0
      %v3158 = vadd.f32 %v2805, %v3157
      %v3159 = vpop.f32.mrf.mxu0
      %v3160 = vpop.f32.mrf.mxu0
      %v3161 = vadd.f32 %v2805, %v3160
      %v3162 = vpop.f32.mrf.mxu0
      %3163 = vmatprep.mubr.bf16.mxu0 0
      %3164 = vmatmul.mubr.bf16.gmra.mxu0 %v2986
      %v3165 = vpop.f32.mrf.mxu0
      %v3166 = vadd.f32 %v2805, %v3165
      %v3167 = vpop.f32.mrf.mxu0
      %v3168 = vpop.f32.mrf.mxu0
      %v3169 = vadd.f32 %v2805, %v3168
      %v3170 = vpop.f32.mrf.mxu0
      %3171 = vmatprep.mubr.bf16.mxu0 0
      %3172 = vmatmul.mubr.bf16.gmra.mxu0 %v2989
      %v3173 = vpop.f32.mrf.mxu0
      %v3174 = vadd.f32 %v2805, %v3173
      %v3175 = vpop.f32.mrf.mxu0
      %v3176 = vpop.f32.mrf.mxu0
      %v3177 = vadd.f32 %v2805, %v3176
      %v3178 = vpop.f32.mrf.mxu0
      %3179 = vmatprep.mubr.bf16.mxu0 0
      %3180 = vmatmul.mubr.bf16.gmra.mxu0 %v2992
      %v3181 = vpop.f32.mrf.mxu0
      %v3182 = vadd.f32 %v2805, %v3181
      %v3183 = vpop.f32.mrf.mxu0
      %v3184 = vpop.f32.mrf.mxu0
      %v3185 = vadd.f32 %v2805, %v3184
      %v3186 = vpop.f32.mrf.mxu0
      %3187 = vmatprep.mubr.bf16.mxu0 0
      %3188 = vmatmul.mubr.bf16.gmra.mxu0 %v2995
      %v3189 = vpop.f32.mrf.mxu0
      %v3190 = vadd.f32 %v2805, %v3189
      %v3191 = vpop.f32.mrf.mxu0
      %v3192 = vpop.f32.mrf.mxu0
      %v3193 = vadd.f32 %v2805, %v3192
      %v3194 = vpop.f32.mrf.mxu0
      %3195 = vmatprep.mubr.bf16.mxu0 0
      %3196 = vmatmul.mubr.bf16.gmra.mxu0 %v2998
      %v3197 = vpop.f32.mrf.mxu0
      %v3198 = vadd.f32 %v2805, %v3197
      %v3199 = vpop.f32.mrf.mxu0
      %v3200 = vpop.f32.mrf.mxu0
      %v3201 = vadd.f32 %v2805, %v3200
      %v3202 = vpop.f32.mrf.mxu0
      %3203 = vmatprep.mubr.bf16.mxu0 0
      %3204 = vmatmul.mubr.bf16.gmra.mxu0 %v3001
      %v3205 = vpop.f32.mrf.mxu0
      %v3206 = vadd.f32 %v2805, %v3205
      %v3207 = vpop.f32.mrf.mxu0
      %v3208 = vpop.f32.mrf.mxu0
      %v3209 = vadd.f32 %v2805, %v3208
      %v3210 = vpop.f32.mrf.mxu0
      %3211 = vmatprep.mubr.bf16.mxu0 0
      %3212 = vmatmul.mubr.bf16.gmra.mxu0 %v3004
      %v3213 = vpop.f32.mrf.mxu0
      %v3214 = vadd.f32 %v2805, %v3213
      %v3215 = vpop.f32.mrf.mxu0
      %v3216 = vpop.f32.mrf.mxu0
      %v3217 = vadd.f32 %v2805, %v3216
      %v3218 = vpop.f32.mrf.mxu0
      %3219 = vmatprep.mubr.bf16.mxu0 0
      %3220 = vmatmul.mubr.bf16.gmra.mxu0 %v3007
      %v3221 = vpop.f32.mrf.mxu0
      %v3222 = vadd.f32 %v2805, %v3221
      %v3223 = vpop.f32.mrf.mxu0
      %v3224 = vpop.f32.mrf.mxu0
      %v3225 = vadd.f32 %v2805, %v3224
      %v3226 = vpop.f32.mrf.mxu0
      %3227 = vmatprep.mubr.bf16.mxu0 0
      %3228 = vmatmul.mubr.bf16.gmra.mxu0 %v3010
      %v3229 = vpop.f32.mrf.mxu0
      %v3230 = vadd.f32 %v2805, %v3229
      %v3231 = vpop.f32.mrf.mxu0
      %v3232 = vpop.f32.mrf.mxu0
      %v3233 = vadd.f32 %v2805, %v3232
      %v3234 = vpop.f32.mrf.mxu0
      %3235 = vmatprep.mubr.bf16.mxu0 0
      %3236 = vmatmul.mubr.bf16.gmra.mxu0 %v3013
      %v3237 = vpop.f32.mrf.mxu0
      %v3238 = vadd.f32 %v2805, %v3237
      %v3239 = vpop.f32.mrf.mxu0
      %v3240 = vpop.f32.mrf.mxu0
      %v3241 = vadd.f32 %v2805, %v3240
      %v3242 = vpop.f32.mrf.mxu0
      %3243 = vdwg.mxu0
      %v3244 = vmax.f32 %v3054, 0.0
      %v3245 = vmax.f32 %v3057, 0.0
      %v3246 = vmax.f32 %v3062, 0.0
      %v3247 = vmax.f32 %v3065, 0.0
      %v3248 = vmax.f32 %v3070, 0.0
      %v3249 = vmax.f32 %v3073, 0.0
      %v3250 = vmax.f32 %v3078, 0.0
      %v3251 = vmax.f32 %v3081, 0.0
      %v3252 = vmax.f32 %v3086, 0.0
      %v3253 = vmax.f32 %v3089, 0.0
      %v3254 = vmax.f32 %v3094, 0.0
      %v3255 = vmax.f32 %v3097, 0.0
      %v3256 = vmax.f32 %v3102, 0.0
      %v3257 = vmax.f32 %v3105, 0.0
      %v3258 = vmax.f32 %v3110, 0.0
      %v3259 = vmax.f32 %v3113, 0.0
      %v3260 = vmax.f32 %v3118, 0.0
      %v3261 = vmax.f32 %v3121, 0.0
      %v3262 = vmax.f32 %v3126, 0.0
      %v3263 = vmax.f32 %v3129, 0.0
      %v3264 = vmax.f32 %v3134, 0.0
      %v3265 = vmax.f32 %v3137, 0.0
      %v3266 = vmax.f32 %v3142, 0.0
      %v3267 = vmax.f32 %v3145, 0.0
      %v3268 = vmax.f32 %v3150, 0.0
      %v3269 = vmax.f32 %v3153, 0.0
      %v3270 = vmax.f32 %v3158, 0.0
      %v3271 = vmax.f32 %v3161, 0.0
      %v3272 = vmax.f32 %v3166, 0.0
      %v3273 = vmax.f32 %v3169, 0.0
      %v3274 = vmax.f32 %v3174, 0.0
      %v3275 = vmax.f32 %v3177, 0.0
      %v3276 = vmax.f32 %v3182, 0.0
      %v3277 = vmax.f32 %v3185, 0.0
      %v3278 = vmax.f32 %v3190, 0.0
      %v3279 = vmax.f32 %v3193, 0.0
      %v3280 = vmax.f32 %v3198, 0.0
      %v3281 = vmax.f32 %v3201, 0.0
      %v3282 = vmax.f32 %v3206, 0.0
      %v3283 = vmax.f32 %v3209, 0.0
      %v3284 = vmax.f32 %v3214, 0.0
      %v3285 = vmax.f32 %v3217, 0.0
      %v3286 = vmax.f32 %v3222, 0.0
      %v3287 = vmax.f32 %v3225, 0.0
      %v3288 = vmax.f32 %v3230, 0.0
      %v3289 = vmax.f32 %v3233, 0.0
      %v3290 = vmax.f32 %v3238, 0.0
      %v3291 = vmax.f32 %v3241, 0.0
      %v3292 = vpack.c.bf16 %v3245, %v3244
      %v3293 = vpack.c.bf16 %v3246, %v3246
      %v3294 = vpack.c.bf16 %v3248, %v3247
      %v3295 = vpack.c.bf16 %v3249, %v3249
      %v3296 = vpack.c.bf16 %v3251, %v3250
      %v3297 = vpack.c.bf16 %v3252, %v3252
      %v3298 = vpack.c.bf16 %v3254, %v3253
      %v3299 = vpack.c.bf16 %v3255, %v3255
      %v3300 = vpack.c.bf16 %v3257, %v3256
      %v3301 = vpack.c.bf16 %v3258, %v3258
      %v3302 = vpack.c.bf16 %v3260, %v3259
      %v3303 = vpack.c.bf16 %v3261, %v3261
      %v3304 = vpack.c.bf16 %v3263, %v3262
      %v3305 = vpack.c.bf16 %v3264, %v3264
      %v3306 = vpack.c.bf16 %v3266, %v3265
      %v3307 = vpack.c.bf16 %v3267, %v3267
      %v3308 = vpack.c.bf16 %v3269, %v3268
      %v3309 = vpack.c.bf16 %v3270, %v3270
      %v3310 = vpack.c.bf16 %v3272, %v3271
      %v3311 = vpack.c.bf16 %v3273, %v3273
      %v3312 = vpack.c.bf16 %v3275, %v3274
      %v3313 = vpack.c.bf16 %v3276, %v3276
      %v3314 = vpack.c.bf16 %v3278, %v3277
      %v3315 = vpack.c.bf16 %v3279, %v3279
      %v3316 = vpack.c.bf16 %v3281, %v3280
      %v3317 = vpack.c.bf16 %v3282, %v3282
      %v3318 = vpack.c.bf16 %v3284, %v3283
      %v3319 = vpack.c.bf16 %v3285, %v3285
      %v3320 = vpack.c.bf16 %v3287, %v3286
      %v3321 = vpack.c.bf16 %v3288, %v3288
      %v3322 = vpack.c.bf16 %v3290, %v3289
      %v3323 = vpack.c.bf16 %v3291, %v3291
      %v3356 = vunpack.c.l.b16 %v3292
      %v3357 = vunpack.c.h.b16 %v3292
      %v3358 = vunpack.c.l.b16 %v3293
      %v3359 = vunpack.c.l.b16 %v3294
      %v3360 = vunpack.c.h.b16 %v3294
      %v3361 = vunpack.c.l.b16 %v3295
      %v3362 = vunpack.c.l.b16 %v3296
      %v3363 = vunpack.c.h.b16 %v3296
      %v3364 = vunpack.c.l.b16 %v3297
      %v3365 = vunpack.c.l.b16 %v3298
      %v3366 = vunpack.c.h.b16 %v3298
      %v3367 = vunpack.c.l.b16 %v3299
      %v3368 = vunpack.c.l.b16 %v3300
      %v3369 = vunpack.c.h.b16 %v3300
      %v3370 = vunpack.c.l.b16 %v3301
      %v3371 = vunpack.c.l.b16 %v3302
      %v3372 = vunpack.c.h.b16 %v3302
      %v3373 = vunpack.c.l.b16 %v3303
      %v3374 = vunpack.c.l.b16 %v3304
      %v3375 = vunpack.c.h.b16 %v3304
      %v3376 = vunpack.c.l.b16 %v3305
      %v3377 = vunpack.c.l.b16 %v3306
      %v3378 = vunpack.c.h.b16 %v3306
      %v3379 = vunpack.c.l.b16 %v3307
      %v3380 = vunpack.c.l.b16 %v3308
      %v3381 = vunpack.c.h.b16 %v3308
      %v3382 = vunpack.c.l.b16 %v3309
      %v3383 = vunpack.c.l.b16 %v3310
      %v3384 = vunpack.c.h.b16 %v3310
      %v3385 = vunpack.c.l.b16 %v3311
      %v3386 = vunpack.c.l.b16 %v3312
      %v3387 = vunpack.c.h.b16 %v3312
      %v3388 = vunpack.c.l.b16 %v3313
      %v3389 = vunpack.c.l.b16 %v3314
      %v3390 = vunpack.c.h.b16 %v3314
      %v3391 = vunpack.c.l.b16 %v3315
      %v3392 = vunpack.c.l.b16 %v3316
      %v3393 = vunpack.c.h.b16 %v3316
      %v3394 = vunpack.c.l.b16 %v3317
      %v3395 = vunpack.c.l.b16 %v3318
      %v3396 = vunpack.c.h.b16 %v3318
      %v3397 = vunpack.c.l.b16 %v3319
      %v3398 = vunpack.c.l.b16 %v3320
      %v3399 = vunpack.c.h.b16 %v3320
      %v3400 = vunpack.c.l.b16 %v3321
      %v3401 = vunpack.c.l.b16 %v3322
      %v3402 = vunpack.c.h.b16 %v3322
      %v3403 = vunpack.c.l.b16 %v3323
      %v3404 = vpack.c.b16 %v3356, %v3356
      %v3405 = vpack.c.b16 %v3357, %v3357
      %v3406 = vpack.c.b16 %v3358, %v3358
      %v3407 = vpack.c.b16 %v3359, %v3359
      %v3408 = vpack.c.b16 %v3360, %v3360
      %v3409 = vpack.c.b16 %v3361, %v3361
      %v3410 = vpack.c.b16 %v3362, %v3362
      %v3411 = vpack.c.b16 %v3363, %v3363
      %v3412 = vpack.c.b16 %v3364, %v3364
      %v3413 = vpack.c.b16 %v3365, %v3365
      %v3414 = vpack.c.b16 %v3366, %v3366
      %v3415 = vpack.c.b16 %v3367, %v3367
      %v3416 = vpack.c.b16 %v3368, %v3368
      %v3417 = vpack.c.b16 %v3369, %v3369
      %v3418 = vpack.c.b16 %v3370, %v3370
      %v3419 = vpack.c.b16 %v3371, %v3371
      %v3420 = vpack.c.b16 %v3372, %v3372
      %v3421 = vpack.c.b16 %v3373, %v3373
      %v3422 = vpack.c.b16 %v3374, %v3374
      %v3423 = vpack.c.b16 %v3375, %v3375
      %v3424 = vpack.c.b16 %v3376, %v3376
      %v3425 = vpack.c.b16 %v3377, %v3377
      %v3426 = vpack.c.b16 %v3378, %v3378
      %v3427 = vpack.c.b16 %v3379, %v3379
      %v3428 = vpack.c.b16 %v3380, %v3380
      %v3429 = vpack.c.b16 %v3381, %v3381
      %v3430 = vpack.c.b16 %v3382, %v3382
      %v3431 = vpack.c.b16 %v3383, %v3383
      %v3432 = vpack.c.b16 %v3384, %v3384
      %v3433 = vpack.c.b16 %v3385, %v3385
      %v3434 = vpack.c.b16 %v3386, %v3386
      %v3435 = vpack.c.b16 %v3387, %v3387
      %v3436 = vpack.c.b16 %v3388, %v3388
      %v3437 = vpack.c.b16 %v3389, %v3389
      %v3438 = vpack.c.b16 %v3390, %v3390
      %v3439 = vpack.c.b16 %v3391, %v3391
      %v3440 = vpack.c.b16 %v3392, %v3392
      %v3441 = vpack.c.b16 %v3393, %v3393
      %v3442 = vpack.c.b16 %v3394, %v3394
      %v3443 = vpack.c.b16 %v3395, %v3395
      %v3444 = vpack.c.b16 %v3396, %v3396
      %v3445 = vpack.c.b16 %v3397, %v3397
      %v3446 = vpack.c.b16 %v3398, %v3398
      %v3447 = vpack.c.b16 %v3399, %v3399
      %v3448 = vpack.c.b16 %v3400, %v3400
      %v3449 = vpack.c.b16 %v3401, %v3401
      %v3450 = vpack.c.b16 %v3402, %v3402
      %v3451 = vpack.c.b16 %v3403, %v3403
      %s3500 = scalar_lea.vmem [#allocation3], 24
      %vm3501 = vcmask 60416
      %3502 = vst.msk [vmem:[%s3500] sm:$0xf] %vm3501, %v3404
      %3503 = vst.msk [vmem:[%s3500 + $0x4] sm:$0xf] %vm3501, %v3405
      %3504 = vst.msk [vmem:[%s3500 + $0x8] sm:$0xf] %vm3501, %v3406
      %3505 = vst.msk [vmem:[%s3500 + $0xc] sm:$0xf] %vm3501, %v3407
      %3506 = vst.msk [vmem:[%s3500 + $0x10] sm:$0xf] %vm3501, %v3408
      %3507 = vst.msk [vmem:[%s3500 + $0x14] sm:$0xf] %vm3501, %v3409
      %3508 = vst.msk [vmem:[%s3500 + $0x18] sm:$0xf] %vm3501, %v3410
      %3509 = vst.msk [vmem:[%s3500 + $0x1c] sm:$0xf] %vm3501, %v3411
      %3510 = vst.msk [vmem:[%s3500 + $0x20] sm:$0xf] %vm3501, %v3412
      %3511 = vst.msk [vmem:[%s3500 + $0x24] sm:$0xf] %vm3501, %v3413
      %3512 = vst.msk [vmem:[%s3500 + $0x28] sm:$0xf] %vm3501, %v3414
      %3513 = vst.msk [vmem:[%s3500 + $0x2c] sm:$0xf] %vm3501, %v3415
      %3514 = vst.msk [vmem:[%s3500 + $0x30] sm:$0xf] %vm3501, %v3416
      %3515 = vst.msk [vmem:[%s3500 + $0x34] sm:$0xf] %vm3501, %v3417
      %3516 = vst.msk [vmem:[%s3500 + $0x38] sm:$0xf] %vm3501, %v3418
      %3517 = vst.msk [vmem:[%s3500 + $0x3c] sm:$0xf] %vm3501, %v3419
      %3518 = vst.msk [vmem:[%s3500 + $0x40] sm:$0xf] %vm3501, %v3420
      %3519 = vst.msk [vmem:[%s3500 + $0x44] sm:$0xf] %vm3501, %v3421
      %3520 = vst.msk [vmem:[%s3500 + $0x48] sm:$0xf] %vm3501, %v3422
      %3521 = vst.msk [vmem:[%s3500 + $0x4c] sm:$0xf] %vm3501, %v3423
      %3522 = vst.msk [vmem:[%s3500 + $0x50] sm:$0xf] %vm3501, %v3424
      %3523 = vst.msk [vmem:[%s3500 + $0x54] sm:$0xf] %vm3501, %v3425
      %3524 = vst.msk [vmem:[%s3500 + $0x58] sm:$0xf] %vm3501, %v3426
      %3525 = vst.msk [vmem:[%s3500 + $0x5c] sm:$0xf] %vm3501, %v3427
      %3526 = vst.msk [vmem:[%s3500 + $0x60] sm:$0xf] %vm3501, %v3428
      %3527 = vst.msk [vmem:[%s3500 + $0x64] sm:$0xf] %vm3501, %v3429
      %3528 = vst.msk [vmem:[%s3500 + $0x68] sm:$0xf] %vm3501, %v3430
      %3529 = vst.msk [vmem:[%s3500 + $0x6c] sm:$0xf] %vm3501, %v3431
      %3530 = vst.msk [vmem:[%s3500 + $0x70] sm:$0xf] %vm3501, %v3432
      %3531 = vst.msk [vmem:[%s3500 + $0x74] sm:$0xf] %vm3501, %v3433
      %3532 = vst.msk [vmem:[%s3500 + $0x78] sm:$0xf] %vm3501, %v3434
      %3533 = vst.msk [vmem:[%s3500 + $0x7c] sm:$0xf] %vm3501, %v3435
      %3534 = vst.msk [vmem:[%s3500 + $0x80] sm:$0xf] %vm3501, %v3436
      %3535 = vst.msk [vmem:[%s3500 + $0x84] sm:$0xf] %vm3501, %v3437
      %3536 = vst.msk [vmem:[%s3500 + $0x88] sm:$0xf] %vm3501, %v3438
      %3537 = vst.msk [vmem:[%s3500 + $0x8c] sm:$0xf] %vm3501, %v3439
      %3538 = vst.msk [vmem:[%s3500 + $0x90] sm:$0xf] %vm3501, %v3440
      %3539 = vst.msk [vmem:[%s3500 + $0x94] sm:$0xf] %vm3501, %v3441
      %3540 = vst.msk [vmem:[%s3500 + $0x98] sm:$0xf] %vm3501, %v3442
      %3541 = vst.msk [vmem:[%s3500 + $0x9c] sm:$0xf] %vm3501, %v3443
      %3542 = vst.msk [vmem:[%s3500 + $0xa0] sm:$0xf] %vm3501, %v3444
      %3543 = vst.msk [vmem:[%s3500 + $0xa4] sm:$0xf] %vm3501, %v3445
      %3544 = vst.msk [vmem:[%s3500 + $0xa8] sm:$0xf] %vm3501, %v3446
      %3545 = vst.msk [vmem:[%s3500 + $0xac] sm:$0xf] %vm3501, %v3447
      %3546 = vst.msk [vmem:[%s3500 + $0xb0] sm:$0xf] %vm3501, %v3448
      %3547 = vst.msk [vmem:[%s3500 + $0xb4] sm:$0xf] %vm3501, %v3449
      %3548 = vst.msk [vmem:[%s3500 + $0xb8] sm:$0xf] %vm3501, %v3450
      %3549 = vst.msk [vmem:[%s3500 + $0xbc] sm:$0xf] %vm3501, %v3451
      %s3550 = scalar_lea.vmem [#allocation3], 12
      %3551 = vst.msk [vmem:[%s3550] sm:$0xf] %vm3501, 0
      %3552 = vst.msk [vmem:[%s3550 + $0x4] sm:$0xf] %vm3501, 0
      %3553 = vst.msk [vmem:[%s3550 + $0x8] sm:$0xf] %vm3501, 0
      %s3554 = scalar_lea.vmem [#allocation3], 216
      %3555 = vst.msk [vmem:[%s3554] sm:$0xf] %vm3501, 0
      %3556 = vst.msk [vmem:[%s3554 + $0x4] sm:$0xf] %vm3501, 0
      %3557 = vst.msk [vmem:[%s3554 + $0x8] sm:$0xf] %vm3501, 0
      %vm3558 = vcmask 57344
      %vm3559 = vsmask.f32 7938
      %vm3560 = vmand %vm3558, %vm3559
      %v3561 = vld [vmem:[#allocation3] sm:$0x1]
      %v3562 = vsel %vm3560, 0, %v3561
      %3563 = vst [vmem:[#allocation3] sm:$0x1] %v3562
      %v3564 = vld [vmem:[#allocation3 + $0xc] sm:$0x1]
      %v3565 = vsel %vm3560, 0, %v3564
      %3566 = vst [vmem:[#allocation3 + $0xc] sm:$0x1] %v3565
      %v3567 = vld [vmem:[#allocation3 + $0x18] sm:$0x1]
      %v3568 = vsel %vm3560, 0, %v3567
      %3569 = vst [vmem:[#allocation3 + $0x18] sm:$0x1] %v3568
      %v3570 = vld [vmem:[#allocation3 + $0x24] sm:$0x1]
      %v3571 = vsel %vm3560, 0, %v3570
      %3572 = vst [vmem:[#allocation3 + $0x24] sm:$0x1] %v3571
      %v3573 = vld [vmem:[#allocation3 + $0x30] sm:$0x1]
      %v3574 = vsel %vm3560, 0, %v3573
      %3575 = vst [vmem:[#allocation3 + $0x30] sm:$0x1] %v3574
      %v3576 = vld [vmem:[#allocation3 + $0x3c] sm:$0x1]
      %v3577 = vsel %vm3560, 0, %v3576
      %3578 = vst [vmem:[#allocation3 + $0x3c] sm:$0x1] %v3577
      %v3579 = vld [vmem:[#allocation3 + $0x48] sm:$0x1]
      %v3580 = vsel %vm3560, 0, %v3579
      %3581 = vst [vmem:[#allocation3 + $0x48] sm:$0x1] %v3580
      %v3582 = vld [vmem:[#allocation3 + $0x54] sm:$0x1]
      %v3583 = vsel %vm3560, 0, %v3582
      %3584 = vst [vmem:[#allocation3 + $0x54] sm:$0x1] %v3583
      %v3585 = vld [vmem:[#allocation3 + $0x60] sm:$0x1]
      %v3586 = vsel %vm3560, 0, %v3585
      %3587 = vst [vmem:[#allocation3 + $0x60] sm:$0x1] %v3586
      %v3588 = vld [vmem:[#allocation3 + $0x6c] sm:$0x1]
      %v3589 = vsel %vm3560, 0, %v3588
      %3590 = vst [vmem:[#allocation3 + $0x6c] sm:$0x1] %v3589
      %v3591 = vld [vmem:[#allocation3 + $0x78] sm:$0x1]
      %v3592 = vsel %vm3560, 0, %v3591
      %3593 = vst [vmem:[#allocation3 + $0x78] sm:$0x1] %v3592
      %v3594 = vld [vmem:[#allocation3 + $0x84] sm:$0x1]
      %v3595 = vsel %vm3560, 0, %v3594
      %3596 = vst [vmem:[#allocation3 + $0x84] sm:$0x1] %v3595
      %v3597 = vld [vmem:[#allocation3 + $0x90] sm:$0x1]
      %v3598 = vsel %vm3560, 0, %v3597
      %3599 = vst [vmem:[#allocation3 + $0x90] sm:$0x1] %v3598
      %v3600 = vld [vmem:[#allocation3 + $0x9c] sm:$0x1]
      %v3601 = vsel %vm3560, 0, %v3600
      %3602 = vst [vmem:[#allocation3 + $0x9c] sm:$0x1] %v3601
      %v3603 = vld [vmem:[#allocation3 + $0xa8] sm:$0x1]
      %v3604 = vsel %vm3560, 0, %v3603
      %3605 = vst [vmem:[#allocation3 + $0xa8] sm:$0x1] %v3604
      %v3606 = vld [vmem:[#allocation3 + $0xb4] sm:$0x1]
      %v3607 = vsel %vm3560, 0, %v3606
      %3608 = vst [vmem:[#allocation3 + $0xb4] sm:$0x1] %v3607
      %v3609 = vld [vmem:[#allocation3 + $0xc0] sm:$0x1]
      %v3610 = vsel %vm3560, 0, %v3609
      %3611 = vst [vmem:[#allocation3 + $0xc0] sm:$0x1] %v3610
      %v3612 = vld [vmem:[#allocation3 + $0xcc] sm:$0x1]
      %v3613 = vsel %vm3560, 0, %v3612
      %3614 = vst [vmem:[#allocation3 + $0xcc] sm:$0x1] %v3613
      %v3615 = vld [vmem:[#allocation3 + $0xd8] sm:$0x1]
      %v3616 = vsel %vm3560, 0, %v3615
      %3617 = vst [vmem:[#allocation3 + $0xd8] sm:$0x1] %v3616
      %v3618 = vld [vmem:[#allocation3 + $0xe4] sm:$0x1]
      %v3619 = vsel %vm3560, 0, %v3618
      %3620 = vst [vmem:[#allocation3 + $0xe4] sm:$0x1] %v3619
      %vm3621 = vcmask 58369
      %vm3622 = vsmask.f32 1280
      %vm3623 = vmand %vm3621, %vm3622
      %v3624 = vld [vmem:[#allocation3 + $0x8] sm:$0x2]
      %v3625 = vsel %vm3623, 0, %v3624
      %3626 = vst [vmem:[#allocation3 + $0x8] sm:$0x2] %v3625
      %v3627 = vld [vmem:[#allocation3 + $0x14] sm:$0x2]
      %v3628 = vsel %vm3623, 0, %v3627
      %3629 = vst [vmem:[#allocation3 + $0x14] sm:$0x2] %v3628
      %v3630 = vld [vmem:[#allocation3 + $0x20] sm:$0x2]
      %v3631 = vsel %vm3623, 0, %v3630
      %3632 = vst [vmem:[#allocation3 + $0x20] sm:$0x2] %v3631
      %v3633 = vld [vmem:[#allocation3 + $0x2c] sm:$0x2]
      %v3634 = vsel %vm3623, 0, %v3633
      %3635 = vst [vmem:[#allocation3 + $0x2c] sm:$0x2] %v3634
      %v3636 = vld [vmem:[#allocation3 + $0x38] sm:$0x2]
      %v3637 = vsel %vm3623, 0, %v3636
      %3638 = vst [vmem:[#allocation3 + $0x38] sm:$0x2] %v3637
      %v3639 = vld [vmem:[#allocation3 + $0x44] sm:$0x2]
      %v3640 = vsel %vm3623, 0, %v3639
      %3641 = vst [vmem:[#allocation3 + $0x44] sm:$0x2] %v3640
      %v3642 = vld [vmem:[#allocation3 + $0x50] sm:$0x2]
      %v3643 = vsel %vm3623, 0, %v3642
      %3644 = vst [vmem:[#allocation3 + $0x50] sm:$0x2] %v3643
      %v3645 = vld [vmem:[#allocation3 + $0x5c] sm:$0x2]
      %v3646 = vsel %vm3623, 0, %v3645
      %3647 = vst [vmem:[#allocation3 + $0x5c] sm:$0x2] %v3646
      %v3648 = vld [vmem:[#allocation3 + $0x68] sm:$0x2]
      %v3649 = vsel %vm3623, 0, %v3648
      %3650 = vst [vmem:[#allocation3 + $0x68] sm:$0x2] %v3649
      %v3651 = vld [vmem:[#allocation3 + $0x74] sm:$0x2]
      %v3652 = vsel %vm3623, 0, %v3651
      %3653 = vst [vmem:[#allocation3 + $0x74] sm:$0x2] %v3652
      %v3654 = vld [vmem:[#allocation3 + $0x80] sm:$0x2]
      %v3655 = vsel %vm3623, 0, %v3654
      %3656 = vst [vmem:[#allocation3 + $0x80] sm:$0x2] %v3655
      %v3657 = vld [vmem:[#allocation3 + $0x8c] sm:$0x2]
      %v3658 = vsel %vm3623, 0, %v3657
      %3659 = vst [vmem:[#allocation3 + $0x8c] sm:$0x2] %v3658
      %v3660 = vld [vmem:[#allocation3 + $0x98] sm:$0x2]
      %v3661 = vsel %vm3623, 0, %v3660
      %3662 = vst [vmem:[#allocation3 + $0x98] sm:$0x2] %v3661
      %v3663 = vld [vmem:[#allocation3 + $0xa4] sm:$0x2]
      %v3664 = vsel %vm3623, 0, %v3663
      %3665 = vst [vmem:[#allocation3 + $0xa4] sm:$0x2] %v3664
      %v3666 = vld [vmem:[#allocation3 + $0xb0] sm:$0x2]
      %v3667 = vsel %vm3623, 0, %v3666
      %3668 = vst [vmem:[#allocation3 + $0xb0] sm:$0x2] %v3667
      %v3669 = vld [vmem:[#allocation3 + $0xbc] sm:$0x2]
      %v3670 = vsel %vm3623, 0, %v3669
      %3671 = vst [vmem:[#allocation3 + $0xbc] sm:$0x2] %v3670
      %v3672 = vld [vmem:[#allocation3 + $0xc8] sm:$0x2]
      %v3673 = vsel %vm3623, 0, %v3672
      %3674 = vst [vmem:[#allocation3 + $0xc8] sm:$0x2] %v3673
      %v3675 = vld [vmem:[#allocation3 + $0xd4] sm:$0x2]
      %v3676 = vsel %vm3623, 0, %v3675
      %3677 = vst [vmem:[#allocation3 + $0xd4] sm:$0x2] %v3676
      %v3678 = vld [vmem:[#allocation3 + $0xe0] sm:$0x2]
      %v3679 = vsel %vm3623, 0, %v3678
      %3680 = vst [vmem:[#allocation3 + $0xe0] sm:$0x2] %v3679
      %v3681 = vld [vmem:[#allocation3 + $0xec] sm:$0x2]
      %v3682 = vsel %vm3623, 0, %v3681
      %3683 = vst [vmem:[#allocation3 + $0xec] sm:$0x2] %v3682
      %v3684 = vld [vmem:[#allocation3 + $0x8] sm:$0xf]
      %v3685 = vld [vmem:[#allocation3 + $0xc] sm:$0xf]
      %v3686 = vld [vmem:[#allocation3 + $0x10] sm:$0xf]
      %v3687 = vld [vmem:[#allocation3 + $0x14] sm:$0xf]
      %v3688 = vld [vmem:[#allocation3 + $0x18] sm:$0xf]
      %v3689 = vld [vmem:[#allocation3 + $0x1c] sm:$0xf]
      %v3690 = vld [vmem:[#allocation3 + $0x20] sm:$0xf]
      %v3691 = vld [vmem:[#allocation3 + $0x24] sm:$0xf]
      %v3692 = vld [vmem:[#allocation3 + $0x28] sm:$0xf]
      %v3693 = vld [vmem:[#allocation3 + $0x2c] sm:$0xf]
      %v3694 = vld [vmem:[#allocation3 + $0x30] sm:$0xf]
      %v3695 = vld [vmem:[#allocation3 + $0x34] sm:$0xf]
      %v3696 = vld [vmem:[#allocation3 + $0x38] sm:$0xf]
      %v3697 = vld [vmem:[#allocation3 + $0x3c] sm:$0xf]
      %v3698 = vld [vmem:[#allocation3 + $0x40] sm:$0xf]
      %v3699 = vld [vmem:[#allocation3 + $0x44] sm:$0xf]
      %v3700 = vld [vmem:[#allocation3 + $0x48] sm:$0xf]
      %v3701 = vld [vmem:[#allocation3 + $0x4c] sm:$0xf]
      %v3702 = vld [vmem:[#allocation3 + $0x50] sm:$0xf]
      %v3703 = vld [vmem:[#allocation3 + $0x54] sm:$0xf]
      %v3704 = vld [vmem:[#allocation3 + $0x58] sm:$0xf]
      %v3705 = vld [vmem:[#allocation3 + $0x5c] sm:$0xf]
      %v3706 = vld [vmem:[#allocation3 + $0x60] sm:$0xf]
      %v3707 = vld [vmem:[#allocation3 + $0x64] sm:$0xf]
      %v3708 = vld [vmem:[#allocation3 + $0x68] sm:$0xf]
      %v3709 = vld [vmem:[#allocation3 + $0x6c] sm:$0xf]
      %v3710 = vld [vmem:[#allocation3 + $0x70] sm:$0xf]
      %v3711 = vld [vmem:[#allocation3 + $0x74] sm:$0xf]
      %v3712 = vld [vmem:[#allocation3 + $0x78] sm:$0xf]
      %v3713 = vld [vmem:[#allocation3 + $0x7c] sm:$0xf]
      %v3714 = vld [vmem:[#allocation3 + $0x80] sm:$0xf]
      %v3715 = vld [vmem:[#allocation3 + $0x84] sm:$0xf]
      %v3716 = vld [vmem:[#allocation3 + $0x88] sm:$0xf]
      %v3717 = vld [vmem:[#allocation3 + $0x8c] sm:$0xf]
      %v3718 = vld [vmem:[#allocation3 + $0x90] sm:$0xf]
      %v3719 = vld [vmem:[#allocation3 + $0x94] sm:$0xf]
      %v3720 = vld [vmem:[#allocation3 + $0x98] sm:$0xf]
      %v3721 = vld [vmem:[#allocation3 + $0x9c] sm:$0xf]
      %v3722 = vld [vmem:[#allocation3 + $0xa0] sm:$0xf]
      %v3723 = vld [vmem:[#allocation3 + $0xa4] sm:$0xf]
      %v3724 = vld [vmem:[#allocation3 + $0xa8] sm:$0xf]
      %v3725 = vld [vmem:[#allocation3 + $0xac] sm:$0xf]
      %v3726 = vld [vmem:[#allocation3 + $0xb0] sm:$0xf]
      %v3727 = vld [vmem:[#allocation3 + $0xb4] sm:$0xf]
      %v3728 = vld [vmem:[#allocation3 + $0xb8] sm:$0xf]
      %v3729 = vld [vmem:[#allocation3 + $0xbc] sm:$0xf]
      %v3730 = vld [vmem:[#allocation3 + $0xc0] sm:$0xf]
      %v3731 = vld [vmem:[#allocation3 + $0xc4] sm:$0xf]
      %v3732 = vld [vmem:[#allocation3 + $0xc8] sm:$0xf]
      %v3733 = vld [vmem:[#allocation3 + $0xcc] sm:$0xf]
      %v3734 = vld [vmem:[#allocation3 + $0xd0] sm:$0xf]
      %v3735 = vld [vmem:[#allocation3 + $0xd4] sm:$0xf]
      %v3736 = vld [vmem:[#allocation3 + $0xd8] sm:$0xf]
      %v3737 = vld [vmem:[#allocation3 + $0xdc] sm:$0xf]
      %v3738 = vld [vmem:[#allocation3 + $0xe0] sm:$0xf]
      %v3739 = vld [vmem:[#allocation3 + $0xe4] sm:$0xf]
      %v3741 = vshrl.u32 %v3684, 16
      %v3743 = vrot.slane %v3741, 7
      %v3744 = vrot.slane %v3743, 4
      %v3746 = vshrl.u32 %v3685, 16
      %v3748 = vrot.slane %v3746, 7
      %v3749 = vshll.u32 %v3685, 16
      %v3751 = vor.u32 %v3748, %v3749
      %v3752 = vsel %vm284, %v3744, %v3751
      %v3753 = vrot.slane %v3748, 4
      %v3755 = vshrl.u32 %v3686, 16
      %v3757 = vrot.slane %v3755, 7
      %v3758 = vshll.u32 %v3686, 16
      %v3760 = vor.u32 %v3757, %v3758
      %v3761 = vsel %vm284, %v3753, %v3760
      %v3762 = vrot.slane %v3757, 4
      %v3764 = vshrl.u32 %v3687, 16
      %v3766 = vrot.slane %v3764, 7
      %v3767 = vshll.u32 %v3687, 16
      %v3769 = vor.u32 %v3766, %v3767
      %v3770 = vsel %vm284, %v3762, %v3769
      %v3771 = vrot.slane %v3766, 4
      %v3773 = vshrl.u32 %v3688, 16
      %v3775 = vrot.slane %v3773, 7
      %v3776 = vshll.u32 %v3688, 16
      %v3778 = vor.u32 %v3775, %v3776
      %v3779 = vsel %vm284, %v3771, %v3778
      %v3780 = vrot.slane %v3775, 4
      %v3782 = vshrl.u32 %v3689, 16
      %v3784 = vrot.slane %v3782, 7
      %v3785 = vshll.u32 %v3689, 16
      %v3787 = vor.u32 %v3784, %v3785
      %v3788 = vsel %vm284, %v3780, %v3787
      %v3789 = vrot.slane %v3784, 4
      %v3791 = vshrl.u32 %v3690, 16
      %v3793 = vrot.slane %v3791, 7
      %v3794 = vshll.u32 %v3690, 16
      %v3796 = vor.u32 %v3793, %v3794
      %v3797 = vsel %vm284, %v3789, %v3796
      %v3798 = vrot.slane %v3793, 4
      %v3800 = vshrl.u32 %v3691, 16
      %v3802 = vrot.slane %v3800, 7
      %v3803 = vshll.u32 %v3691, 16
      %v3805 = vor.u32 %v3802, %v3803
      %v3806 = vsel %vm284, %v3798, %v3805
      %v3807 = vrot.slane %v3802, 4
      %v3809 = vshrl.u32 %v3692, 16
      %v3811 = vrot.slane %v3809, 7
      %v3812 = vshll.u32 %v3692, 16
      %v3814 = vor.u32 %v3811, %v3812
      %v3815 = vsel %vm284, %v3807, %v3814
      %v3816 = vrot.slane %v3811, 4
      %v3818 = vshrl.u32 %v3693, 16
      %v3820 = vrot.slane %v3818, 7
      %v3821 = vshll.u32 %v3693, 16
      %v3823 = vor.u32 %v3820, %v3821
      %v3824 = vsel %vm284, %v3816, %v3823
      %v3825 = vrot.slane %v3820, 4
      %v3827 = vshrl.u32 %v3694, 16
      %v3829 = vrot.slane %v3827, 7
      %v3830 = vshll.u32 %v3694, 16
      %v3832 = vor.u32 %v3829, %v3830
      %v3833 = vsel %vm284, %v3825, %v3832
      %v3834 = vrot.slane %v3829, 4
      %v3836 = vshrl.u32 %v3695, 16
      %v3838 = vrot.slane %v3836, 7
      %v3839 = vshll.u32 %v3695, 16
      %v3841 = vor.u32 %v3838, %v3839
      %v3842 = vsel %vm284, %v3834, %v3841
      %v3843 = vrot.slane %v3838, 4
      %v3845 = vshrl.u32 %v3696, 16
      %v3847 = vrot.slane %v3845, 7
      %v3848 = vshll.u32 %v3696, 16
      %v3850 = vor.u32 %v3847, %v3848
      %v3851 = vsel %vm284, %v3843, %v3850
      %v3852 = vrot.slane %v3847, 4
      %v3854 = vshrl.u32 %v3697, 16
      %v3856 = vrot.slane %v3854, 7
      %v3857 = vshll.u32 %v3697, 16
      %v3859 = vor.u32 %v3856, %v3857
      %v3860 = vsel %vm284, %v3852, %v3859
      %v3861 = vrot.slane %v3856, 4
      %v3863 = vshrl.u32 %v3698, 16
      %v3865 = vrot.slane %v3863, 7
      %v3866 = vshll.u32 %v3698, 16
      %v3868 = vor.u32 %v3865, %v3866
      %v3869 = vsel %vm284, %v3861, %v3868
      %v3870 = vrot.slane %v3865, 4
      %v3872 = vshrl.u32 %v3699, 16
      %v3874 = vrot.slane %v3872, 7
      %v3875 = vshll.u32 %v3699, 16
      %v3877 = vor.u32 %v3874, %v3875
      %v3878 = vsel %vm284, %v3870, %v3877
      %v3879 = vrot.slane %v3874, 4
      %v3881 = vshrl.u32 %v3700, 16
      %v3883 = vrot.slane %v3881, 7
      %v3884 = vshll.u32 %v3700, 16
      %v3886 = vor.u32 %v3883, %v3884
      %v3887 = vsel %vm284, %v3879, %v3886
      %v3888 = vrot.slane %v3883, 4
      %v3890 = vshrl.u32 %v3701, 16
      %v3892 = vrot.slane %v3890, 7
      %v3893 = vshll.u32 %v3701, 16
      %v3895 = vor.u32 %v3892, %v3893
      %v3896 = vsel %vm284, %v3888, %v3895
      %v3897 = vrot.slane %v3892, 4
      %v3899 = vshrl.u32 %v3702, 16
      %v3901 = vrot.slane %v3899, 7
      %v3902 = vshll.u32 %v3702, 16
      %v3904 = vor.u32 %v3901, %v3902
      %v3905 = vsel %vm284, %v3897, %v3904
      %v3906 = vrot.slane %v3901, 4
      %v3908 = vshrl.u32 %v3703, 16
      %v3910 = vrot.slane %v3908, 7
      %v3911 = vshll.u32 %v3703, 16
      %v3913 = vor.u32 %v3910, %v3911
      %v3914 = vsel %vm284, %v3906, %v3913
      %v3915 = vrot.slane %v3910, 4
      %v3917 = vshrl.u32 %v3704, 16
      %v3919 = vrot.slane %v3917, 7
      %v3920 = vshll.u32 %v3704, 16
      %v3922 = vor.u32 %v3919, %v3920
      %v3923 = vsel %vm284, %v3915, %v3922
      %v3924 = vrot.slane %v3919, 4
      %v3926 = vshrl.u32 %v3705, 16
      %v3928 = vrot.slane %v3926, 7
      %v3929 = vshll.u32 %v3705, 16
      %v3931 = vor.u32 %v3928, %v3929
      %v3932 = vsel %vm284, %v3924, %v3931
      %v3933 = vrot.slane %v3928, 4
      %v3935 = vshrl.u32 %v3706, 16
      %v3937 = vrot.slane %v3935, 7
      %v3938 = vshll.u32 %v3706, 16
      %v3940 = vor.u32 %v3937, %v3938
      %v3941 = vsel %vm284, %v3933, %v3940
      %v3942 = vrot.slane %v3937, 4
      %v3944 = vshrl.u32 %v3707, 16
      %v3946 = vrot.slane %v3944, 7
      %v3947 = vshll.u32 %v3707, 16
      %v3949 = vor.u32 %v3946, %v3947
      %v3950 = vsel %vm284, %v3942, %v3949
      %v3951 = vrot.slane %v3946, 4
      %v3953 = vshrl.u32 %v3708, 16
      %v3955 = vrot.slane %v3953, 7
      %v3956 = vshll.u32 %v3708, 16
      %v3958 = vor.u32 %v3955, %v3956
      %v3959 = vsel %vm284, %v3951, %v3958
      %v3960 = vrot.slane %v3955, 4
      %v3962 = vshrl.u32 %v3709, 16
      %v3964 = vrot.slane %v3962, 7
      %v3965 = vshll.u32 %v3709, 16
      %v3967 = vor.u32 %v3964, %v3965
      %v3968 = vsel %vm284, %v3960, %v3967
      %v3969 = vrot.slane %v3964, 4
      %v3971 = vshrl.u32 %v3710, 16
      %v3973 = vrot.slane %v3971, 7
      %v3974 = vshll.u32 %v3710, 16
      %v3976 = vor.u32 %v3973, %v3974
      %v3977 = vsel %vm284, %v3969, %v3976
      %v3978 = vrot.slane %v3973, 4
      %v3980 = vshrl.u32 %v3711, 16
      %v3982 = vrot.slane %v3980, 7
      %v3983 = vshll.u32 %v3711, 16
      %v3985 = vor.u32 %v3982, %v3983
      %v3986 = vsel %vm284, %v3978, %v3985
      %v3987 = vrot.slane %v3982, 4
      %v3989 = vshrl.u32 %v3712, 16
      %v3991 = vrot.slane %v3989, 7
      %v3992 = vshll.u32 %v3712, 16
      %v3994 = vor.u32 %v3991, %v3992
      %v3995 = vsel %vm284, %v3987, %v3994
      %v3996 = vrot.slane %v3991, 4
      %v3998 = vshrl.u32 %v3713, 16
      %v4000 = vrot.slane %v3998, 7
      %v4001 = vshll.u32 %v3713, 16
      %v4003 = vor.u32 %v4000, %v4001
      %v4004 = vsel %vm284, %v3996, %v4003
      %v4005 = vrot.slane %v4000, 4
      %v4007 = vshrl.u32 %v3714, 16
      %v4009 = vrot.slane %v4007, 7
      %v4010 = vshll.u32 %v3714, 16
      %v4012 = vor.u32 %v4009, %v4010
      %v4013 = vsel %vm284, %v4005, %v4012
      %v4014 = vrot.slane %v4009, 4
      %v4016 = vshrl.u32 %v3715, 16
      %v4018 = vrot.slane %v4016, 7
      %v4019 = vshll.u32 %v3715, 16
      %v4021 = vor.u32 %v4018, %v4019
      %v4022 = vsel %vm284, %v4014, %v4021
      %v4023 = vrot.slane %v4018, 4
      %v4025 = vshrl.u32 %v3716, 16
      %v4027 = vrot.slane %v4025, 7
      %v4028 = vshll.u32 %v3716, 16
      %v4030 = vor.u32 %v4027, %v4028
      %v4031 = vsel %vm284, %v4023, %v4030
      %v4032 = vrot.slane %v4027, 4
      %v4034 = vshrl.u32 %v3717, 16
      %v4036 = vrot.slane %v4034, 7
      %v4037 = vshll.u32 %v3717, 16
      %v4039 = vor.u32 %v4036, %v4037
      %v4040 = vsel %vm284, %v4032, %v4039
      %v4041 = vrot.slane %v4036, 4
      %v4043 = vshrl.u32 %v3718, 16
      %v4045 = vrot.slane %v4043, 7
      %v4046 = vshll.u32 %v3718, 16
      %v4048 = vor.u32 %v4045, %v4046
      %v4049 = vsel %vm284, %v4041, %v4048
      %v4050 = vrot.slane %v4045, 4
      %v4052 = vshrl.u32 %v3719, 16
      %v4054 = vrot.slane %v4052, 7
      %v4055 = vshll.u32 %v3719, 16
      %v4057 = vor.u32 %v4054, %v4055
      %v4058 = vsel %vm284, %v4050, %v4057
      %v4059 = vrot.slane %v4054, 4
      %v4061 = vshrl.u32 %v3720, 16
      %v4063 = vrot.slane %v4061, 7
      %v4064 = vshll.u32 %v3720, 16
      %v4066 = vor.u32 %v4063, %v4064
      %v4067 = vsel %vm284, %v4059, %v4066
      %v4068 = vrot.slane %v4063, 4
      %v4070 = vshrl.u32 %v3721, 16
      %v4072 = vrot.slane %v4070, 7
      %v4073 = vshll.u32 %v3721, 16
      %v4075 = vor.u32 %v4072, %v4073
      %v4076 = vsel %vm284, %v4068, %v4075
      %v4077 = vrot.slane %v4072, 4
      %v4079 = vshrl.u32 %v3722, 16
      %v4081 = vrot.slane %v4079, 7
      %v4082 = vshll.u32 %v3722, 16
      %v4084 = vor.u32 %v4081, %v4082
      %v4085 = vsel %vm284, %v4077, %v4084
      %v4086 = vrot.slane %v4081, 4
      %v4088 = vshrl.u32 %v3723, 16
      %v4090 = vrot.slane %v4088, 7
      %v4091 = vshll.u32 %v3723, 16
      %v4093 = vor.u32 %v4090, %v4091
      %v4094 = vsel %vm284, %v4086, %v4093
      %v4095 = vrot.slane %v4090, 4
      %v4097 = vshrl.u32 %v3724, 16
      %v4099 = vrot.slane %v4097, 7
      %v4100 = vshll.u32 %v3724, 16
      %v4102 = vor.u32 %v4099, %v4100
      %v4103 = vsel %vm284, %v4095, %v4102
      %v4104 = vrot.slane %v4099, 4
      %v4106 = vshrl.u32 %v3725, 16
      %v4108 = vrot.slane %v4106, 7
      %v4109 = vshll.u32 %v3725, 16
      %v4111 = vor.u32 %v4108, %v4109
      %v4112 = vsel %vm284, %v4104, %v4111
      %v4113 = vrot.slane %v4108, 4
      %v4115 = vshrl.u32 %v3726, 16
      %v4117 = vrot.slane %v4115, 7
      %v4118 = vshll.u32 %v3726, 16
      %v4120 = vor.u32 %v4117, %v4118
      %v4121 = vsel %vm284, %v4113, %v4120
      %v4122 = vrot.slane %v4117, 4
      %v4124 = vshrl.u32 %v3727, 16
      %v4126 = vrot.slane %v4124, 7
      %v4127 = vshll.u32 %v3727, 16
      %v4129 = vor.u32 %v4126, %v4127
      %v4130 = vsel %vm284, %v4122, %v4129
      %v4131 = vrot.slane %v4126, 4
      %v4133 = vshrl.u32 %v3728, 16
      %v4135 = vrot.slane %v4133, 7
      %v4136 = vshll.u32 %v3728, 16
      %v4138 = vor.u32 %v4135, %v4136
      %v4139 = vsel %vm284, %v4131, %v4138
      %v4140 = vrot.slane %v4135, 4
      %v4142 = vshrl.u32 %v3729, 16
      %v4144 = vrot.slane %v4142, 7
      %v4145 = vshll.u32 %v3729, 16
      %v4147 = vor.u32 %v4144, %v4145
      %v4148 = vsel %vm284, %v4140, %v4147
      %v4149 = vrot.slane %v4144, 4
      %v4151 = vshrl.u32 %v3730, 16
      %v4153 = vrot.slane %v4151, 7
      %v4154 = vshll.u32 %v3730, 16
      %v4156 = vor.u32 %v4153, %v4154
      %v4157 = vsel %vm284, %v4149, %v4156
      %v4158 = vrot.slane %v4153, 4
      %v4160 = vshrl.u32 %v3731, 16
      %v4162 = vrot.slane %v4160, 7
      %v4163 = vshll.u32 %v3731, 16
      %v4165 = vor.u32 %v4162, %v4163
      %v4166 = vsel %vm284, %v4158, %v4165
      %v4167 = vrot.slane %v4162, 4
      %v4169 = vshrl.u32 %v3732, 16
      %v4171 = vrot.slane %v4169, 7
      %v4172 = vshll.u32 %v3732, 16
      %v4174 = vor.u32 %v4171, %v4172
      %v4175 = vsel %vm284, %v4167, %v4174
      %4224 = vst.msk [vmem:[#allocation2] sm:$0xf] %vm3501, %v3752
      %4225 = vst.msk [vmem:[#allocation2 + $0x4] sm:$0xf] %vm3501, %v3761
      %4226 = vst.msk [vmem:[#allocation2 + $0x8] sm:$0xf] %vm3501, %v3770
      %4227 = vst.msk [vmem:[#allocation2 + $0xc] sm:$0xf] %vm3501, %v3779
      %4228 = vst.msk [vmem:[#allocation2 + $0x10] sm:$0xf] %vm3501, %v3788
      %4229 = vst.msk [vmem:[#allocation2 + $0x14] sm:$0xf] %vm3501, %v3797
      %4230 = vst.msk [vmem:[#allocation2 + $0x18] sm:$0xf] %vm3501, %v3806
      %4231 = vst.msk [vmem:[#allocation2 + $0x1c] sm:$0xf] %vm3501, %v3815
      %4232 = vst.msk [vmem:[#allocation2 + $0x20] sm:$0xf] %vm3501, %v3824
      %4233 = vst.msk [vmem:[#allocation2 + $0x24] sm:$0xf] %vm3501, %v3833
      %4234 = vst.msk [vmem:[#allocation2 + $0x28] sm:$0xf] %vm3501, %v3842
      %4235 = vst.msk [vmem:[#allocation2 + $0x2c] sm:$0xf] %vm3501, %v3851
      %4236 = vst.msk [vmem:[#allocation2 + $0x30] sm:$0xf] %vm3501, %v3860
      %4237 = vst.msk [vmem:[#allocation2 + $0x34] sm:$0xf] %vm3501, %v3869
      %4238 = vst.msk [vmem:[#allocation2 + $0x38] sm:$0xf] %vm3501, %v3878
      %4239 = vst.msk [vmem:[#allocation2 + $0x3c] sm:$0xf] %vm3501, %v3887
      %4240 = vst.msk [vmem:[#allocation2 + $0x40] sm:$0xf] %vm3501, %v3896
      %4241 = vst.msk [vmem:[#allocation2 + $0x44] sm:$0xf] %vm3501, %v3905
      %4242 = vst.msk [vmem:[#allocation2 + $0x48] sm:$0xf] %vm3501, %v3914
      %4243 = vst.msk [vmem:[#allocation2 + $0x4c] sm:$0xf] %vm3501, %v3923
      %4244 = vst.msk [vmem:[#allocation2 + $0x50] sm:$0xf] %vm3501, %v3932
      %4245 = vst.msk [vmem:[#allocation2 + $0x54] sm:$0xf] %vm3501, %v3941
      %4246 = vst.msk [vmem:[#allocation2 + $0x58] sm:$0xf] %vm3501, %v3950
      %4247 = vst.msk [vmem:[#allocation2 + $0x5c] sm:$0xf] %vm3501, %v3959
      %4248 = vst.msk [vmem:[#allocation2 + $0x60] sm:$0xf] %vm3501, %v3968
      %4249 = vst.msk [vmem:[#allocation2 + $0x64] sm:$0xf] %vm3501, %v3977
      %4250 = vst.msk [vmem:[#allocation2 + $0x68] sm:$0xf] %vm3501, %v3986
      %4251 = vst.msk [vmem:[#allocation2 + $0x6c] sm:$0xf] %vm3501, %v3995
      %4252 = vst.msk [vmem:[#allocation2 + $0x70] sm:$0xf] %vm3501, %v4004
      %4253 = vst.msk [vmem:[#allocation2 + $0x74] sm:$0xf] %vm3501, %v4013
      %4254 = vst.msk [vmem:[#allocation2 + $0x78] sm:$0xf] %vm3501, %v4022
      %4255 = vst.msk [vmem:[#allocation2 + $0x7c] sm:$0xf] %vm3501, %v4031
      %4256 = vst.msk [vmem:[#allocation2 + $0x80] sm:$0xf] %vm3501, %v4040
      %4257 = vst.msk [vmem:[#allocation2 + $0x84] sm:$0xf] %vm3501, %v4049
      %4258 = vst.msk [vmem:[#allocation2 + $0x88] sm:$0xf] %vm3501, %v4058
      %4259 = vst.msk [vmem:[#allocation2 + $0x8c] sm:$0xf] %vm3501, %v4067
      %4260 = vst.msk [vmem:[#allocation2 + $0x90] sm:$0xf] %vm3501, %v4076
      %4261 = vst.msk [vmem:[#allocation2 + $0x94] sm:$0xf] %vm3501, %v4085
      %4262 = vst.msk [vmem:[#allocation2 + $0x98] sm:$0xf] %vm3501, %v4094
      %4263 = vst.msk [vmem:[#allocation2 + $0x9c] sm:$0xf] %vm3501, %v4103
      %4264 = vst.msk [vmem:[#allocation2 + $0xa0] sm:$0xf] %vm3501, %v4112
      %4265 = vst.msk [vmem:[#allocation2 + $0xa4] sm:$0xf] %vm3501, %v4121
      %4266 = vst.msk [vmem:[#allocation2 + $0xa8] sm:$0xf] %vm3501, %v4130
      %4267 = vst.msk [vmem:[#allocation2 + $0xac] sm:$0xf] %vm3501, %v4139
      %4268 = vst.msk [vmem:[#allocation2 + $0xb0] sm:$0xf] %vm3501, %v4148
      %4269 = vst.msk [vmem:[#allocation2 + $0xb4] sm:$0xf] %vm3501, %v4157
      %4270 = vst.msk [vmem:[#allocation2 + $0xb8] sm:$0xf] %vm3501, %v4166
      %4271 = vst.msk [vmem:[#allocation2 + $0xbc] sm:$0xf] %vm3501, %v4175
      %4320 = vrot.lane.b32.xlu0 %v3685, 8
      %v4321 = vpop.permute.xlu0 %4320
      %4322 = vrot.lane.b32.xlu0 %v3686, 8
      %v4323 = vpop.permute.xlu0 %4322
      %4324 = vrot.lane.b32.xlu0 %v3687, 8
      %v4325 = vpop.permute.xlu0 %4324
      %4326 = vrot.lane.b32.xlu0 %v3688, 8
      %v4327 = vpop.permute.xlu0 %4326
      %4328 = vrot.lane.b32.xlu0 %v3689, 8
      %v4329 = vpop.permute.xlu0 %4328
      %4330 = vrot.lane.b32.xlu0 %v3690, 8
      %v4331 = vpop.permute.xlu0 %4330
      %4332 = vrot.lane.b32.xlu0 %v3691, 8
      %v4333 = vpop.permute.xlu0 %4332
      %4334 = vrot.lane.b32.xlu0 %v3692, 8
      %v4335 = vpop.permute.xlu0 %4334
      %4336 = vrot.lane.b32.xlu0 %v3693, 8
      %v4337 = vpop.permute.xlu0 %4336
      %4338 = vrot.lane.b32.xlu0 %v3694, 8
      %v4339 = vpop.permute.xlu0 %4338
      %4340 = vrot.lane.b32.xlu0 %v3695, 8
      %v4341 = vpop.permute.xlu0 %4340
      %4342 = vrot.lane.b32.xlu0 %v3696, 8
      %v4343 = vpop.permute.xlu0 %4342
      %4344 = vrot.lane.b32.xlu0 %v3697, 8
      %v4345 = vpop.permute.xlu0 %4344
      %4346 = vrot.lane.b32.xlu0 %v3698, 8
      %v4347 = vpop.permute.xlu0 %4346
      %4348 = vrot.lane.b32.xlu0 %v3699, 8
      %v4349 = vpop.permute.xlu0 %4348
      %4350 = vrot.lane.b32.xlu0 %v3700, 8
      %v4351 = vpop.permute.xlu0 %4350
      %4352 = vrot.lane.b32.xlu0 %v3701, 8
      %v4353 = vpop.permute.xlu0 %4352
      %4354 = vrot.lane.b32.xlu0 %v3702, 8
      %v4355 = vpop.permute.xlu0 %4354
      %4356 = vrot.lane.b32.xlu0 %v3703, 8
      %v4357 = vpop.permute.xlu0 %4356
      %4358 = vrot.lane.b32.xlu0 %v3704, 8
      %v4359 = vpop.permute.xlu0 %4358
      %4360 = vrot.lane.b32.xlu0 %v3705, 8
      %v4361 = vpop.permute.xlu0 %4360
      %4362 = vrot.lane.b32.xlu0 %v3706, 8
      %v4363 = vpop.permute.xlu0 %4362
      %4364 = vrot.lane.b32.xlu0 %v3707, 8
      %v4365 = vpop.permute.xlu0 %4364
      %4366 = vrot.lane.b32.xlu0 %v3708, 8
      %v4367 = vpop.permute.xlu0 %4366
      %4368 = vrot.lane.b32.xlu0 %v3709, 8
      %v4369 = vpop.permute.xlu0 %4368
      %4370 = vrot.lane.b32.xlu0 %v3710, 8
      %v4371 = vpop.permute.xlu0 %4370
      %4372 = vrot.lane.b32.xlu0 %v3711, 8
      %v4373 = vpop.permute.xlu0 %4372
      %4374 = vrot.lane.b32.xlu0 %v3712, 8
      %v4375 = vpop.permute.xlu0 %4374
      %4376 = vrot.lane.b32.xlu0 %v3713, 8
      %v4377 = vpop.permute.xlu0 %4376
      %4378 = vrot.lane.b32.xlu0 %v3714, 8
      %v4379 = vpop.permute.xlu0 %4378
      %4380 = vrot.lane.b32.xlu0 %v3715, 8
      %v4381 = vpop.permute.xlu0 %4380
      %4382 = vrot.lane.b32.xlu0 %v3716, 8
      %v4383 = vpop.permute.xlu0 %4382
      %4384 = vrot.lane.b32.xlu0 %v3717, 8
      %v4385 = vpop.permute.xlu0 %4384
      %4386 = vrot.lane.b32.xlu0 %v3718, 8
      %v4387 = vpop.permute.xlu0 %4386
      %4388 = vrot.lane.b32.xlu0 %v3719, 8
      %v4389 = vpop.permute.xlu0 %4388
      %4390 = vrot.lane.b32.xlu0 %v3720, 8
      %v4391 = vpop.permute.xlu0 %4390
      %4392 = vrot.lane.b32.xlu0 %v3721, 8
      %v4393 = vpop.permute.xlu0 %4392
      %4394 = vrot.lane.b32.xlu0 %v3722, 8
      %v4395 = vpop.permute.xlu0 %4394
      %4396 = vrot.lane.b32.xlu0 %v3723, 8
      %v4397 = vpop.permute.xlu0 %4396
      %4398 = vrot.lane.b32.xlu0 %v3724, 8
      %v4399 = vpop.permute.xlu0 %4398
      %4400 = vrot.lane.b32.xlu0 %v3725, 8
      %v4401 = vpop.permute.xlu0 %4400
      %4402 = vrot.lane.b32.xlu0 %v3726, 8
      %v4403 = vpop.permute.xlu0 %4402
      %4404 = vrot.lane.b32.xlu0 %v3727, 8
      %v4405 = vpop.permute.xlu0 %4404
      %4406 = vrot.lane.b32.xlu0 %v3728, 8
      %v4407 = vpop.permute.xlu0 %4406
      %4408 = vrot.lane.b32.xlu0 %v3729, 8
      %v4409 = vpop.permute.xlu0 %4408
      %4410 = vrot.lane.b32.xlu0 %v3730, 8
      %v4411 = vpop.permute.xlu0 %4410
      %4412 = vrot.lane.b32.xlu0 %v3731, 8
      %v4413 = vpop.permute.xlu0 %4412
      %4414 = vrot.lane.b32.xlu0 %v3732, 8
      %v4415 = vpop.permute.xlu0 %4414
      %vm4464 = vcmask 126016
      %4465 = vst.msk [vmem:[#allocation2] sm:$0xf] %vm4464, %v4321
      %4466 = vst.msk [vmem:[#allocation2 + $0x4] sm:$0xf] %vm4464, %v4323
      %4467 = vst.msk [vmem:[#allocation2 + $0x8] sm:$0xf] %vm4464, %v4325
      %4468 = vst.msk [vmem:[#allocation2 + $0xc] sm:$0xf] %vm4464, %v4327
      %4469 = vst.msk [vmem:[#allocation2 + $0x10] sm:$0xf] %vm4464, %v4329
      %4470 = vst.msk [vmem:[#allocation2 + $0x14] sm:$0xf] %vm4464, %v4331
      %4471 = vst.msk [vmem:[#allocation2 + $0x18] sm:$0xf] %vm4464, %v4333
      %4472 = vst.msk [vmem:[#allocation2 + $0x1c] sm:$0xf] %vm4464, %v4335
      %4473 = vst.msk [vmem:[#allocation2 + $0x20] sm:$0xf] %vm4464, %v4337
      %4474 = vst.msk [vmem:[#allocation2 + $0x24] sm:$0xf] %vm4464, %v4339
      %4475 = vst.msk [vmem:[#allocation2 + $0x28] sm:$0xf] %vm4464, %v4341
      %4476 = vst.msk [vmem:[#allocation2 + $0x2c] sm:$0xf] %vm4464, %v4343
      %4477 = vst.msk [vmem:[#allocation2 + $0x30] sm:$0xf] %vm4464, %v4345
      %4478 = vst.msk [vmem:[#allocation2 + $0x34] sm:$0xf] %vm4464, %v4347
      %4479 = vst.msk [vmem:[#allocation2 + $0x38] sm:$0xf] %vm4464, %v4349
      %4480 = vst.msk [vmem:[#allocation2 + $0x3c] sm:$0xf] %vm4464, %v4351
      %4481 = vst.msk [vmem:[#allocation2 + $0x40] sm:$0xf] %vm4464, %v4353
      %4482 = vst.msk [vmem:[#allocation2 + $0x44] sm:$0xf] %vm4464, %v4355
      %4483 = vst.msk [vmem:[#allocation2 + $0x48] sm:$0xf] %vm4464, %v4357
      %4484 = vst.msk [vmem:[#allocation2 + $0x4c] sm:$0xf] %vm4464, %v4359
      %4485 = vst.msk [vmem:[#allocation2 + $0x50] sm:$0xf] %vm4464, %v4361
      %4486 = vst.msk [vmem:[#allocation2 + $0x54] sm:$0xf] %vm4464, %v4363
      %4487 = vst.msk [vmem:[#allocation2 + $0x58] sm:$0xf] %vm4464, %v4365
      %4488 = vst.msk [vmem:[#allocation2 + $0x5c] sm:$0xf] %vm4464, %v4367
      %4489 = vst.msk [vmem:[#allocation2 + $0x60] sm:$0xf] %vm4464, %v4369
      %4490 = vst.msk [vmem:[#allocation2 + $0x64] sm:$0xf] %vm4464, %v4371
      %4491 = vst.msk [vmem:[#allocation2 + $0x68] sm:$0xf] %vm4464, %v4373
      %4492 = vst.msk [vmem:[#allocation2 + $0x6c] sm:$0xf] %vm4464, %v4375
      %4493 = vst.msk [vmem:[#allocation2 + $0x70] sm:$0xf] %vm4464, %v4377
      %4494 = vst.msk [vmem:[#allocation2 + $0x74] sm:$0xf] %vm4464, %v4379
      %4495 = vst.msk [vmem:[#allocation2 + $0x78] sm:$0xf] %vm4464, %v4381
      %4496 = vst.msk [vmem:[#allocation2 + $0x7c] sm:$0xf] %vm4464, %v4383
      %4497 = vst.msk [vmem:[#allocation2 + $0x80] sm:$0xf] %vm4464, %v4385
      %4498 = vst.msk [vmem:[#allocation2 + $0x84] sm:$0xf] %vm4464, %v4387
      %4499 = vst.msk [vmem:[#allocation2 + $0x88] sm:$0xf] %vm4464, %v4389
      %4500 = vst.msk [vmem:[#allocation2 + $0x8c] sm:$0xf] %vm4464, %v4391
      %4501 = vst.msk [vmem:[#allocation2 + $0x90] sm:$0xf] %vm4464, %v4393
      %4502 = vst.msk [vmem:[#allocation2 + $0x94] sm:$0xf] %vm4464, %v4395
      %4503 = vst.msk [vmem:[#allocation2 + $0x98] sm:$0xf] %vm4464, %v4397
      %4504 = vst.msk [vmem:[#allocation2 + $0x9c] sm:$0xf] %vm4464, %v4399
      %4505 = vst.msk [vmem:[#allocation2 + $0xa0] sm:$0xf] %vm4464, %v4401
      %4506 = vst.msk [vmem:[#allocation2 + $0xa4] sm:$0xf] %vm4464, %v4403
      %4507 = vst.msk [vmem:[#allocation2 + $0xa8] sm:$0xf] %vm4464, %v4405
      %4508 = vst.msk [vmem:[#allocation2 + $0xac] sm:$0xf] %vm4464, %v4407
      %4509 = vst.msk [vmem:[#allocation2 + $0xb0] sm:$0xf] %vm4464, %v4409
      %4510 = vst.msk [vmem:[#allocation2 + $0xb4] sm:$0xf] %vm4464, %v4411
      %4511 = vst.msk [vmem:[#allocation2 + $0xb8] sm:$0xf] %vm4464, %v4413
      %4512 = vst.msk [vmem:[#allocation2 + $0xbc] sm:$0xf] %vm4464, %v4415
      %v4513 = vrot.slane %v3746, 4
      %v4514 = vrot.slane %v3749, 5
      %v4515 = vor.u32 %v4513, %v4514
      %v4516 = vrot.slane %v4515, 4
      %v4517 = vrot.slane %v3758, 5
      %v4518 = vsel %vm1061, %v4516, %v4517
      %v4519 = vrot.slane %v3755, 4
      %v4520 = vor.u32 %v4519, %v4517
      %v4521 = vrot.slane %v4520, 4
      %v4522 = vrot.slane %v3767, 5
      %v4523 = vsel %vm1061, %v4521, %v4522
      %v4524 = vrot.slane %v3764, 4
      %v4525 = vor.u32 %v4524, %v4522
      %v4526 = vrot.slane %v4525, 4
      %v4527 = vrot.slane %v3776, 5
      %v4528 = vsel %vm1061, %v4526, %v4527
      %v4529 = vrot.slane %v3773, 4
      %v4530 = vor.u32 %v4529, %v4527
      %v4531 = vrot.slane %v4530, 4
      %v4532 = vrot.slane %v3785, 5
      %v4533 = vsel %vm1061, %v4531, %v4532
      %v4534 = vrot.slane %v3782, 4
      %v4535 = vor.u32 %v4534, %v4532
      %v4536 = vrot.slane %v4535, 4
      %v4537 = vrot.slane %v3794, 5
      %v4538 = vsel %vm1061, %v4536, %v4537
      %v4539 = vrot.slane %v3791, 4
      %v4540 = vor.u32 %v4539, %v4537
      %v4541 = vrot.slane %v4540, 4
      %v4542 = vrot.slane %v3803, 5
      %v4543 = vsel %vm1061, %v4541, %v4542
      %v4544 = vrot.slane %v3800, 4
      %v4545 = vor.u32 %v4544, %v4542
      %v4546 = vrot.slane %v4545, 4
      %v4547 = vrot.slane %v3812, 5
      %v4548 = vsel %vm1061, %v4546, %v4547
      %v4549 = vrot.slane %v3809, 4
      %v4550 = vor.u32 %v4549, %v4547
      %v4551 = vrot.slane %v4550, 4
      %v4552 = vrot.slane %v3821, 5
      %v4553 = vsel %vm1061, %v4551, %v4552
      %v4554 = vrot.slane %v3818, 4
      %v4555 = vor.u32 %v4554, %v4552
      %v4556 = vrot.slane %v4555, 4
      %v4557 = vrot.slane %v3830, 5
      %v4558 = vsel %vm1061, %v4556, %v4557
      %v4559 = vrot.slane %v3827, 4
      %v4560 = vor.u32 %v4559, %v4557
      %v4561 = vrot.slane %v4560, 4
      %v4562 = vrot.slane %v3839, 5
      %v4563 = vsel %vm1061, %v4561, %v4562
      %v4564 = vrot.slane %v3836, 4
      %v4565 = vor.u32 %v4564, %v4562
      %v4566 = vrot.slane %v4565, 4
      %v4567 = vrot.slane %v3848, 5
      %v4568 = vsel %vm1061, %v4566, %v4567
      %v4569 = vrot.slane %v3845, 4
      %v4570 = vor.u32 %v4569, %v4567
      %v4571 = vrot.slane %v4570, 4
      %v4572 = vrot.slane %v3857, 5
      %v4573 = vsel %vm1061, %v4571, %v4572
      %v4574 = vrot.slane %v3854, 4
      %v4575 = vor.u32 %v4574, %v4572
      %v4576 = vrot.slane %v4575, 4
      %v4577 = vrot.slane %v3866, 5
      %v4578 = vsel %vm1061, %v4576, %v4577
      %v4579 = vrot.slane %v3863, 4
      %v4580 = vor.u32 %v4579, %v4577
      %v4581 = vrot.slane %v4580, 4
      %v4582 = vrot.slane %v3875, 5
      %v4583 = vsel %vm1061, %v4581, %v4582
      %v4584 = vrot.slane %v3872, 4
      %v4585 = vor.u32 %v4584, %v4582
      %v4586 = vrot.slane %v4585, 4
      %v4587 = vrot.slane %v3884, 5
      %v4588 = vsel %vm1061, %v4586, %v4587
      %v4589 = vrot.slane %v3881, 4
      %v4590 = vor.u32 %v4589, %v4587
      %v4591 = vrot.slane %v4590, 4
      %v4592 = vrot.slane %v3893, 5
      %v4593 = vsel %vm1061, %v4591, %v4592
      %v4594 = vrot.slane %v3890, 4
      %v4595 = vor.u32 %v4594, %v4592
      %v4596 = vrot.slane %v4595, 4
      %v4597 = vrot.slane %v3902, 5
      %v4598 = vsel %vm1061, %v4596, %v4597
      %v4599 = vrot.slane %v3899, 4
      %v4600 = vor.u32 %v4599, %v4597
      %v4601 = vrot.slane %v4600, 4
      %v4602 = vrot.slane %v3911, 5
      %v4603 = vsel %vm1061, %v4601, %v4602
      %v4604 = vrot.slane %v3908, 4
      %v4605 = vor.u32 %v4604, %v4602
      %v4606 = vrot.slane %v4605, 4
      %v4607 = vrot.slane %v3920, 5
      %v4608 = vsel %vm1061, %v4606, %v4607
      %v4609 = vrot.slane %v3917, 4
      %v4610 = vor.u32 %v4609, %v4607
      %v4611 = vrot.slane %v4610, 4
      %v4612 = vrot.slane %v3929, 5
      %v4613 = vsel %vm1061, %v4611, %v4612
      %v4614 = vrot.slane %v3926, 4
      %v4615 = vor.u32 %v4614, %v4612
      %v4616 = vrot.slane %v4615, 4
      %v4617 = vrot.slane %v3938, 5
      %v4618 = vsel %vm1061, %v4616, %v4617
      %v4619 = vrot.slane %v3935, 4
      %v4620 = vor.u32 %v4619, %v4617
      %v4621 = vrot.slane %v4620, 4
      %v4622 = vrot.slane %v3947, 5
      %v4623 = vsel %vm1061, %v4621, %v4622
      %v4624 = vrot.slane %v3944, 4
      %v4625 = vor.u32 %v4624, %v4622
      %v4626 = vrot.slane %v4625, 4
      %v4627 = vrot.slane %v3956, 5
      %v4628 = vsel %vm1061, %v4626, %v4627
      %v4629 = vrot.slane %v3953, 4
      %v4630 = vor.u32 %v4629, %v4627
      %v4631 = vrot.slane %v4630, 4
      %v4632 = vrot.slane %v3965, 5
      %v4633 = vsel %vm1061, %v4631, %v4632
      %v4634 = vrot.slane %v3962, 4
      %v4635 = vor.u32 %v4634, %v4632
      %v4636 = vrot.slane %v4635, 4
      %v4637 = vrot.slane %v3974, 5
      %v4638 = vsel %vm1061, %v4636, %v4637
      %v4639 = vrot.slane %v3971, 4
      %v4640 = vor.u32 %v4639, %v4637
      %v4641 = vrot.slane %v4640, 4
      %v4642 = vrot.slane %v3983, 5
      %v4643 = vsel %vm1061, %v4641, %v4642
      %v4644 = vrot.slane %v3980, 4
      %v4645 = vor.u32 %v4644, %v4642
      %v4646 = vrot.slane %v4645, 4
      %v4647 = vrot.slane %v3992, 5
      %v4648 = vsel %vm1061, %v4646, %v4647
      %v4649 = vrot.slane %v3989, 4
      %v4650 = vor.u32 %v4649, %v4647
      %v4651 = vrot.slane %v4650, 4
      %v4652 = vrot.slane %v4001, 5
      %v4653 = vsel %vm1061, %v4651, %v4652
      %v4654 = vrot.slane %v3998, 4
      %v4655 = vor.u32 %v4654, %v4652
      %v4656 = vrot.slane %v4655, 4
      %v4657 = vrot.slane %v4010, 5
      %v4658 = vsel %vm1061, %v4656, %v4657
      %v4659 = vrot.slane %v4007, 4
      %v4660 = vor.u32 %v4659, %v4657
      %v4661 = vrot.slane %v4660, 4
      %v4662 = vrot.slane %v4019, 5
      %v4663 = vsel %vm1061, %v4661, %v4662
      %v4664 = vrot.slane %v4016, 4
      %v4665 = vor.u32 %v4664, %v4662
      %v4666 = vrot.slane %v4665, 4
      %v4667 = vrot.slane %v4028, 5
      %v4668 = vsel %vm1061, %v4666, %v4667
      %v4669 = vrot.slane %v4025, 4
      %v4670 = vor.u32 %v4669, %v4667
      %v4671 = vrot.slane %v4670, 4
      %v4672 = vrot.slane %v4037, 5
      %v4673 = vsel %vm1061, %v4671, %v4672
      %v4674 = vrot.slane %v4034, 4
      %v4675 = vor.u32 %v4674, %v4672
      %v4676 = vrot.slane %v4675, 4
      %v4677 = vrot.slane %v4046, 5
      %v4678 = vsel %vm1061, %v4676, %v4677
      %v4679 = vrot.slane %v4043, 4
      %v4680 = vor.u32 %v4679, %v4677
      %v4681 = vrot.slane %v4680, 4
      %v4682 = vrot.slane %v4055, 5
      %v4683 = vsel %vm1061, %v4681, %v4682
      %v4684 = vrot.slane %v4052, 4
      %v4685 = vor.u32 %v4684, %v4682
      %v4686 = vrot.slane %v4685, 4
      %v4687 = vrot.slane %v4064, 5
      %v4688 = vsel %vm1061, %v4686, %v4687
      %v4689 = vrot.slane %v4061, 4
      %v4690 = vor.u32 %v4689, %v4687
      %v4691 = vrot.slane %v4690, 4
      %v4692 = vrot.slane %v4073, 5
      %v4693 = vsel %vm1061, %v4691, %v4692
      %v4694 = vrot.slane %v4070, 4
      %v4695 = vor.u32 %v4694, %v4692
      %v4696 = vrot.slane %v4695, 4
      %v4697 = vrot.slane %v4082, 5
      %v4698 = vsel %vm1061, %v4696, %v4697
      %v4699 = vrot.slane %v4079, 4
      %v4700 = vor.u32 %v4699, %v4697
      %v4701 = vrot.slane %v4700, 4
      %v4702 = vrot.slane %v4091, 5
      %v4703 = vsel %vm1061, %v4701, %v4702
      %v4704 = vrot.slane %v4088, 4
      %v4705 = vor.u32 %v4704, %v4702
      %v4706 = vrot.slane %v4705, 4
      %v4707 = vrot.slane %v4100, 5
      %v4708 = vsel %vm1061, %v4706, %v4707
      %v4709 = vrot.slane %v4097, 4
      %v4710 = vor.u32 %v4709, %v4707
      %v4711 = vrot.slane %v4710, 4
      %v4712 = vrot.slane %v4109, 5
      %v4713 = vsel %vm1061, %v4711, %v4712
      %v4714 = vrot.slane %v4106, 4
      %v4715 = vor.u32 %v4714, %v4712
      %v4716 = vrot.slane %v4715, 4
      %v4717 = vrot.slane %v4118, 5
      %v4718 = vsel %vm1061, %v4716, %v4717
      %v4719 = vrot.slane %v4115, 4
      %v4720 = vor.u32 %v4719, %v4717
      %v4721 = vrot.slane %v4720, 4
      %v4722 = vrot.slane %v4127, 5
      %v4723 = vsel %vm1061, %v4721, %v4722
      %v4724 = vrot.slane %v4124, 4
      %v4725 = vor.u32 %v4724, %v4722
      %v4726 = vrot.slane %v4725, 4
      %v4727 = vrot.slane %v4136, 5
      %v4728 = vsel %vm1061, %v4726, %v4727
      %v4729 = vrot.slane %v4133, 4
      %v4730 = vor.u32 %v4729, %v4727
      %v4731 = vrot.slane %v4730, 4
      %v4732 = vrot.slane %v4145, 5
      %v4733 = vsel %vm1061, %v4731, %v4732
      %v4734 = vrot.slane %v4142, 4
      %v4735 = vor.u32 %v4734, %v4732
      %v4736 = vrot.slane %v4735, 4
      %v4737 = vrot.slane %v4154, 5
      %v4738 = vsel %vm1061, %v4736, %v4737
      %v4739 = vrot.slane %v4151, 4
      %v4740 = vor.u32 %v4739, %v4737
      %v4741 = vrot.slane %v4740, 4
      %v4742 = vrot.slane %v4163, 5
      %v4743 = vsel %vm1061, %v4741, %v4742
      %v4744 = vrot.slane %v4160, 4
      %v4745 = vor.u32 %v4744, %v4742
      %v4746 = vrot.slane %v4745, 4
      %v4747 = vrot.slane %v4172, 5
      %v4748 = vsel %vm1061, %v4746, %v4747
      %v4749 = vrot.slane %v4169, 4
      %v4750 = vor.u32 %v4749, %v4747
      %v4751 = vrot.slane %v4750, 4
      %v4753 = vshll.u32 %v3733, 16
      %v4755 = vrot.slane %v4753, 5
      %v4756 = vsel %vm1061, %v4751, %v4755
      %4757 = vrot.lane.b32.xlu0 %v4518, 16
      %v4758 = vpop.permute.xlu0 %4757
      %4759 = vrot.lane.b32.xlu0 %v4523, 16
      %v4760 = vpop.permute.xlu0 %4759
      %4761 = vrot.lane.b32.xlu0 %v4528, 16
      %v4762 = vpop.permute.xlu0 %4761
      %4763 = vrot.lane.b32.xlu0 %v4533, 16
      %v4764 = vpop.permute.xlu0 %4763
      %4765 = vrot.lane.b32.xlu0 %v4538, 16
      %v4766 = vpop.permute.xlu0 %4765
      %4767 = vrot.lane.b32.xlu0 %v4543, 16
      %v4768 = vpop.permute.xlu0 %4767
      %4769 = vrot.lane.b32.xlu0 %v4548, 16
      %v4770 = vpop.permute.xlu0 %4769
      %4771 = vrot.lane.b32.xlu0 %v4553, 16
      %v4772 = vpop.permute.xlu0 %4771
      %4773 = vrot.lane.b32.xlu0 %v4558, 16
      %v4774 = vpop.permute.xlu0 %4773
      %4775 = vrot.lane.b32.xlu0 %v4563, 16
      %v4776 = vpop.permute.xlu0 %4775
      %4777 = vrot.lane.b32.xlu0 %v4568, 16
      %v4778 = vpop.permute.xlu0 %4777
      %4779 = vrot.lane.b32.xlu0 %v4573, 16
      %v4780 = vpop.permute.xlu0 %4779
      %4781 = vrot.lane.b32.xlu0 %v4578, 16
      %v4782 = vpop.permute.xlu0 %4781
      %4783 = vrot.lane.b32.xlu0 %v4583, 16
      %v4784 = vpop.permute.xlu0 %4783
      %4785 = vrot.lane.b32.xlu0 %v4588, 16
      %v4786 = vpop.permute.xlu0 %4785
      %4787 = vrot.lane.b32.xlu0 %v4593, 16
      %v4788 = vpop.permute.xlu0 %4787
      %4789 = vrot.lane.b32.xlu0 %v4598, 16
      %v4790 = vpop.permute.xlu0 %4789
      %4791 = vrot.lane.b32.xlu0 %v4603, 16
      %v4792 = vpop.permute.xlu0 %4791
      %4793 = vrot.lane.b32.xlu0 %v4608, 16
      %v4794 = vpop.permute.xlu0 %4793
      %4795 = vrot.lane.b32.xlu0 %v4613, 16
      %v4796 = vpop.permute.xlu0 %4795
      %4797 = vrot.lane.b32.xlu0 %v4618, 16
      %v4798 = vpop.permute.xlu0 %4797
      %4799 = vrot.lane.b32.xlu0 %v4623, 16
      %v4800 = vpop.permute.xlu0 %4799
      %4801 = vrot.lane.b32.xlu0 %v4628, 16
      %v4802 = vpop.permute.xlu0 %4801
      %4803 = vrot.lane.b32.xlu0 %v4633, 16
      %v4804 = vpop.permute.xlu0 %4803
      %4805 = vrot.lane.b32.xlu0 %v4638, 16
      %v4806 = vpop.permute.xlu0 %4805
      %4807 = vrot.lane.b32.xlu0 %v4643, 16
      %v4808 = vpop.permute.xlu0 %4807
      %4809 = vrot.lane.b32.xlu0 %v4648, 16
      %v4810 = vpop.permute.xlu0 %4809
      %4811 = vrot.lane.b32.xlu0 %v4653, 16
      %v4812 = vpop.permute.xlu0 %4811
      %4813 = vrot.lane.b32.xlu0 %v4658, 16
      %v4814 = vpop.permute.xlu0 %4813
      %4815 = vrot.lane.b32.xlu0 %v4663, 16
      %v4816 = vpop.permute.xlu0 %4815
      %4817 = vrot.lane.b32.xlu0 %v4668, 16
      %v4818 = vpop.permute.xlu0 %4817
      %4819 = vrot.lane.b32.xlu0 %v4673, 16
      %v4820 = vpop.permute.xlu0 %4819
      %4821 = vrot.lane.b32.xlu0 %v4678, 16
      %v4822 = vpop.permute.xlu0 %4821
      %4823 = vrot.lane.b32.xlu0 %v4683, 16
      %v4824 = vpop.permute.xlu0 %4823
      %4825 = vrot.lane.b32.xlu0 %v4688, 16
      %v4826 = vpop.permute.xlu0 %4825
      %4827 = vrot.lane.b32.xlu0 %v4693, 16
      %v4828 = vpop.permute.xlu0 %4827
      %4829 = vrot.lane.b32.xlu0 %v4698, 16
      %v4830 = vpop.permute.xlu0 %4829
      %4831 = vrot.lane.b32.xlu0 %v4703, 16
      %v4832 = vpop.permute.xlu0 %4831
      %4833 = vrot.lane.b32.xlu0 %v4708, 16
      %v4834 = vpop.permute.xlu0 %4833
      %4835 = vrot.lane.b32.xlu0 %v4713, 16
      %v4836 = vpop.permute.xlu0 %4835
      %4837 = vrot.lane.b32.xlu0 %v4718, 16
      %v4838 = vpop.permute.xlu0 %4837
      %4839 = vrot.lane.b32.xlu0 %v4723, 16
      %v4840 = vpop.permute.xlu0 %4839
      %4841 = vrot.lane.b32.xlu0 %v4728, 16
      %v4842 = vpop.permute.xlu0 %4841
      %4843 = vrot.lane.b32.xlu0 %v4733, 16
      %v4844 = vpop.permute.xlu0 %4843
      %4845 = vrot.lane.b32.xlu0 %v4738, 16
      %v4846 = vpop.permute.xlu0 %4845
      %4847 = vrot.lane.b32.xlu0 %v4743, 16
      %v4848 = vpop.permute.xlu0 %4847
      %4849 = vrot.lane.b32.xlu0 %v4748, 16
      %v4850 = vpop.permute.xlu0 %4849
      %4851 = vrot.lane.b32.xlu0 %v4756, 16
      %v4852 = vpop.permute.xlu0 %4851
      %vm4901 = vcmask 191616
      %4902 = vst.msk [vmem:[#allocation2] sm:$0xf] %vm4901, %v4758
      %4903 = vst.msk [vmem:[#allocation2 + $0x4] sm:$0xf] %vm4901, %v4760
      %4904 = vst.msk [vmem:[#allocation2 + $0x8] sm:$0xf] %vm4901, %v4762
      %4905 = vst.msk [vmem:[#allocation2 + $0xc] sm:$0xf] %vm4901, %v4764
      %4906 = vst.msk [vmem:[#allocation2 + $0x10] sm:$0xf] %vm4901, %v4766
      %4907 = vst.msk [vmem:[#allocation2 + $0x14] sm:$0xf] %vm4901, %v4768
      %4908 = vst.msk [vmem:[#allocation2 + $0x18] sm:$0xf] %vm4901, %v4770
      %4909 = vst.msk [vmem:[#allocation2 + $0x1c] sm:$0xf] %vm4901, %v4772
      %4910 = vst.msk [vmem:[#allocation2 + $0x20] sm:$0xf] %vm4901, %v4774
      %4911 = vst.msk [vmem:[#allocation2 + $0x24] sm:$0xf] %vm4901, %v4776
      %4912 = vst.msk [vmem:[#allocation2 + $0x28] sm:$0xf] %vm4901, %v4778
      %4913 = vst.msk [vmem:[#allocation2 + $0x2c] sm:$0xf] %vm4901, %v4780
      %4914 = vst.msk [vmem:[#allocation2 + $0x30] sm:$0xf] %vm4901, %v4782
      %4915 = vst.msk [vmem:[#allocation2 + $0x34] sm:$0xf] %vm4901, %v4784
      %4916 = vst.msk [vmem:[#allocation2 + $0x38] sm:$0xf] %vm4901, %v4786
      %4917 = vst.msk [vmem:[#allocation2 + $0x3c] sm:$0xf] %vm4901, %v4788
      %4918 = vst.msk [vmem:[#allocation2 + $0x40] sm:$0xf] %vm4901, %v4790
      %4919 = vst.msk [vmem:[#allocation2 + $0x44] sm:$0xf] %vm4901, %v4792
      %4920 = vst.msk [vmem:[#allocation2 + $0x48] sm:$0xf] %vm4901, %v4794
      %4921 = vst.msk [vmem:[#allocation2 + $0x4c] sm:$0xf] %vm4901, %v4796
      %4922 = vst.msk [vmem:[#allocation2 + $0x50] sm:$0xf] %vm4901, %v4798
      %4923 = vst.msk [vmem:[#allocation2 + $0x54] sm:$0xf] %vm4901, %v4800
      %4924 = vst.msk [vmem:[#allocation2 + $0x58] sm:$0xf] %vm4901, %v4802
      %4925 = vst.msk [vmem:[#allocation2 + $0x5c] sm:$0xf] %vm4901, %v4804
      %4926 = vst.msk [vmem:[#allocation2 + $0x60] sm:$0xf] %vm4901, %v4806
      %4927 = vst.msk [vmem:[#allocation2 + $0x64] sm:$0xf] %vm4901, %v4808
      %4928 = vst.msk [vmem:[#allocation2 + $0x68] sm:$0xf] %vm4901, %v4810
      %4929 = vst.msk [vmem:[#allocation2 + $0x6c] sm:$0xf] %vm4901, %v4812
      %4930 = vst.msk [vmem:[#allocation2 + $0x70] sm:$0xf] %vm4901, %v4814
      %4931 = vst.msk [vmem:[#allocation2 + $0x74] sm:$0xf] %vm4901, %v4816
      %4932 = vst.msk [vmem:[#allocation2 + $0x78] sm:$0xf] %vm4901, %v4818
      %4933 = vst.msk [vmem:[#allocation2 + $0x7c] sm:$0xf] %vm4901, %v4820
      %4934 = vst.msk [vmem:[#allocation2 + $0x80] sm:$0xf] %vm4901, %v4822
      %4935 = vst.msk [vmem:[#allocation2 + $0x84] sm:$0xf] %vm4901, %v4824
      %4936 = vst.msk [vmem:[#allocation2 + $0x88] sm:$0xf] %vm4901, %v4826
      %4937 = vst.msk [vmem:[#allocation2 + $0x8c] sm:$0xf] %vm4901, %v4828
      %4938 = vst.msk [vmem:[#allocation2 + $0x90] sm:$0xf] %vm4901, %v4830
      %4939 = vst.msk [vmem:[#allocation2 + $0x94] sm:$0xf] %vm4901, %v4832
      %4940 = vst.msk [vmem:[#allocation2 + $0x98] sm:$0xf] %vm4901, %v4834
      %4941 = vst.msk [vmem:[#allocation2 + $0x9c] sm:$0xf] %vm4901, %v4836
      %4942 = vst.msk [vmem:[#allocation2 + $0xa0] sm:$0xf] %vm4901, %v4838
      %4943 = vst.msk [vmem:[#allocation2 + $0xa4] sm:$0xf] %vm4901, %v4840
      %4944 = vst.msk [vmem:[#allocation2 + $0xa8] sm:$0xf] %vm4901, %v4842
      %4945 = vst.msk [vmem:[#allocation2 + $0xac] sm:$0xf] %vm4901, %v4844
      %4946 = vst.msk [vmem:[#allocation2 + $0xb0] sm:$0xf] %vm4901, %v4846
      %4947 = vst.msk [vmem:[#allocation2 + $0xb4] sm:$0xf] %vm4901, %v4848
      %4948 = vst.msk [vmem:[#allocation2 + $0xb8] sm:$0xf] %vm4901, %v4850
      %4949 = vst.msk [vmem:[#allocation2 + $0xbc] sm:$0xf] %vm4901, %v4852
      %v4950 = vrot.slane %v4171, 4
      %v4951 = vshrl.u32 %v3733, 16
      %v4953 = vrot.slane %v4951, 7
      %v4954 = vor.u32 %v4953, %v4753
      %v4955 = vsel %vm284, %v4950, %v4954
      %v4956 = vrot.slane %v4953, 4
      %v4958 = vshrl.u32 %v3734, 16
      %v4960 = vrot.slane %v4958, 7
      %v4961 = vshll.u32 %v3734, 16
      %v4963 = vor.u32 %v4960, %v4961
      %v4964 = vsel %vm284, %v4956, %v4963
      %v4965 = vrot.slane %v4960, 4
      %v4967 = vshrl.u32 %v3735, 16
      %v4969 = vrot.slane %v4967, 7
      %v4970 = vshll.u32 %v3735, 16
      %v4972 = vor.u32 %v4969, %v4970
      %v4973 = vsel %vm284, %v4965, %v4972
      %4974 = vrot.lane.b32.xlu0 %v3779, 24
      %v4975 = vpop.permute.xlu0 %4974
      %4976 = vrot.lane.b32.xlu0 %v3788, 24
      %v4977 = vpop.permute.xlu0 %4976
      %4978 = vrot.lane.b32.xlu0 %v3797, 24
      %v4979 = vpop.permute.xlu0 %4978
      %4980 = vrot.lane.b32.xlu0 %v3806, 24
      %v4981 = vpop.permute.xlu0 %4980
      %4982 = vrot.lane.b32.xlu0 %v3815, 24
      %v4983 = vpop.permute.xlu0 %4982
      %4984 = vrot.lane.b32.xlu0 %v3824, 24
      %v4985 = vpop.permute.xlu0 %4984
      %4986 = vrot.lane.b32.xlu0 %v3833, 24
      %v4987 = vpop.permute.xlu0 %4986
      %4988 = vrot.lane.b32.xlu0 %v3842, 24
      %v4989 = vpop.permute.xlu0 %4988
      %4990 = vrot.lane.b32.xlu0 %v3851, 24
      %v4991 = vpop.permute.xlu0 %4990
      %4992 = vrot.lane.b32.xlu0 %v3860, 24
      %v4993 = vpop.permute.xlu0 %4992
      %4994 = vrot.lane.b32.xlu0 %v3869, 24
      %v4995 = vpop.permute.xlu0 %4994
      %4996 = vrot.lane.b32.xlu0 %v3878, 24
      %v4997 = vpop.permute.xlu0 %4996
      %4998 = vrot.lane.b32.xlu0 %v3887, 24
      %v4999 = vpop.permute.xlu0 %4998
      %5000 = vrot.lane.b32.xlu0 %v3896, 24
      %v5001 = vpop.permute.xlu0 %5000
      %5002 = vrot.lane.b32.xlu0 %v3905, 24
      %v5003 = vpop.permute.xlu0 %5002
      %5004 = vrot.lane.b32.xlu0 %v3914, 24
      %v5005 = vpop.permute.xlu0 %5004
      %5006 = vrot.lane.b32.xlu0 %v3923, 24
      %v5007 = vpop.permute.xlu0 %5006
      %5008 = vrot.lane.b32.xlu0 %v3932, 24
      %v5009 = vpop.permute.xlu0 %5008
      %5010 = vrot.lane.b32.xlu0 %v3941, 24
      %v5011 = vpop.permute.xlu0 %5010
      %5012 = vrot.lane.b32.xlu0 %v3950, 24
      %v5013 = vpop.permute.xlu0 %5012
      %5014 = vrot.lane.b32.xlu0 %v3959, 24
      %v5015 = vpop.permute.xlu0 %5014
      %5016 = vrot.lane.b32.xlu0 %v3968, 24
      %v5017 = vpop.permute.xlu0 %5016
      %5018 = vrot.lane.b32.xlu0 %v3977, 24
      %v5019 = vpop.permute.xlu0 %5018
      %5020 = vrot.lane.b32.xlu0 %v3986, 24
      %v5021 = vpop.permute.xlu0 %5020
      %5022 = vrot.lane.b32.xlu0 %v3995, 24
      %v5023 = vpop.permute.xlu0 %5022
      %5024 = vrot.lane.b32.xlu0 %v4004, 24
      %v5025 = vpop.permute.xlu0 %5024
      %5026 = vrot.lane.b32.xlu0 %v4013, 24
      %v5027 = vpop.permute.xlu0 %5026
      %5028 = vrot.lane.b32.xlu0 %v4022, 24
      %v5029 = vpop.permute.xlu0 %5028
      %5030 = vrot.lane.b32.xlu0 %v4031, 24
      %v5031 = vpop.permute.xlu0 %5030
      %5032 = vrot.lane.b32.xlu0 %v4040, 24
      %v5033 = vpop.permute.xlu0 %5032
      %5034 = vrot.lane.b32.xlu0 %v4049, 24
      %v5035 = vpop.permute.xlu0 %5034
      %5036 = vrot.lane.b32.xlu0 %v4058, 24
      %v5037 = vpop.permute.xlu0 %5036
      %5038 = vrot.lane.b32.xlu0 %v4067, 24
      %v5039 = vpop.permute.xlu0 %5038
      %5040 = vrot.lane.b32.xlu0 %v4076, 24
      %v5041 = vpop.permute.xlu0 %5040
      %5042 = vrot.lane.b32.xlu0 %v4085, 24
      %v5043 = vpop.permute.xlu0 %5042
      %5044 = vrot.lane.b32.xlu0 %v4094, 24
      %v5045 = vpop.permute.xlu0 %5044
      %5046 = vrot.lane.b32.xlu0 %v4103, 24
      %v5047 = vpop.permute.xlu0 %5046
      %5048 = vrot.lane.b32.xlu0 %v4112, 24
      %v5049 = vpop.permute.xlu0 %5048
      %5050 = vrot.lane.b32.xlu0 %v4121, 24
      %v5051 = vpop.permute.xlu0 %5050
      %5052 = vrot.lane.b32.xlu0 %v4130, 24
      %v5053 = vpop.permute.xlu0 %5052
      %5054 = vrot.lane.b32.xlu0 %v4139, 24
      %v5055 = vpop.permute.xlu0 %5054
      %5056 = vrot.lane.b32.xlu0 %v4148, 24
      %v5057 = vpop.permute.xlu0 %5056
      %5058 = vrot.lane.b32.xlu0 %v4157, 24
      %v5059 = vpop.permute.xlu0 %5058
      %5060 = vrot.lane.b32.xlu0 %v4166, 24
      %v5061 = vpop.permute.xlu0 %5060
      %5062 = vrot.lane.b32.xlu0 %v4175, 24
      %v5063 = vpop.permute.xlu0 %5062
      %5064 = vrot.lane.b32.xlu0 %v4955, 24
      %v5065 = vpop.permute.xlu0 %5064
      %5066 = vrot.lane.b32.xlu0 %v4964, 24
      %v5067 = vpop.permute.xlu0 %5066
      %5068 = vrot.lane.b32.xlu0 %v4973, 24
      %v5069 = vpop.permute.xlu0 %5068
      %vm5118 = vcmask 257216
      %5119 = vst.msk [vmem:[#allocation2] sm:$0xf] %vm5118, %v4975
      %5120 = vst.msk [vmem:[#allocation2 + $0x4] sm:$0xf] %vm5118, %v4977
      %5121 = vst.msk [vmem:[#allocation2 + $0x8] sm:$0xf] %vm5118, %v4979
      %5122 = vst.msk [vmem:[#allocation2 + $0xc] sm:$0xf] %vm5118, %v4981
      %5123 = vst.msk [vmem:[#allocation2 + $0x10] sm:$0xf] %vm5118, %v4983
      %5124 = vst.msk [vmem:[#allocation2 + $0x14] sm:$0xf] %vm5118, %v4985
      %5125 = vst.msk [vmem:[#allocation2 + $0x18] sm:$0xf] %vm5118, %v4987
      %5126 = vst.msk [vmem:[#allocation2 + $0x1c] sm:$0xf] %vm5118, %v4989
      %5127 = vst.msk [vmem:[#allocation2 + $0x20] sm:$0xf] %vm5118, %v4991
      %5128 = vst.msk [vmem:[#allocation2 + $0x24] sm:$0xf] %vm5118, %v4993
      %5129 = vst.msk [vmem:[#allocation2 + $0x28] sm:$0xf] %vm5118, %v4995
      %5130 = vst.msk [vmem:[#allocation2 + $0x2c] sm:$0xf] %vm5118, %v4997
      %5131 = vst.msk [vmem:[#allocation2 + $0x30] sm:$0xf] %vm5118, %v4999
      %5132 = vst.msk [vmem:[#allocation2 + $0x34] sm:$0xf] %vm5118, %v5001
      %5133 = vst.msk [vmem:[#allocation2 + $0x38] sm:$0xf] %vm5118, %v5003
      %5134 = vst.msk [vmem:[#allocation2 + $0x3c] sm:$0xf] %vm5118, %v5005
      %5135 = vst.msk [vmem:[#allocation2 + $0x40] sm:$0xf] %vm5118, %v5007
      %5136 = vst.msk [vmem:[#allocation2 + $0x44] sm:$0xf] %vm5118, %v5009
      %5137 = vst.msk [vmem:[#allocation2 + $0x48] sm:$0xf] %vm5118, %v5011
      %5138 = vst.msk [vmem:[#allocation2 + $0x4c] sm:$0xf] %vm5118, %v5013
      %5139 = vst.msk [vmem:[#allocation2 + $0x50] sm:$0xf] %vm5118, %v5015
      %5140 = vst.msk [vmem:[#allocation2 + $0x54] sm:$0xf] %vm5118, %v5017
      %5141 = vst.msk [vmem:[#allocation2 + $0x58] sm:$0xf] %vm5118, %v5019
      %5142 = vst.msk [vmem:[#allocation2 + $0x5c] sm:$0xf] %vm5118, %v5021
      %5143 = vst.msk [vmem:[#allocation2 + $0x60] sm:$0xf] %vm5118, %v5023
      %5144 = vst.msk [vmem:[#allocation2 + $0x64] sm:$0xf] %vm5118, %v5025
      %5145 = vst.msk [vmem:[#allocation2 + $0x68] sm:$0xf] %vm5118, %v5027
      %5146 = vst.msk [vmem:[#allocation2 + $0x6c] sm:$0xf] %vm5118, %v5029
      %5147 = vst.msk [vmem:[#allocation2 + $0x70] sm:$0xf] %vm5118, %v5031
      %5148 = vst.msk [vmem:[#allocation2 + $0x74] sm:$0xf] %vm5118, %v5033
      %5149 = vst.msk [vmem:[#allocation2 + $0x78] sm:$0xf] %vm5118, %v5035
      %5150 = vst.msk [vmem:[#allocation2 + $0x7c] sm:$0xf] %vm5118, %v5037
      %5151 = vst.msk [vmem:[#allocation2 + $0x80] sm:$0xf] %vm5118, %v5039
      %5152 = vst.msk [vmem:[#allocation2 + $0x84] sm:$0xf] %vm5118, %v5041
      %5153 = vst.msk [vmem:[#allocation2 + $0x88] sm:$0xf] %vm5118, %v5043
      %5154 = vst.msk [vmem:[#allocation2 + $0x8c] sm:$0xf] %vm5118, %v5045
      %5155 = vst.msk [vmem:[#allocation2 + $0x90] sm:$0xf] %vm5118, %v5047
      %5156 = vst.msk [vmem:[#allocation2 + $0x94] sm:$0xf] %vm5118, %v5049
      %5157 = vst.msk [vmem:[#allocation2 + $0x98] sm:$0xf] %vm5118, %v5051
      %5158 = vst.msk [vmem:[#allocation2 + $0x9c] sm:$0xf] %vm5118, %v5053
      %5159 = vst.msk [vmem:[#allocation2 + $0xa0] sm:$0xf] %vm5118, %v5055
      %5160 = vst.msk [vmem:[#allocation2 + $0xa4] sm:$0xf] %vm5118, %v5057
      %5161 = vst.msk [vmem:[#allocation2 + $0xa8] sm:$0xf] %vm5118, %v5059
      %5162 = vst.msk [vmem:[#allocation2 + $0xac] sm:$0xf] %vm5118, %v5061
      %5163 = vst.msk [vmem:[#allocation2 + $0xb0] sm:$0xf] %vm5118, %v5063
      %5164 = vst.msk [vmem:[#allocation2 + $0xb4] sm:$0xf] %vm5118, %v5065
      %5165 = vst.msk [vmem:[#allocation2 + $0xb8] sm:$0xf] %vm5118, %v5067
      %5166 = vst.msk [vmem:[#allocation2 + $0xbc] sm:$0xf] %vm5118, %v5069
      %5170 = vrot.lane.b32.xlu0 %v3688, 32
      %v5171 = vpop.permute.xlu0 %5170
      %5172 = vrot.lane.b32.xlu0 %v3689, 32
      %v5173 = vpop.permute.xlu0 %5172
      %5174 = vrot.lane.b32.xlu0 %v3690, 32
      %v5175 = vpop.permute.xlu0 %5174
      %5176 = vrot.lane.b32.xlu0 %v3691, 32
      %v5177 = vpop.permute.xlu0 %5176
      %5178 = vrot.lane.b32.xlu0 %v3692, 32
      %v5179 = vpop.permute.xlu0 %5178
      %5180 = vrot.lane.b32.xlu0 %v3693, 32
      %v5181 = vpop.permute.xlu0 %5180
      %5182 = vrot.lane.b32.xlu0 %v3694, 32
      %v5183 = vpop.permute.xlu0 %5182
      %5184 = vrot.lane.b32.xlu0 %v3695, 32
      %v5185 = vpop.permute.xlu0 %5184
      %5186 = vrot.lane.b32.xlu0 %v3696, 32
      %v5187 = vpop.permute.xlu0 %5186
      %5188 = vrot.lane.b32.xlu0 %v3697, 32
      %v5189 = vpop.permute.xlu0 %5188
      %5190 = vrot.lane.b32.xlu0 %v3698, 32
      %v5191 = vpop.permute.xlu0 %5190
      %5192 = vrot.lane.b32.xlu0 %v3699, 32
      %v5193 = vpop.permute.xlu0 %5192
      %5194 = vrot.lane.b32.xlu0 %v3700, 32
      %v5195 = vpop.permute.xlu0 %5194
      %5196 = vrot.lane.b32.xlu0 %v3701, 32
      %v5197 = vpop.permute.xlu0 %5196
      %5198 = vrot.lane.b32.xlu0 %v3702, 32
      %v5199 = vpop.permute.xlu0 %5198
      %5200 = vrot.lane.b32.xlu0 %v3703, 32
      %v5201 = vpop.permute.xlu0 %5200
      %5202 = vrot.lane.b32.xlu0 %v3704, 32
      %v5203 = vpop.permute.xlu0 %5202
      %5204 = vrot.lane.b32.xlu0 %v3705, 32
      %v5205 = vpop.permute.xlu0 %5204
      %5206 = vrot.lane.b32.xlu0 %v3706, 32
      %v5207 = vpop.permute.xlu0 %5206
      %5208 = vrot.lane.b32.xlu0 %v3707, 32
      %v5209 = vpop.permute.xlu0 %5208
      %5210 = vrot.lane.b32.xlu0 %v3708, 32
      %v5211 = vpop.permute.xlu0 %5210
      %5212 = vrot.lane.b32.xlu0 %v3709, 32
      %v5213 = vpop.permute.xlu0 %5212
      %5214 = vrot.lane.b32.xlu0 %v3710, 32
      %v5215 = vpop.permute.xlu0 %5214
      %5216 = vrot.lane.b32.xlu0 %v3711, 32
      %v5217 = vpop.permute.xlu0 %5216
      %5218 = vrot.lane.b32.xlu0 %v3712, 32
      %v5219 = vpop.permute.xlu0 %5218
      %5220 = vrot.lane.b32.xlu0 %v3713, 32
      %v5221 = vpop.permute.xlu0 %5220
      %5222 = vrot.lane.b32.xlu0 %v3714, 32
      %v5223 = vpop.permute.xlu0 %5222
      %5224 = vrot.lane.b32.xlu0 %v3715, 32
      %v5225 = vpop.permute.xlu0 %5224
      %5226 = vrot.lane.b32.xlu0 %v3716, 32
      %v5227 = vpop.permute.xlu0 %5226
      %5228 = vrot.lane.b32.xlu0 %v3717, 32
      %v5229 = vpop.permute.xlu0 %5228
      %5230 = vrot.lane.b32.xlu0 %v3718, 32
      %v5231 = vpop.permute.xlu0 %5230
      %5232 = vrot.lane.b32.xlu0 %v3719, 32
      %v5233 = vpop.permute.xlu0 %5232
      %5234 = vrot.lane.b32.xlu0 %v3720, 32
      %v5235 = vpop.permute.xlu0 %5234
      %5236 = vrot.lane.b32.xlu0 %v3721, 32
      %v5237 = vpop.permute.xlu0 %5236
      %5238 = vrot.lane.b32.xlu0 %v3722, 32
      %v5239 = vpop.permute.xlu0 %5238
      %5240 = vrot.lane.b32.xlu0 %v3723, 32
      %v5241 = vpop.permute.xlu0 %5240
      %5242 = vrot.lane.b32.xlu0 %v3724, 32
      %v5243 = vpop.permute.xlu0 %5242
      %5244 = vrot.lane.b32.xlu0 %v3725, 32
      %v5245 = vpop.permute.xlu0 %5244
      %5246 = vrot.lane.b32.xlu0 %v3726, 32
      %v5247 = vpop.permute.xlu0 %5246
      %5248 = vrot.lane.b32.xlu0 %v3727, 32
      %v5249 = vpop.permute.xlu0 %5248
      %5250 = vrot.lane.b32.xlu0 %v3728, 32
      %v5251 = vpop.permute.xlu0 %5250
      %5252 = vrot.lane.b32.xlu0 %v3729, 32
      %v5253 = vpop.permute.xlu0 %5252
      %5254 = vrot.lane.b32.xlu0 %v3730, 32
      %v5255 = vpop.permute.xlu0 %5254
      %5256 = vrot.lane.b32.xlu0 %v3731, 32
      %v5257 = vpop.permute.xlu0 %5256
      %5258 = vrot.lane.b32.xlu0 %v3732, 32
      %v5259 = vpop.permute.xlu0 %5258
      %5260 = vrot.lane.b32.xlu0 %v3733, 32
      %v5261 = vpop.permute.xlu0 %5260
      %5262 = vrot.lane.b32.xlu0 %v3734, 32
      %v5263 = vpop.permute.xlu0 %5262
      %5264 = vrot.lane.b32.xlu0 %v3735, 32
      %v5265 = vpop.permute.xlu0 %5264
      %vm5314 = vcmask 322816
      %5315 = vst.msk [vmem:[#allocation2] sm:$0xf] %vm5314, %v5171
      %5316 = vst.msk [vmem:[#allocation2 + $0x4] sm:$0xf] %vm5314, %v5173
      %5317 = vst.msk [vmem:[#allocation2 + $0x8] sm:$0xf] %vm5314, %v5175
      %5318 = vst.msk [vmem:[#allocation2 + $0xc] sm:$0xf] %vm5314, %v5177
      %5319 = vst.msk [vmem:[#allocation2 + $0x10] sm:$0xf] %vm5314, %v5179
      %5320 = vst.msk [vmem:[#allocation2 + $0x14] sm:$0xf] %vm5314, %v5181
      %5321 = vst.msk [vmem:[#allocation2 + $0x18] sm:$0xf] %vm5314, %v5183
      %5322 = vst.msk [vmem:[#allocation2 + $0x1c] sm:$0xf] %vm5314, %v5185
      %5323 = vst.msk [vmem:[#allocation2 + $0x20] sm:$0xf] %vm5314, %v5187
      %5324 = vst.msk [vmem:[#allocation2 + $0x24] sm:$0xf] %vm5314, %v5189
      %5325 = vst.msk [vmem:[#allocation2 + $0x28] sm:$0xf] %vm5314, %v5191
      %5326 = vst.msk [vmem:[#allocation2 + $0x2c] sm:$0xf] %vm5314, %v5193
      %5327 = vst.msk [vmem:[#allocation2 + $0x30] sm:$0xf] %vm5314, %v5195
      %5328 = vst.msk [vmem:[#allocation2 + $0x34] sm:$0xf] %vm5314, %v5197
      %5329 = vst.msk [vmem:[#allocation2 + $0x38] sm:$0xf] %vm5314, %v5199
      %5330 = vst.msk [vmem:[#allocation2 + $0x3c] sm:$0xf] %vm5314, %v5201
      %5331 = vst.msk [vmem:[#allocation2 + $0x40] sm:$0xf] %vm5314, %v5203
      %5332 = vst.msk [vmem:[#allocation2 + $0x44] sm:$0xf] %vm5314, %v5205
      %5333 = vst.msk [vmem:[#allocation2 + $0x48] sm:$0xf] %vm5314, %v5207
      %5334 = vst.msk [vmem:[#allocation2 + $0x4c] sm:$0xf] %vm5314, %v5209
      %5335 = vst.msk [vmem:[#allocation2 + $0x50] sm:$0xf] %vm5314, %v5211
      %5336 = vst.msk [vmem:[#allocation2 + $0x54] sm:$0xf] %vm5314, %v5213
      %5337 = vst.msk [vmem:[#allocation2 + $0x58] sm:$0xf] %vm5314, %v5215
      %5338 = vst.msk [vmem:[#allocation2 + $0x5c] sm:$0xf] %vm5314, %v5217
      %5339 = vst.msk [vmem:[#allocation2 + $0x60] sm:$0xf] %vm5314, %v5219
      %5340 = vst.msk [vmem:[#allocation2 + $0x64] sm:$0xf] %vm5314, %v5221
      %5341 = vst.msk [vmem:[#allocation2 + $0x68] sm:$0xf] %vm5314, %v5223
      %5342 = vst.msk [vmem:[#allocation2 + $0x6c] sm:$0xf] %vm5314, %v5225
      %5343 = vst.msk [vmem:[#allocation2 + $0x70] sm:$0xf] %vm5314, %v5227
      %5344 = vst.msk [vmem:[#allocation2 + $0x74] sm:$0xf] %vm5314, %v5229
      %5345 = vst.msk [vmem:[#allocation2 + $0x78] sm:$0xf] %vm5314, %v5231
      %5346 = vst.msk [vmem:[#allocation2 + $0x7c] sm:$0xf] %vm5314, %v5233
      %5347 = vst.msk [vmem:[#allocation2 + $0x80] sm:$0xf] %vm5314, %v5235
      %5348 = vst.msk [vmem:[#allocation2 + $0x84] sm:$0xf] %vm5314, %v5237
      %5349 = vst.msk [vmem:[#allocation2 + $0x88] sm:$0xf] %vm5314, %v5239
      %5350 = vst.msk [vmem:[#allocation2 + $0x8c] sm:$0xf] %vm5314, %v5241
      %5351 = vst.msk [vmem:[#allocation2 + $0x90] sm:$0xf] %vm5314, %v5243
      %5352 = vst.msk [vmem:[#allocation2 + $0x94] sm:$0xf] %vm5314, %v5245
      %5353 = vst.msk [vmem:[#allocation2 + $0x98] sm:$0xf] %vm5314, %v5247
      %5354 = vst.msk [vmem:[#allocation2 + $0x9c] sm:$0xf] %vm5314, %v5249
      %5355 = vst.msk [vmem:[#allocation2 + $0xa0] sm:$0xf] %vm5314, %v5251
      %5356 = vst.msk [vmem:[#allocation2 + $0xa4] sm:$0xf] %vm5314, %v5253
      %5357 = vst.msk [vmem:[#allocation2 + $0xa8] sm:$0xf] %vm5314, %v5255
      %5358 = vst.msk [vmem:[#allocation2 + $0xac] sm:$0xf] %vm5314, %v5257
      %5359 = vst.msk [vmem:[#allocation2 + $0xb0] sm:$0xf] %vm5314, %v5259
      %5360 = vst.msk [vmem:[#allocation2 + $0xb4] sm:$0xf] %vm5314, %v5261
      %5361 = vst.msk [vmem:[#allocation2 + $0xb8] sm:$0xf] %vm5314, %v5263
      %5362 = vst.msk [vmem:[#allocation2 + $0xbc] sm:$0xf] %vm5314, %v5265
      %v5363 = vrot.slane %v4951, 4
      %v5364 = vor.u32 %v5363, %v4755
      %v5365 = vrot.slane %v5364, 4
      %v5366 = vrot.slane %v4961, 5
      %v5367 = vsel %vm1061, %v5365, %v5366
      %v5368 = vrot.slane %v4958, 4
      %v5369 = vor.u32 %v5368, %v5366
      %v5370 = vrot.slane %v5369, 4
      %v5371 = vrot.slane %v4970, 5
      %v5372 = vsel %vm1061, %v5370, %v5371
      %v5373 = vrot.slane %v4967, 4
      %v5374 = vor.u32 %v5373, %v5371
      %v5375 = vrot.slane %v5374, 4
      %v5377 = vshll.u32 %v3736, 16
      %v5379 = vrot.slane %v5377, 5
      %v5380 = vsel %vm1061, %v5375, %v5379
      %5381 = vrot.lane.b32.xlu0 %v4533, 40
      %v5382 = vpop.permute.xlu0 %5381
      %5383 = vrot.lane.b32.xlu0 %v4538, 40
      %v5384 = vpop.permute.xlu0 %5383
      %5385 = vrot.lane.b32.xlu0 %v4543, 40
      %v5386 = vpop.permute.xlu0 %5385
      %5387 = vrot.lane.b32.xlu0 %v4548, 40
      %v5388 = vpop.permute.xlu0 %5387
      %5389 = vrot.lane.b32.xlu0 %v4553, 40
      %v5390 = vpop.permute.xlu0 %5389
      %5391 = vrot.lane.b32.xlu0 %v4558, 40
      %v5392 = vpop.permute.xlu0 %5391
      %5393 = vrot.lane.b32.xlu0 %v4563, 40
      %v5394 = vpop.permute.xlu0 %5393
      %5395 = vrot.lane.b32.xlu0 %v4568, 40
      %v5396 = vpop.permute.xlu0 %5395
      %5397 = vrot.lane.b32.xlu0 %v4573, 40
      %v5398 = vpop.permute.xlu0 %5397
      %5399 = vrot.lane.b32.xlu0 %v4578, 40
      %v5400 = vpop.permute.xlu0 %5399
      %5401 = vrot.lane.b32.xlu0 %v4583, 40
      %v5402 = vpop.permute.xlu0 %5401
      %5403 = vrot.lane.b32.xlu0 %v4588, 40
      %v5404 = vpop.permute.xlu0 %5403
      %5405 = vrot.lane.b32.xlu0 %v4593, 40
      %v5406 = vpop.permute.xlu0 %5405
      %5407 = vrot.lane.b32.xlu0 %v4598, 40
      %v5408 = vpop.permute.xlu0 %5407
      %5409 = vrot.lane.b32.xlu0 %v4603, 40
      %v5410 = vpop.permute.xlu0 %5409
      %5411 = vrot.lane.b32.xlu0 %v4608, 40
      %v5412 = vpop.permute.xlu0 %5411
      %5413 = vrot.lane.b32.xlu0 %v4613, 40
      %v5414 = vpop.permute.xlu0 %5413
      %5415 = vrot.lane.b32.xlu0 %v4618, 40
      %v5416 = vpop.permute.xlu0 %5415
      %5417 = vrot.lane.b32.xlu0 %v4623, 40
      %v5418 = vpop.permute.xlu0 %5417
      %5419 = vrot.lane.b32.xlu0 %v4628, 40
      %v5420 = vpop.permute.xlu0 %5419
      %5421 = vrot.lane.b32.xlu0 %v4633, 40
      %v5422 = vpop.permute.xlu0 %5421
      %5423 = vrot.lane.b32.xlu0 %v4638, 40
      %v5424 = vpop.permute.xlu0 %5423
      %5425 = vrot.lane.b32.xlu0 %v4643, 40
      %v5426 = vpop.permute.xlu0 %5425
      %5427 = vrot.lane.b32.xlu0 %v4648, 40
      %v5428 = vpop.permute.xlu0 %5427
      %5429 = vrot.lane.b32.xlu0 %v4653, 40
      %v5430 = vpop.permute.xlu0 %5429
      %5431 = vrot.lane.b32.xlu0 %v4658, 40
      %v5432 = vpop.permute.xlu0 %5431
      %5433 = vrot.lane.b32.xlu0 %v4663, 40
      %v5434 = vpop.permute.xlu0 %5433
      %5435 = vrot.lane.b32.xlu0 %v4668, 40
      %v5436 = vpop.permute.xlu0 %5435
      %5437 = vrot.lane.b32.xlu0 %v4673, 40
      %v5438 = vpop.permute.xlu0 %5437
      %5439 = vrot.lane.b32.xlu0 %v4678, 40
      %v5440 = vpop.permute.xlu0 %5439
      %5441 = vrot.lane.b32.xlu0 %v4683, 40
      %v5442 = vpop.permute.xlu0 %5441
      %5443 = vrot.lane.b32.xlu0 %v4688, 40
      %v5444 = vpop.permute.xlu0 %5443
      %5445 = vrot.lane.b32.xlu0 %v4693, 40
      %v5446 = vpop.permute.xlu0 %5445
      %5447 = vrot.lane.b32.xlu0 %v4698, 40
      %v5448 = vpop.permute.xlu0 %5447
      %5449 = vrot.lane.b32.xlu0 %v4703, 40
      %v5450 = vpop.permute.xlu0 %5449
      %5451 = vrot.lane.b32.xlu0 %v4708, 40
      %v5452 = vpop.permute.xlu0 %5451
      %5453 = vrot.lane.b32.xlu0 %v4713, 40
      %v5454 = vpop.permute.xlu0 %5453
      %5455 = vrot.lane.b32.xlu0 %v4718, 40
      %v5456 = vpop.permute.xlu0 %5455
      %5457 = vrot.lane.b32.xlu0 %v4723, 40
      %v5458 = vpop.permute.xlu0 %5457
      %5459 = vrot.lane.b32.xlu0 %v4728, 40
      %v5460 = vpop.permute.xlu0 %5459
      %5461 = vrot.lane.b32.xlu0 %v4733, 40
      %v5462 = vpop.permute.xlu0 %5461
      %5463 = vrot.lane.b32.xlu0 %v4738, 40
      %v5464 = vpop.permute.xlu0 %5463
      %5465 = vrot.lane.b32.xlu0 %v4743, 40
      %v5466 = vpop.permute.xlu0 %5465
      %5467 = vrot.lane.b32.xlu0 %v4748, 40
      %v5468 = vpop.permute.xlu0 %5467
      %5469 = vrot.lane.b32.xlu0 %v4756, 40
      %v5470 = vpop.permute.xlu0 %5469
      %5471 = vrot.lane.b32.xlu0 %v5367, 40
      %v5472 = vpop.permute.xlu0 %5471
      %5473 = vrot.lane.b32.xlu0 %v5372, 40
      %v5474 = vpop.permute.xlu0 %5473
      %5475 = vrot.lane.b32.xlu0 %v5380, 40
      %v5476 = vpop.permute.xlu0 %5475
      %vm5525 = vcmask 388416
      %5526 = vst.msk [vmem:[#allocation2] sm:$0xf] %vm5525, %v5382
      %5527 = vst.msk [vmem:[#allocation2 + $0x4] sm:$0xf] %vm5525, %v5384
      %5528 = vst.msk [vmem:[#allocation2 + $0x8] sm:$0xf] %vm5525, %v5386
      %5529 = vst.msk [vmem:[#allocation2 + $0xc] sm:$0xf] %vm5525, %v5388
      %5530 = vst.msk [vmem:[#allocation2 + $0x10] sm:$0xf] %vm5525, %v5390
      %5531 = vst.msk [vmem:[#allocation2 + $0x14] sm:$0xf] %vm5525, %v5392
      %5532 = vst.msk [vmem:[#allocation2 + $0x18] sm:$0xf] %vm5525, %v5394
      %5533 = vst.msk [vmem:[#allocation2 + $0x1c] sm:$0xf] %vm5525, %v5396
      %5534 = vst.msk [vmem:[#allocation2 + $0x20] sm:$0xf] %vm5525, %v5398
      %5535 = vst.msk [vmem:[#allocation2 + $0x24] sm:$0xf] %vm5525, %v5400
      %5536 = vst.msk [vmem:[#allocation2 + $0x28] sm:$0xf] %vm5525, %v5402
      %5537 = vst.msk [vmem:[#allocation2 + $0x2c] sm:$0xf] %vm5525, %v5404
      %5538 = vst.msk [vmem:[#allocation2 + $0x30] sm:$0xf] %vm5525, %v5406
      %5539 = vst.msk [vmem:[#allocation2 + $0x34] sm:$0xf] %vm5525, %v5408
      %5540 = vst.msk [vmem:[#allocation2 + $0x38] sm:$0xf] %vm5525, %v5410
      %5541 = vst.msk [vmem:[#allocation2 + $0x3c] sm:$0xf] %vm5525, %v5412
      %5542 = vst.msk [vmem:[#allocation2 + $0x40] sm:$0xf] %vm5525, %v5414
      %5543 = vst.msk [vmem:[#allocation2 + $0x44] sm:$0xf] %vm5525, %v5416
      %5544 = vst.msk [vmem:[#allocation2 + $0x48] sm:$0xf] %vm5525, %v5418
      %5545 = vst.msk [vmem:[#allocation2 + $0x4c] sm:$0xf] %vm5525, %v5420
      %5546 = vst.msk [vmem:[#allocation2 + $0x50] sm:$0xf] %vm5525, %v5422
      %5547 = vst.msk [vmem:[#allocation2 + $0x54] sm:$0xf] %vm5525, %v5424
      %5548 = vst.msk [vmem:[#allocation2 + $0x58] sm:$0xf] %vm5525, %v5426
      %5549 = vst.msk [vmem:[#allocation2 + $0x5c] sm:$0xf] %vm5525, %v5428
      %5550 = vst.msk [vmem:[#allocation2 + $0x60] sm:$0xf] %vm5525, %v5430
      %5551 = vst.msk [vmem:[#allocation2 + $0x64] sm:$0xf] %vm5525, %v5432
      %5552 = vst.msk [vmem:[#allocation2 + $0x68] sm:$0xf] %vm5525, %v5434
      %5553 = vst.msk [vmem:[#allocation2 + $0x6c] sm:$0xf] %vm5525, %v5436
      %5554 = vst.msk [vmem:[#allocation2 + $0x70] sm:$0xf] %vm5525, %v5438
      %5555 = vst.msk [vmem:[#allocation2 + $0x74] sm:$0xf] %vm5525, %v5440
      %5556 = vst.msk [vmem:[#allocation2 + $0x78] sm:$0xf] %vm5525, %v5442
      %5557 = vst.msk [vmem:[#allocation2 + $0x7c] sm:$0xf] %vm5525, %v5444
      %5558 = vst.msk [vmem:[#allocation2 + $0x80] sm:$0xf] %vm5525, %v5446
      %5559 = vst.msk [vmem:[#allocation2 + $0x84] sm:$0xf] %vm5525, %v5448
      %5560 = vst.msk [vmem:[#allocation2 + $0x88] sm:$0xf] %vm5525, %v5450
      %5561 = vst.msk [vmem:[#allocation2 + $0x8c] sm:$0xf] %vm5525, %v5452
      %5562 = vst.msk [vmem:[#allocation2 + $0x90] sm:$0xf] %vm5525, %v5454
      %5563 = vst.msk [vmem:[#allocation2 + $0x94] sm:$0xf] %vm5525, %v5456
      %5564 = vst.msk [vmem:[#allocation2 + $0x98] sm:$0xf] %vm5525, %v5458
      %5565 = vst.msk [vmem:[#allocation2 + $0x9c] sm:$0xf] %vm5525, %v5460
      %5566 = vst.msk [vmem:[#allocation2 + $0xa0] sm:$0xf] %vm5525, %v5462
      %5567 = vst.msk [vmem:[#allocation2 + $0xa4] sm:$0xf] %vm5525, %v5464
      %5568 = vst.msk [vmem:[#allocation2 + $0xa8] sm:$0xf] %vm5525, %v5466
      %5569 = vst.msk [vmem:[#allocation2 + $0xac] sm:$0xf] %vm5525, %v5468
      %5570 = vst.msk [vmem:[#allocation2 + $0xb0] sm:$0xf] %vm5525, %v5470
      %5571 = vst.msk [vmem:[#allocation2 + $0xb4] sm:$0xf] %vm5525, %v5472
      %5572 = vst.msk [vmem:[#allocation2 + $0xb8] sm:$0xf] %vm5525, %v5474
      %5573 = vst.msk [vmem:[#allocation2 + $0xbc] sm:$0xf] %vm5525, %v5476
      %v5574 = vrot.slane %v4969, 4
      %v5575 = vshrl.u32 %v3736, 16
      %v5577 = vrot.slane %v5575, 7
      %v5578 = vor.u32 %v5577, %v5377
      %v5579 = vsel %vm284, %v5574, %v5578
      %v5580 = vrot.slane %v5577, 4
      %v5582 = vshrl.u32 %v3737, 16
      %v5584 = vrot.slane %v5582, 7
      %v5585 = vshll.u32 %v3737, 16
      %v5587 = vor.u32 %v5584, %v5585
      %v5588 = vsel %vm284, %v5580, %v5587
      %v5589 = vrot.slane %v5584, 4
      %v5591 = vshrl.u32 %v3738, 16
      %v5593 = vrot.slane %v5591, 7
      %v5594 = vshll.u32 %v3738, 16
      %v5596 = vor.u32 %v5593, %v5594
      %v5597 = vsel %vm284, %v5589, %v5596
      %5598 = vrot.lane.b32.xlu0 %v3806, 48
      %v5599 = vpop.permute.xlu0 %5598
      %5600 = vrot.lane.b32.xlu0 %v3815, 48
      %v5601 = vpop.permute.xlu0 %5600
      %5602 = vrot.lane.b32.xlu0 %v3824, 48
      %v5603 = vpop.permute.xlu0 %5602
      %5604 = vrot.lane.b32.xlu0 %v3833, 48
      %v5605 = vpop.permute.xlu0 %5604
      %5606 = vrot.lane.b32.xlu0 %v3842, 48
      %v5607 = vpop.permute.xlu0 %5606
      %5608 = vrot.lane.b32.xlu0 %v3851, 48
      %v5609 = vpop.permute.xlu0 %5608
      %5610 = vrot.lane.b32.xlu0 %v3860, 48
      %v5611 = vpop.permute.xlu0 %5610
      %5612 = vrot.lane.b32.xlu0 %v3869, 48
      %v5613 = vpop.permute.xlu0 %5612
      %5614 = vrot.lane.b32.xlu0 %v3878, 48
      %v5615 = vpop.permute.xlu0 %5614
      %5616 = vrot.lane.b32.xlu0 %v3887, 48
      %v5617 = vpop.permute.xlu0 %5616
      %5618 = vrot.lane.b32.xlu0 %v3896, 48
      %v5619 = vpop.permute.xlu0 %5618
      %5620 = vrot.lane.b32.xlu0 %v3905, 48
      %v5621 = vpop.permute.xlu0 %5620
      %5622 = vrot.lane.b32.xlu0 %v3914, 48
      %v5623 = vpop.permute.xlu0 %5622
      %5624 = vrot.lane.b32.xlu0 %v3923, 48
      %v5625 = vpop.permute.xlu0 %5624
      %5626 = vrot.lane.b32.xlu0 %v3932, 48
      %v5627 = vpop.permute.xlu0 %5626
      %5628 = vrot.lane.b32.xlu0 %v3941, 48
      %v5629 = vpop.permute.xlu0 %5628
      %5630 = vrot.lane.b32.xlu0 %v3950, 48
      %v5631 = vpop.permute.xlu0 %5630
      %5632 = vrot.lane.b32.xlu0 %v3959, 48
      %v5633 = vpop.permute.xlu0 %5632
      %5634 = vrot.lane.b32.xlu0 %v3968, 48
      %v5635 = vpop.permute.xlu0 %5634
      %5636 = vrot.lane.b32.xlu0 %v3977, 48
      %v5637 = vpop.permute.xlu0 %5636
      %5638 = vrot.lane.b32.xlu0 %v3986, 48
      %v5639 = vpop.permute.xlu0 %5638
      %5640 = vrot.lane.b32.xlu0 %v3995, 48
      %v5641 = vpop.permute.xlu0 %5640
      %5642 = vrot.lane.b32.xlu0 %v4004, 48
      %v5643 = vpop.permute.xlu0 %5642
      %5644 = vrot.lane.b32.xlu0 %v4013, 48
      %v5645 = vpop.permute.xlu0 %5644
      %5646 = vrot.lane.b32.xlu0 %v4022, 48
      %v5647 = vpop.permute.xlu0 %5646
      %5648 = vrot.lane.b32.xlu0 %v4031, 48
      %v5649 = vpop.permute.xlu0 %5648
      %5650 = vrot.lane.b32.xlu0 %v4040, 48
      %v5651 = vpop.permute.xlu0 %5650
      %5652 = vrot.lane.b32.xlu0 %v4049, 48
      %v5653 = vpop.permute.xlu0 %5652
      %5654 = vrot.lane.b32.xlu0 %v4058, 48
      %v5655 = vpop.permute.xlu0 %5654
      %5656 = vrot.lane.b32.xlu0 %v4067, 48
      %v5657 = vpop.permute.xlu0 %5656
      %5658 = vrot.lane.b32.xlu0 %v4076, 48
      %v5659 = vpop.permute.xlu0 %5658
      %5660 = vrot.lane.b32.xlu0 %v4085, 48
      %v5661 = vpop.permute.xlu0 %5660
      %5662 = vrot.lane.b32.xlu0 %v4094, 48
      %v5663 = vpop.permute.xlu0 %5662
      %5664 = vrot.lane.b32.xlu0 %v4103, 48
      %v5665 = vpop.permute.xlu0 %5664
      %5666 = vrot.lane.b32.xlu0 %v4112, 48
      %v5667 = vpop.permute.xlu0 %5666
      %5668 = vrot.lane.b32.xlu0 %v4121, 48
      %v5669 = vpop.permute.xlu0 %5668
      %5670 = vrot.lane.b32.xlu0 %v4130, 48
      %v5671 = vpop.permute.xlu0 %5670
      %5672 = vrot.lane.b32.xlu0 %v4139, 48
      %v5673 = vpop.permute.xlu0 %5672
      %5674 = vrot.lane.b32.xlu0 %v4148, 48
      %v5675 = vpop.permute.xlu0 %5674
      %5676 = vrot.lane.b32.xlu0 %v4157, 48
      %v5677 = vpop.permute.xlu0 %5676
      %5678 = vrot.lane.b32.xlu0 %v4166, 48
      %v5679 = vpop.permute.xlu0 %5678
      %5680 = vrot.lane.b32.xlu0 %v4175, 48
      %v5681 = vpop.permute.xlu0 %5680
      %5682 = vrot.lane.b32.xlu0 %v4955, 48
      %v5683 = vpop.permute.xlu0 %5682
      %5684 = vrot.lane.b32.xlu0 %v4964, 48
      %v5685 = vpop.permute.xlu0 %5684
      %5686 = vrot.lane.b32.xlu0 %v4973, 48
      %v5687 = vpop.permute.xlu0 %5686
      %5688 = vrot.lane.b32.xlu0 %v5579, 48
      %v5689 = vpop.permute.xlu0 %5688
      %5690 = vrot.lane.b32.xlu0 %v5588, 48
      %v5691 = vpop.permute.xlu0 %5690
      %5692 = vrot.lane.b32.xlu0 %v5597, 48
      %v5693 = vpop.permute.xlu0 %5692
      %vm5742 = vcmask 454016
      %5743 = vst.msk [vmem:[#allocation2] sm:$0xf] %vm5742, %v5599
      %5744 = vst.msk [vmem:[#allocation2 + $0x4] sm:$0xf] %vm5742, %v5601
      %5745 = vst.msk [vmem:[#allocation2 + $0x8] sm:$0xf] %vm5742, %v5603
      %5746 = vst.msk [vmem:[#allocation2 + $0xc] sm:$0xf] %vm5742, %v5605
      %5747 = vst.msk [vmem:[#allocation2 + $0x10] sm:$0xf] %vm5742, %v5607
      %5748 = vst.msk [vmem:[#allocation2 + $0x14] sm:$0xf] %vm5742, %v5609
      %5749 = vst.msk [vmem:[#allocation2 + $0x18] sm:$0xf] %vm5742, %v5611
      %5750 = vst.msk [vmem:[#allocation2 + $0x1c] sm:$0xf] %vm5742, %v5613
      %5751 = vst.msk [vmem:[#allocation2 + $0x20] sm:$0xf] %vm5742, %v5615
      %5752 = vst.msk [vmem:[#allocation2 + $0x24] sm:$0xf] %vm5742, %v5617
      %5753 = vst.msk [vmem:[#allocation2 + $0x28] sm:$0xf] %vm5742, %v5619
      %5754 = vst.msk [vmem:[#allocation2 + $0x2c] sm:$0xf] %vm5742, %v5621
      %5755 = vst.msk [vmem:[#allocation2 + $0x30] sm:$0xf] %vm5742, %v5623
      %5756 = vst.msk [vmem:[#allocation2 + $0x34] sm:$0xf] %vm5742, %v5625
      %5757 = vst.msk [vmem:[#allocation2 + $0x38] sm:$0xf] %vm5742, %v5627
      %5758 = vst.msk [vmem:[#allocation2 + $0x3c] sm:$0xf] %vm5742, %v5629
      %5759 = vst.msk [vmem:[#allocation2 + $0x40] sm:$0xf] %vm5742, %v5631
      %5760 = vst.msk [vmem:[#allocation2 + $0x44] sm:$0xf] %vm5742, %v5633
      %5761 = vst.msk [vmem:[#allocation2 + $0x48] sm:$0xf] %vm5742, %v5635
      %5762 = vst.msk [vmem:[#allocation2 + $0x4c] sm:$0xf] %vm5742, %v5637
      %5763 = vst.msk [vmem:[#allocation2 + $0x50] sm:$0xf] %vm5742, %v5639
      %5764 = vst.msk [vmem:[#allocation2 + $0x54] sm:$0xf] %vm5742, %v5641
      %5765 = vst.msk [vmem:[#allocation2 + $0x58] sm:$0xf] %vm5742, %v5643
      %5766 = vst.msk [vmem:[#allocation2 + $0x5c] sm:$0xf] %vm5742, %v5645
      %5767 = vst.msk [vmem:[#allocation2 + $0x60] sm:$0xf] %vm5742, %v5647
      %5768 = vst.msk [vmem:[#allocation2 + $0x64] sm:$0xf] %vm5742, %v5649
      %5769 = vst.msk [vmem:[#allocation2 + $0x68] sm:$0xf] %vm5742, %v5651
      %5770 = vst.msk [vmem:[#allocation2 + $0x6c] sm:$0xf] %vm5742, %v5653
      %5771 = vst.msk [vmem:[#allocation2 + $0x70] sm:$0xf] %vm5742, %v5655
      %5772 = vst.msk [vmem:[#allocation2 + $0x74] sm:$0xf] %vm5742, %v5657
      %5773 = vst.msk [vmem:[#allocation2 + $0x78] sm:$0xf] %vm5742, %v5659
      %5774 = vst.msk [vmem:[#allocation2 + $0x7c] sm:$0xf] %vm5742, %v5661
      %5775 = vst.msk [vmem:[#allocation2 + $0x80] sm:$0xf] %vm5742, %v5663
      %5776 = vst.msk [vmem:[#allocation2 + $0x84] sm:$0xf] %vm5742, %v5665
      %5777 = vst.msk [vmem:[#allocation2 + $0x88] sm:$0xf] %vm5742, %v5667
      %5778 = vst.msk [vmem:[#allocation2 + $0x8c] sm:$0xf] %vm5742, %v5669
      %5779 = vst.msk [vmem:[#allocation2 + $0x90] sm:$0xf] %vm5742, %v5671
      %5780 = vst.msk [vmem:[#allocation2 + $0x94] sm:$0xf] %vm5742, %v5673
      %5781 = vst.msk [vmem:[#allocation2 + $0x98] sm:$0xf] %vm5742, %v5675
      %5782 = vst.msk [vmem:[#allocation2 + $0x9c] sm:$0xf] %vm5742, %v5677
      %5783 = vst.msk [vmem:[#allocation2 + $0xa0] sm:$0xf] %vm5742, %v5679
      %5784 = vst.msk [vmem:[#allocation2 + $0xa4] sm:$0xf] %vm5742, %v5681
      %5785 = vst.msk [vmem:[#allocation2 + $0xa8] sm:$0xf] %vm5742, %v5683
      %5786 = vst.msk [vmem:[#allocation2 + $0xac] sm:$0xf] %vm5742, %v5685
      %5787 = vst.msk [vmem:[#allocation2 + $0xb0] sm:$0xf] %vm5742, %v5687
      %5788 = vst.msk [vmem:[#allocation2 + $0xb4] sm:$0xf] %vm5742, %v5689
      %5789 = vst.msk [vmem:[#allocation2 + $0xb8] sm:$0xf] %vm5742, %v5691
      %5790 = vst.msk [vmem:[#allocation2 + $0xbc] sm:$0xf] %vm5742, %v5693
      %5794 = vrot.lane.b32.xlu0 %v3691, 56
      %v5795 = vpop.permute.xlu0 %5794
      %5796 = vrot.lane.b32.xlu0 %v3692, 56
      %v5797 = vpop.permute.xlu0 %5796
      %5798 = vrot.lane.b32.xlu0 %v3693, 56
      %v5799 = vpop.permute.xlu0 %5798
      %5800 = vrot.lane.b32.xlu0 %v3694, 56
      %v5801 = vpop.permute.xlu0 %5800
      %5802 = vrot.lane.b32.xlu0 %v3695, 56
      %v5803 = vpop.permute.xlu0 %5802
      %5804 = vrot.lane.b32.xlu0 %v3696, 56
      %v5805 = vpop.permute.xlu0 %5804
      %5806 = vrot.lane.b32.xlu0 %v3697, 56
      %v5807 = vpop.permute.xlu0 %5806
      %5808 = vrot.lane.b32.xlu0 %v3698, 56
      %v5809 = vpop.permute.xlu0 %5808
      %5810 = vrot.lane.b32.xlu0 %v3699, 56
      %v5811 = vpop.permute.xlu0 %5810
      %5812 = vrot.lane.b32.xlu0 %v3700, 56
      %v5813 = vpop.permute.xlu0 %5812
      %5814 = vrot.lane.b32.xlu0 %v3701, 56
      %v5815 = vpop.permute.xlu0 %5814
      %5816 = vrot.lane.b32.xlu0 %v3702, 56
      %v5817 = vpop.permute.xlu0 %5816
      %5818 = vrot.lane.b32.xlu0 %v3703, 56
      %v5819 = vpop.permute.xlu0 %5818
      %5820 = vrot.lane.b32.xlu0 %v3704, 56
      %v5821 = vpop.permute.xlu0 %5820
      %5822 = vrot.lane.b32.xlu0 %v3705, 56
      %v5823 = vpop.permute.xlu0 %5822
      %5824 = vrot.lane.b32.xlu0 %v3706, 56
      %v5825 = vpop.permute.xlu0 %5824
      %5826 = vrot.lane.b32.xlu0 %v3707, 56
      %v5827 = vpop.permute.xlu0 %5826
      %5828 = vrot.lane.b32.xlu0 %v3708, 56
      %v5829 = vpop.permute.xlu0 %5828
      %5830 = vrot.lane.b32.xlu0 %v3709, 56
      %v5831 = vpop.permute.xlu0 %5830
      %5832 = vrot.lane.b32.xlu0 %v3710, 56
      %v5833 = vpop.permute.xlu0 %5832
      %5834 = vrot.lane.b32.xlu0 %v3711, 56
      %v5835 = vpop.permute.xlu0 %5834
      %5836 = vrot.lane.b32.xlu0 %v3712, 56
      %v5837 = vpop.permute.xlu0 %5836
      %5838 = vrot.lane.b32.xlu0 %v3713, 56
      %v5839 = vpop.permute.xlu0 %5838
      %5840 = vrot.lane.b32.xlu0 %v3714, 56
      %v5841 = vpop.permute.xlu0 %5840
      %5842 = vrot.lane.b32.xlu0 %v3715, 56
      %v5843 = vpop.permute.xlu0 %5842
      %5844 = vrot.lane.b32.xlu0 %v3716, 56
      %v5845 = vpop.permute.xlu0 %5844
      %5846 = vrot.lane.b32.xlu0 %v3717, 56
      %v5847 = vpop.permute.xlu0 %5846
      %5848 = vrot.lane.b32.xlu0 %v3718, 56
      %v5849 = vpop.permute.xlu0 %5848
      %5850 = vrot.lane.b32.xlu0 %v3719, 56
      %v5851 = vpop.permute.xlu0 %5850
      %5852 = vrot.lane.b32.xlu0 %v3720, 56
      %v5853 = vpop.permute.xlu0 %5852
      %5854 = vrot.lane.b32.xlu0 %v3721, 56
      %v5855 = vpop.permute.xlu0 %5854
      %5856 = vrot.lane.b32.xlu0 %v3722, 56
      %v5857 = vpop.permute.xlu0 %5856
      %5858 = vrot.lane.b32.xlu0 %v3723, 56
      %v5859 = vpop.permute.xlu0 %5858
      %5860 = vrot.lane.b32.xlu0 %v3724, 56
      %v5861 = vpop.permute.xlu0 %5860
      %5862 = vrot.lane.b32.xlu0 %v3725, 56
      %v5863 = vpop.permute.xlu0 %5862
      %5864 = vrot.lane.b32.xlu0 %v3726, 56
      %v5865 = vpop.permute.xlu0 %5864
      %5866 = vrot.lane.b32.xlu0 %v3727, 56
      %v5867 = vpop.permute.xlu0 %5866
      %5868 = vrot.lane.b32.xlu0 %v3728, 56
      %v5869 = vpop.permute.xlu0 %5868
      %5870 = vrot.lane.b32.xlu0 %v3729, 56
      %v5871 = vpop.permute.xlu0 %5870
      %5872 = vrot.lane.b32.xlu0 %v3730, 56
      %v5873 = vpop.permute.xlu0 %5872
      %5874 = vrot.lane.b32.xlu0 %v3731, 56
      %v5875 = vpop.permute.xlu0 %5874
      %5876 = vrot.lane.b32.xlu0 %v3732, 56
      %v5877 = vpop.permute.xlu0 %5876
      %5878 = vrot.lane.b32.xlu0 %v3733, 56
      %v5879 = vpop.permute.xlu0 %5878
      %5880 = vrot.lane.b32.xlu0 %v3734, 56
      %v5881 = vpop.permute.xlu0 %5880
      %5882 = vrot.lane.b32.xlu0 %v3735, 56
      %v5883 = vpop.permute.xlu0 %5882
      %5884 = vrot.lane.b32.xlu0 %v3736, 56
      %v5885 = vpop.permute.xlu0 %5884
      %5886 = vrot.lane.b32.xlu0 %v3737, 56
      %v5887 = vpop.permute.xlu0 %5886
      %5888 = vrot.lane.b32.xlu0 %v3738, 56
      %v5889 = vpop.permute.xlu0 %5888
      %vm5938 = vcmask 519616
      %5939 = vst.msk [vmem:[#allocation2] sm:$0xf] %vm5938, %v5795
      %5940 = vst.msk [vmem:[#allocation2 + $0x4] sm:$0xf] %vm5938, %v5797
      %5941 = vst.msk [vmem:[#allocation2 + $0x8] sm:$0xf] %vm5938, %v5799
      %5942 = vst.msk [vmem:[#allocation2 + $0xc] sm:$0xf] %vm5938, %v5801
      %5943 = vst.msk [vmem:[#allocation2 + $0x10] sm:$0xf] %vm5938, %v5803
      %5944 = vst.msk [vmem:[#allocation2 + $0x14] sm:$0xf] %vm5938, %v5805
      %5945 = vst.msk [vmem:[#allocation2 + $0x18] sm:$0xf] %vm5938, %v5807
      %5946 = vst.msk [vmem:[#allocation2 + $0x1c] sm:$0xf] %vm5938, %v5809
      %5947 = vst.msk [vmem:[#allocation2 + $0x20] sm:$0xf] %vm5938, %v5811
      %5948 = vst.msk [vmem:[#allocation2 + $0x24] sm:$0xf] %vm5938, %v5813
      %5949 = vst.msk [vmem:[#allocation2 + $0x28] sm:$0xf] %vm5938, %v5815
      %5950 = vst.msk [vmem:[#allocation2 + $0x2c] sm:$0xf] %vm5938, %v5817
      %5951 = vst.msk [vmem:[#allocation2 + $0x30] sm:$0xf] %vm5938, %v5819
      %5952 = vst.msk [vmem:[#allocation2 + $0x34] sm:$0xf] %vm5938, %v5821
      %5953 = vst.msk [vmem:[#allocation2 + $0x38] sm:$0xf] %vm5938, %v5823
      %5954 = vst.msk [vmem:[#allocation2 + $0x3c] sm:$0xf] %vm5938, %v5825
      %5955 = vst.msk [vmem:[#allocation2 + $0x40] sm:$0xf] %vm5938, %v5827
      %5956 = vst.msk [vmem:[#allocation2 + $0x44] sm:$0xf] %vm5938, %v5829
      %5957 = vst.msk [vmem:[#allocation2 + $0x48] sm:$0xf] %vm5938, %v5831
      %5958 = vst.msk [vmem:[#allocation2 + $0x4c] sm:$0xf] %vm5938, %v5833
      %5959 = vst.msk [vmem:[#allocation2 + $0x50] sm:$0xf] %vm5938, %v5835
      %5960 = vst.msk [vmem:[#allocation2 + $0x54] sm:$0xf] %vm5938, %v5837
      %5961 = vst.msk [vmem:[#allocation2 + $0x58] sm:$0xf] %vm5938, %v5839
      %5962 = vst.msk [vmem:[#allocation2 + $0x5c] sm:$0xf] %vm5938, %v5841
      %5963 = vst.msk [vmem:[#allocation2 + $0x60] sm:$0xf] %vm5938, %v5843
      %5964 = vst.msk [vmem:[#allocation2 + $0x64] sm:$0xf] %vm5938, %v5845
      %5965 = vst.msk [vmem:[#allocation2 + $0x68] sm:$0xf] %vm5938, %v5847
      %5966 = vst.msk [vmem:[#allocation2 + $0x6c] sm:$0xf] %vm5938, %v5849
      %5967 = vst.msk [vmem:[#allocation2 + $0x70] sm:$0xf] %vm5938, %v5851
      %5968 = vst.msk [vmem:[#allocation2 + $0x74] sm:$0xf] %vm5938, %v5853
      %5969 = vst.msk [vmem:[#allocation2 + $0x78] sm:$0xf] %vm5938, %v5855
      %5970 = vst.msk [vmem:[#allocation2 + $0x7c] sm:$0xf] %vm5938, %v5857
      %5971 = vst.msk [vmem:[#allocation2 + $0x80] sm:$0xf] %vm5938, %v5859
      %5972 = vst.msk [vmem:[#allocation2 + $0x84] sm:$0xf] %vm5938, %v5861
      %5973 = vst.msk [vmem:[#allocation2 + $0x88] sm:$0xf] %vm5938, %v5863
      %5974 = vst.msk [vmem:[#allocation2 + $0x8c] sm:$0xf] %vm5938, %v5865
      %5975 = vst.msk [vmem:[#allocation2 + $0x90] sm:$0xf] %vm5938, %v5867
      %5976 = vst.msk [vmem:[#allocation2 + $0x94] sm:$0xf] %vm5938, %v5869
      %5977 = vst.msk [vmem:[#allocation2 + $0x98] sm:$0xf] %vm5938, %v5871
      %5978 = vst.msk [vmem:[#allocation2 + $0x9c] sm:$0xf] %vm5938, %v5873
      %5979 = vst.msk [vmem:[#allocation2 + $0xa0] sm:$0xf] %vm5938, %v5875
      %5980 = vst.msk [vmem:[#allocation2 + $0xa4] sm:$0xf] %vm5938, %v5877
      %5981 = vst.msk [vmem:[#allocation2 + $0xa8] sm:$0xf] %vm5938, %v5879
      %5982 = vst.msk [vmem:[#allocation2 + $0xac] sm:$0xf] %vm5938, %v5881
      %5983 = vst.msk [vmem:[#allocation2 + $0xb0] sm:$0xf] %vm5938, %v5883
      %5984 = vst.msk [vmem:[#allocation2 + $0xb4] sm:$0xf] %vm5938, %v5885
      %5985 = vst.msk [vmem:[#allocation2 + $0xb8] sm:$0xf] %vm5938, %v5887
      %5986 = vst.msk [vmem:[#allocation2 + $0xbc] sm:$0xf] %vm5938, %v5889
      %v5987 = vrot.slane %v5575, 4
      %v5988 = vor.u32 %v5987, %v5379
      %v5989 = vrot.slane %v5988, 4
      %v5990 = vrot.slane %v5585, 5
      %v5991 = vsel %vm1061, %v5989, %v5990
      %v5992 = vrot.slane %v5582, 4
      %v5993 = vor.u32 %v5992, %v5990
      %v5994 = vrot.slane %v5993, 4
      %v5995 = vrot.slane %v5594, 5
      %v5996 = vsel %vm1061, %v5994, %v5995
      %v5997 = vrot.slane %v5591, 4
      %v5998 = vor.u32 %v5997, %v5995
      %v5999 = vrot.slane %v5998, 4
      %v6001 = vshll.u32 %v3739, 16
      %v6003 = vrot.slane %v6001, 5
      %v6004 = vsel %vm1061, %v5999, %v6003
      %6005 = vrot.lane.b32.xlu0 %v4548, 64
      %v6006 = vpop.permute.xlu0 %6005
      %6007 = vrot.lane.b32.xlu0 %v4553, 64
      %v6008 = vpop.permute.xlu0 %6007
      %6009 = vrot.lane.b32.xlu0 %v4558, 64
      %v6010 = vpop.permute.xlu0 %6009
      %6011 = vrot.lane.b32.xlu0 %v4563, 64
      %v6012 = vpop.permute.xlu0 %6011
      %6013 = vrot.lane.b32.xlu0 %v4568, 64
      %v6014 = vpop.permute.xlu0 %6013
      %6015 = vrot.lane.b32.xlu0 %v4573, 64
      %v6016 = vpop.permute.xlu0 %6015
      %6017 = vrot.lane.b32.xlu0 %v4578, 64
      %v6018 = vpop.permute.xlu0 %6017
      %6019 = vrot.lane.b32.xlu0 %v4583, 64
      %v6020 = vpop.permute.xlu0 %6019
      %6021 = vrot.lane.b32.xlu0 %v4588, 64
      %v6022 = vpop.permute.xlu0 %6021
      %6023 = vrot.lane.b32.xlu0 %v4593, 64
      %v6024 = vpop.permute.xlu0 %6023
      %6025 = vrot.lane.b32.xlu0 %v4598, 64
      %v6026 = vpop.permute.xlu0 %6025
      %6027 = vrot.lane.b32.xlu0 %v4603, 64
      %v6028 = vpop.permute.xlu0 %6027
      %6029 = vrot.lane.b32.xlu0 %v4608, 64
      %v6030 = vpop.permute.xlu0 %6029
      %6031 = vrot.lane.b32.xlu0 %v4613, 64
      %v6032 = vpop.permute.xlu0 %6031
      %6033 = vrot.lane.b32.xlu0 %v4618, 64
      %v6034 = vpop.permute.xlu0 %6033
      %6035 = vrot.lane.b32.xlu0 %v4623, 64
      %v6036 = vpop.permute.xlu0 %6035
      %6037 = vrot.lane.b32.xlu0 %v4628, 64
      %v6038 = vpop.permute.xlu0 %6037
      %6039 = vrot.lane.b32.xlu0 %v4633, 64
      %v6040 = vpop.permute.xlu0 %6039
      %6041 = vrot.lane.b32.xlu0 %v4638, 64
      %v6042 = vpop.permute.xlu0 %6041
      %6043 = vrot.lane.b32.xlu0 %v4643, 64
      %v6044 = vpop.permute.xlu0 %6043
      %6045 = vrot.lane.b32.xlu0 %v4648, 64
      %v6046 = vpop.permute.xlu0 %6045
      %6047 = vrot.lane.b32.xlu0 %v4653, 64
      %v6048 = vpop.permute.xlu0 %6047
      %6049 = vrot.lane.b32.xlu0 %v4658, 64
      %v6050 = vpop.permute.xlu0 %6049
      %6051 = vrot.lane.b32.xlu0 %v4663, 64
      %v6052 = vpop.permute.xlu0 %6051
      %6053 = vrot.lane.b32.xlu0 %v4668, 64
      %v6054 = vpop.permute.xlu0 %6053
      %6055 = vrot.lane.b32.xlu0 %v4673, 64
      %v6056 = vpop.permute.xlu0 %6055
      %6057 = vrot.lane.b32.xlu0 %v4678, 64
      %v6058 = vpop.permute.xlu0 %6057
      %6059 = vrot.lane.b32.xlu0 %v4683, 64
      %v6060 = vpop.permute.xlu0 %6059
      %6061 = vrot.lane.b32.xlu0 %v4688, 64
      %v6062 = vpop.permute.xlu0 %6061
      %6063 = vrot.lane.b32.xlu0 %v4693, 64
      %v6064 = vpop.permute.xlu0 %6063
      %6065 = vrot.lane.b32.xlu0 %v4698, 64
      %v6066 = vpop.permute.xlu0 %6065
      %6067 = vrot.lane.b32.xlu0 %v4703, 64
      %v6068 = vpop.permute.xlu0 %6067
      %6069 = vrot.lane.b32.xlu0 %v4708, 64
      %v6070 = vpop.permute.xlu0 %6069
      %6071 = vrot.lane.b32.xlu0 %v4713, 64
      %v6072 = vpop.permute.xlu0 %6071
      %6073 = vrot.lane.b32.xlu0 %v4718, 64
      %v6074 = vpop.permute.xlu0 %6073
      %6075 = vrot.lane.b32.xlu0 %v4723, 64
      %v6076 = vpop.permute.xlu0 %6075
      %6077 = vrot.lane.b32.xlu0 %v4728, 64
      %v6078 = vpop.permute.xlu0 %6077
      %6079 = vrot.lane.b32.xlu0 %v4733, 64
      %v6080 = vpop.permute.xlu0 %6079
      %6081 = vrot.lane.b32.xlu0 %v4738, 64
      %v6082 = vpop.permute.xlu0 %6081
      %6083 = vrot.lane.b32.xlu0 %v4743, 64
      %v6084 = vpop.permute.xlu0 %6083
      %6085 = vrot.lane.b32.xlu0 %v4748, 64
      %v6086 = vpop.permute.xlu0 %6085
      %6087 = vrot.lane.b32.xlu0 %v4756, 64
      %v6088 = vpop.permute.xlu0 %6087
      %6089 = vrot.lane.b32.xlu0 %v5367, 64
      %v6090 = vpop.permute.xlu0 %6089
      %6091 = vrot.lane.b32.xlu0 %v5372, 64
      %v6092 = vpop.permute.xlu0 %6091
      %6093 = vrot.lane.b32.xlu0 %v5380, 64
      %v6094 = vpop.permute.xlu0 %6093
      %6095 = vrot.lane.b32.xlu0 %v5991, 64
      %v6096 = vpop.permute.xlu0 %6095
      %6097 = vrot.lane.b32.xlu0 %v5996, 64
      %v6098 = vpop.permute.xlu0 %6097
      %6099 = vrot.lane.b32.xlu0 %v6004, 64
      %v6100 = vpop.permute.xlu0 %6099
      %vm6149 = vcmask 585216
      %6150 = vst.msk [vmem:[#allocation2] sm:$0xf] %vm6149, %v6006
      %6151 = vst.msk [vmem:[#allocation2 + $0x4] sm:$0xf] %vm6149, %v6008
      %6152 = vst.msk [vmem:[#allocation2 + $0x8] sm:$0xf] %vm6149, %v6010
      %6153 = vst.msk [vmem:[#allocation2 + $0xc] sm:$0xf] %vm6149, %v6012
      %6154 = vst.msk [vmem:[#allocation2 + $0x10] sm:$0xf] %vm6149, %v6014
      %6155 = vst.msk [vmem:[#allocation2 + $0x14] sm:$0xf] %vm6149, %v6016
      %6156 = vst.msk [vmem:[#allocation2 + $0x18] sm:$0xf] %vm6149, %v6018
      %6157 = vst.msk [vmem:[#allocation2 + $0x1c] sm:$0xf] %vm6149, %v6020
      %6158 = vst.msk [vmem:[#allocation2 + $0x20] sm:$0xf] %vm6149, %v6022
      %6159 = vst.msk [vmem:[#allocation2 + $0x24] sm:$0xf] %vm6149, %v6024
      %6160 = vst.msk [vmem:[#allocation2 + $0x28] sm:$0xf] %vm6149, %v6026
      %6161 = vst.msk [vmem:[#allocation2 + $0x2c] sm:$0xf] %vm6149, %v6028
      %6162 = vst.msk [vmem:[#allocation2 + $0x30] sm:$0xf] %vm6149, %v6030
      %6163 = vst.msk [vmem:[#allocation2 + $0x34] sm:$0xf] %vm6149, %v6032
      %6164 = vst.msk [vmem:[#allocation2 + $0x38] sm:$0xf] %vm6149, %v6034
      %6165 = vst.msk [vmem:[#allocation2 + $0x3c] sm:$0xf] %vm6149, %v6036
      %6166 = vst.msk [vmem:[#allocation2 + $0x40] sm:$0xf] %vm6149, %v6038
      %6167 = vst.msk [vmem:[#allocation2 + $0x44] sm:$0xf] %vm6149, %v6040
      %6168 = vst.msk [vmem:[#allocation2 + $0x48] sm:$0xf] %vm6149, %v6042
      %6169 = vst.msk [vmem:[#allocation2 + $0x4c] sm:$0xf] %vm6149, %v6044
      %6170 = vst.msk [vmem:[#allocation2 + $0x50] sm:$0xf] %vm6149, %v6046
      %6171 = vst.msk [vmem:[#allocation2 + $0x54] sm:$0xf] %vm6149, %v6048
      %6172 = vst.msk [vmem:[#allocation2 + $0x58] sm:$0xf] %vm6149, %v6050
      %6173 = vst.msk [vmem:[#allocation2 + $0x5c] sm:$0xf] %vm6149, %v6052
      %6174 = vst.msk [vmem:[#allocation2 + $0x60] sm:$0xf] %vm6149, %v6054
      %6175 = vst.msk [vmem:[#allocation2 + $0x64] sm:$0xf] %vm6149, %v6056
      %6176 = vst.msk [vmem:[#allocation2 + $0x68] sm:$0xf] %vm6149, %v6058
      %6177 = vst.msk [vmem:[#allocation2 + $0x6c] sm:$0xf] %vm6149, %v6060
      %6178 = vst.msk [vmem:[#allocation2 + $0x70] sm:$0xf] %vm6149, %v6062
      %6179 = vst.msk [vmem:[#allocation2 + $0x74] sm:$0xf] %vm6149, %v6064
      %6180 = vst.msk [vmem:[#allocation2 + $0x78] sm:$0xf] %vm6149, %v6066
      %6181 = vst.msk [vmem:[#allocation2 + $0x7c] sm:$0xf] %vm6149, %v6068
      %6182 = vst.msk [vmem:[#allocation2 + $0x80] sm:$0xf] %vm6149, %v6070
      %6183 = vst.msk [vmem:[#allocation2 + $0x84] sm:$0xf] %vm6149, %v6072
      %6184 = vst.msk [vmem:[#allocation2 + $0x88] sm:$0xf] %vm6149, %v6074
      %6185 = vst.msk [vmem:[#allocation2 + $0x8c] sm:$0xf] %vm6149, %v6076
      %6186 = vst.msk [vmem:[#allocation2 + $0x90] sm:$0xf] %vm6149, %v6078
      %6187 = vst.msk [vmem:[#allocation2 + $0x94] sm:$0xf] %vm6149, %v6080
      %6188 = vst.msk [vmem:[#allocation2 + $0x98] sm:$0xf] %vm6149, %v6082
      %6189 = vst.msk [vmem:[#allocation2 + $0x9c] sm:$0xf] %vm6149, %v6084
      %6190 = vst.msk [vmem:[#allocation2 + $0xa0] sm:$0xf] %vm6149, %v6086
      %6191 = vst.msk [vmem:[#allocation2 + $0xa4] sm:$0xf] %vm6149, %v6088
      %6192 = vst.msk [vmem:[#allocation2 + $0xa8] sm:$0xf] %vm6149, %v6090
      %6193 = vst.msk [vmem:[#allocation2 + $0xac] sm:$0xf] %vm6149, %v6092
      %6194 = vst.msk [vmem:[#allocation2 + $0xb0] sm:$0xf] %vm6149, %v6094
      %6195 = vst.msk [vmem:[#allocation2 + $0xb4] sm:$0xf] %vm6149, %v6096
      %6196 = vst.msk [vmem:[#allocation2 + $0xb8] sm:$0xf] %vm6149, %v6098
      %6197 = vst.msk [vmem:[#allocation2 + $0xbc] sm:$0xf] %vm6149, %v6100
      %v6198 = vld [vmem:[#allocation2] sm:$0xf]
      %v6199 = vld [vmem:[#allocation2 + $0x4] sm:$0xf]
      %v6200 = vld [vmem:[#allocation2 + $0x8] sm:$0xf]
      %v6201 = vld [vmem:[#allocation2 + $0xc] sm:$0xf]
      %v6202 = vld [vmem:[#allocation2 + $0x10] sm:$0xf]
      %v6203 = vld [vmem:[#allocation2 + $0x14] sm:$0xf]
      %v6204 = vld [vmem:[#allocation2 + $0x18] sm:$0xf]
      %v6205 = vld [vmem:[#allocation2 + $0x1c] sm:$0xf]
      %v6206 = vld [vmem:[#allocation2 + $0x20] sm:$0xf]
      %v6207 = vld [vmem:[#allocation2 + $0x24] sm:$0xf]
      %v6208 = vld [vmem:[#allocation2 + $0x28] sm:$0xf]
      %v6209 = vld [vmem:[#allocation2 + $0x2c] sm:$0xf]
      %v6210 = vld [vmem:[#allocation2 + $0x30] sm:$0xf]
      %v6211 = vld [vmem:[#allocation2 + $0x34] sm:$0xf]
      %v6212 = vld [vmem:[#allocation2 + $0x38] sm:$0xf]
      %v6213 = vld [vmem:[#allocation2 + $0x3c] sm:$0xf]
      %v6214 = vld [vmem:[#allocation2 + $0x40] sm:$0xf]
      %v6215 = vld [vmem:[#allocation2 + $0x44] sm:$0xf]
      %v6216 = vld [vmem:[#allocation2 + $0x48] sm:$0xf]
      %v6217 = vld [vmem:[#allocation2 + $0x4c] sm:$0xf]
      %v6218 = vld [vmem:[#allocation2 + $0x50] sm:$0xf]
      %v6219 = vld [vmem:[#allocation2 + $0x54] sm:$0xf]
      %v6220 = vld [vmem:[#allocation2 + $0x58] sm:$0xf]
      %v6221 = vld [vmem:[#allocation2 + $0x5c] sm:$0xf]
      %v6222 = vld [vmem:[#allocation2 + $0x60] sm:$0xf]
      %v6223 = vld [vmem:[#allocation2 + $0x64] sm:$0xf]
      %v6224 = vld [vmem:[#allocation2 + $0x68] sm:$0xf]
      %v6225 = vld [vmem:[#allocation2 + $0x6c] sm:$0xf]
      %v6226 = vld [vmem:[#allocation2 + $0x70] sm:$0xf]
      %v6227 = vld [vmem:[#allocation2 + $0x74] sm:$0xf]
      %v6228 = vld [vmem:[#allocation2 + $0x78] sm:$0xf]
      %v6229 = vld [vmem:[#allocation2 + $0x7c] sm:$0xf]
      %v6230 = vld [vmem:[#allocation2 + $0x80] sm:$0xf]
      %v6231 = vld [vmem:[#allocation2 + $0x84] sm:$0xf]
      %v6232 = vld [vmem:[#allocation2 + $0x88] sm:$0xf]
      %v6233 = vld [vmem:[#allocation2 + $0x8c] sm:$0xf]
      %v6234 = vld [vmem:[#allocation2 + $0x90] sm:$0xf]
      %v6235 = vld [vmem:[#allocation2 + $0x94] sm:$0xf]
      %v6236 = vld [vmem:[#allocation2 + $0x98] sm:$0xf]
      %v6237 = vld [vmem:[#allocation2 + $0x9c] sm:$0xf]
      %v6238 = vld [vmem:[#allocation2 + $0xa0] sm:$0xf]
      %v6239 = vld [vmem:[#allocation2 + $0xa4] sm:$0xf]
      %v6240 = vld [vmem:[#allocation2 + $0xa8] sm:$0xf]
      %v6241 = vld [vmem:[#allocation2 + $0xac] sm:$0xf]
      %v6242 = vld [vmem:[#allocation2 + $0xb0] sm:$0xf]
      %v6243 = vld [vmem:[#allocation2 + $0xb4] sm:$0xf]
      %v6244 = vld [vmem:[#allocation2 + $0xb8] sm:$0xf]
      %v6245 = vld [vmem:[#allocation2 + $0xbc] sm:$0xf]
      %v6246 = vld [vmem:[%s3] sm:$0xf]
      %v6247 = vld [vmem:[%s3 + $0x4] sm:$0xf]
      %v6248 = vld [vmem:[%s3 + $0x8] sm:$0xf]
      %v6249 = vld [vmem:[%s3 + $0xc] sm:$0xf]
      %v6250 = vld [vmem:[%s3 + $0x10] sm:$0xf]
      %v6251 = vld [vmem:[%s3 + $0x14] sm:$0xf]
      %v6252 = vld [vmem:[%s3 + $0x18] sm:$0xf]
      %v6253 = vld [vmem:[%s3 + $0x1c] sm:$0xf]
      %v6254 = vld [vmem:[%s3 + $0x20] sm:$0xf]
      %v6255 = vld [vmem:[%s4] sm:$0x1]
      %v6257 = vlaneseq
      %v6258 = vshrl.u32 %v6257, 7
      %v6259 = vsub.s32 0, %v6258
      %v6260 = vrot.slane %v6255, %v6259
      %v6310 = vunpack.c.l.b16 %v6198
      %v6311 = vunpack.c.l.b16 %v6199
      %v6312 = vunpack.c.l.b16 %v6200
      %v6313 = vunpack.c.l.b16 %v6201
      %v6314 = vunpack.c.l.b16 %v6202
      %v6315 = vunpack.c.l.b16 %v6203
      %v6316 = vunpack.c.l.b16 %v6204
      %v6317 = vunpack.c.l.b16 %v6205
      %v6318 = vunpack.c.l.b16 %v6206
      %v6319 = vunpack.c.l.b16 %v6207
      %v6320 = vunpack.c.l.b16 %v6208
      %v6321 = vunpack.c.l.b16 %v6209
      %v6322 = vunpack.c.l.b16 %v6210
      %v6323 = vunpack.c.l.b16 %v6211
      %v6324 = vunpack.c.l.b16 %v6212
      %v6325 = vunpack.c.l.b16 %v6213
      %v6326 = vunpack.c.l.b16 %v6214
      %v6327 = vunpack.c.l.b16 %v6215
      %v6328 = vunpack.c.l.b16 %v6216
      %v6329 = vunpack.c.l.b16 %v6217
      %v6330 = vunpack.c.l.b16 %v6218
      %v6331 = vunpack.c.l.b16 %v6219
      %v6332 = vunpack.c.l.b16 %v6220
      %v6333 = vunpack.c.l.b16 %v6221
      %v6334 = vunpack.c.l.b16 %v6222
      %v6335 = vunpack.c.l.b16 %v6223
      %v6336 = vunpack.c.l.b16 %v6224
      %v6337 = vunpack.c.l.b16 %v6225
      %v6338 = vunpack.c.l.b16 %v6226
      %v6339 = vunpack.c.l.b16 %v6227
      %v6340 = vunpack.c.l.b16 %v6228
      %v6341 = vunpack.c.l.b16 %v6229
      %v6342 = vunpack.c.l.b16 %v6230
      %v6343 = vunpack.c.l.b16 %v6231
      %v6344 = vunpack.c.l.b16 %v6232
      %v6345 = vunpack.c.l.b16 %v6233
      %v6346 = vunpack.c.l.b16 %v6234
      %v6347 = vunpack.c.l.b16 %v6235
      %v6348 = vunpack.c.l.b16 %v6236
      %v6349 = vunpack.c.l.b16 %v6237
      %v6350 = vunpack.c.l.b16 %v6238
      %v6351 = vunpack.c.l.b16 %v6239
      %v6352 = vunpack.c.l.b16 %v6240
      %v6353 = vunpack.c.l.b16 %v6241
      %v6354 = vunpack.c.l.b16 %v6242
      %v6355 = vunpack.c.l.b16 %v6243
      %v6356 = vunpack.c.l.b16 %v6244
      %v6357 = vunpack.c.l.b16 %v6245
      %v6358 = vpack.c.b16 %v6311, %v6310
      %v6359 = vpack.c.b16 %v6313, %v6312
      %v6360 = vpack.c.b16 %v6315, %v6314
      %v6361 = vpack.c.b16 %v6317, %v6316
      %v6362 = vpack.c.b16 %v6319, %v6318
      %v6363 = vpack.c.b16 %v6321, %v6320
      %v6364 = vpack.c.b16 %v6323, %v6322
      %v6365 = vpack.c.b16 %v6325, %v6324
      %v6366 = vpack.c.b16 %v6327, %v6326
      %v6367 = vpack.c.b16 %v6329, %v6328
      %v6368 = vpack.c.b16 %v6331, %v6330
      %v6369 = vpack.c.b16 %v6333, %v6332
      %v6370 = vpack.c.b16 %v6335, %v6334
      %v6371 = vpack.c.b16 %v6337, %v6336
      %v6372 = vpack.c.b16 %v6339, %v6338
      %v6373 = vpack.c.b16 %v6341, %v6340
      %v6374 = vpack.c.b16 %v6343, %v6342
      %v6375 = vpack.c.b16 %v6345, %v6344
      %v6376 = vpack.c.b16 %v6347, %v6346
      %v6377 = vpack.c.b16 %v6349, %v6348
      %v6378 = vpack.c.b16 %v6351, %v6350
      %v6379 = vpack.c.b16 %v6353, %v6352
      %v6380 = vpack.c.b16 %v6355, %v6354
      %v6381 = vpack.c.b16 %v6357, %v6356
      %v6391 = vunpack.c.l.b16 %v6246
      %v6392 = vunpack.c.l.b16 %v6247
      %v6393 = vunpack.c.l.b16 %v6248
      %v6394 = vunpack.c.l.b16 %v6249
      %v6395 = vunpack.c.l.b16 %v6250
      %v6396 = vunpack.c.l.b16 %v6251
      %v6397 = vunpack.c.l.b16 %v6252
      %v6398 = vunpack.c.l.b16 %v6253
      %v6399 = vunpack.c.l.b16 %v6254
      %v6400 = vpack.c.b16 %v6392, %v6391
      %v6401 = vpack.c.b16 %v6394, %v6393
      %v6402 = vpack.c.b16 %v6396, %v6395
      %v6403 = vpack.c.b16 %v6398, %v6397
      %v6404 = vpack.c.b16 %v6399, %v6399
      %vm6409 = vcmask 588800
      %v6411 = vsel %vm6409, %v6358, 0
      %v6414 = vsel %vm6409, %v6359, 0
      %v6417 = vsel %vm6409, %v6360, 0
      %v6420 = vsel %vm6409, %v6361, 0
      %v6423 = vsel %vm6409, %v6362, 0
      %v6426 = vsel %vm6409, %v6363, 0
      %v6429 = vsel %vm6409, %v6364, 0
      %v6432 = vsel %vm6409, %v6365, 0
      %v6435 = vsel %vm6409, %v6366, 0
      %v6438 = vsel %vm6409, %v6367, 0
      %v6441 = vsel %vm6409, %v6368, 0
      %v6444 = vsel %vm6409, %v6369, 0
      %v6447 = vsel %vm6409, %v6370, 0
      %v6450 = vsel %vm6409, %v6371, 0
      %v6453 = vsel %vm6409, %v6372, 0
      %v6456 = vsel %vm6409, %v6373, 0
      %v6459 = vsel %vm6409, %v6374, 0
      %v6462 = vsel %vm6409, %v6375, 0
      %v6465 = vsel %vm6409, %v6376, 0
      %v6468 = vsel %vm6409, %v6377, 0
      %v6471 = vsel %vm6409, %v6378, 0
      %v6474 = vsel %vm6409, %v6379, 0
      %v6477 = vsel %vm6409, %v6380, 0
      %v6480 = vsel %vm6409, %v6381, 0
      %vm6482 = vcmask 1043456
      %v6484 = vsel %vm6482, %v6404, 0
      %6486 = vmatprep.subr.bf16.mxu0 0
      %6487 = vmatpush1.bf16.msra.mxu0 0
      %6488 = vmatprep.subr.bf16.mxu0 0
      %6489 = vmatpush1.bf16.msra.mxu0 0
      %6490 = vmatprep.subr.bf16.mxu0 0
      %6491 = vmatpush1.bf16.msra.mxu0 0
      %6492 = vmatprep.subr.bf16.mxu0 0
      %6493 = vmatpush1.bf16.msra.mxu0 %v6484
      %6494 = vmatprep.subr.bf16.mxu0 0
      %6495 = vmatpush1.bf16.msra.mxu0 %v6403
      %6496 = vmatprep.subr.bf16.mxu0 0
      %6497 = vmatpush1.bf16.msra.mxu0 %v6402
      %6498 = vmatprep.subr.bf16.mxu0 0
      %6499 = vmatpush1.bf16.msra.mxu0 %v6401
      %6500 = vmatprep.subr.bf16.mxu0 0
      %6501 = vmatpush1.bf16.msra.mxu0 %v6400
      %6502 = vmatprep.subr.bf16.mxu0 0
      %6503 = vmatpush2.bf16.msra.mxu0 0
      %6504 = vmatprep.subr.bf16.mxu0 0
      %6505 = vmatpush2.bf16.msra.mxu0 0
      %6506 = vmatprep.subr.bf16.mxu0 0
      %6507 = vmatpush2.bf16.msra.mxu0 0
      %6508 = vmatprep.subr.bf16.mxu0 0
      %6509 = vmatpush2.bf16.msra.mxu0 0
      %6510 = vmatprep.subr.bf16.mxu0 0
      %6511 = vmatpush2.bf16.msra.mxu0 0
      %6512 = vmatprep.subr.bf16.mxu0 0
      %6513 = vmatpush2.bf16.msra.mxu0 0
      %6514 = vmatprep.subr.bf16.mxu0 0
      %6515 = vmatpush2.bf16.msra.mxu0 0
      %6516 = vmatprep.subr.bf16.mxu0 0
      %6517 = vmatpush2.bf16.msra.mxu0 0
      %6518 = vmatprep.mubr.bf16.mxu0 0
      %6519 = vmatmul.mubr.bf16.gmra.mxu0 %v6411
      %v6520 = vpop.f32.mrf.mxu0
      %v6521 = vadd.f32 %v6260, %v6520
      %v6522 = vpop.f32.mrf.mxu0
      %v6523 = vpop.f32.mrf.mxu0
      %v6524 = vadd.f32 %v6260, %v6523
      %v6525 = vpop.f32.mrf.mxu0
      %6526 = vmatprep.mubr.bf16.mxu0 0
      %6527 = vmatmul.mubr.bf16.gmra.mxu0 %v6414
      %v6528 = vpop.f32.mrf.mxu0
      %v6529 = vadd.f32 %v6260, %v6528
      %v6530 = vpop.f32.mrf.mxu0
      %v6531 = vpop.f32.mrf.mxu0
      %v6532 = vadd.f32 %v6260, %v6531
      %v6533 = vpop.f32.mrf.mxu0
      %6534 = vmatprep.mubr.bf16.mxu0 0
      %6535 = vmatmul.mubr.bf16.gmra.mxu0 %v6417
      %v6536 = vpop.f32.mrf.mxu0
      %v6537 = vadd.f32 %v6260, %v6536
      %v6538 = vpop.f32.mrf.mxu0
      %v6539 = vpop.f32.mrf.mxu0
      %v6540 = vadd.f32 %v6260, %v6539
      %v6541 = vpop.f32.mrf.mxu0
      %6542 = vmatprep.mubr.bf16.mxu0 0
      %6543 = vmatmul.mubr.bf16.gmra.mxu0 %v6420
      %v6544 = vpop.f32.mrf.mxu0
      %v6545 = vadd.f32 %v6260, %v6544
      %v6546 = vpop.f32.mrf.mxu0
      %v6547 = vpop.f32.mrf.mxu0
      %v6548 = vadd.f32 %v6260, %v6547
      %v6549 = vpop.f32.mrf.mxu0
      %6550 = vmatprep.mubr.bf16.mxu0 0
      %6551 = vmatmul.mubr.bf16.gmra.mxu0 %v6423
      %v6552 = vpop.f32.mrf.mxu0
      %v6553 = vadd.f32 %v6260, %v6552
      %v6554 = vpop.f32.mrf.mxu0
      %v6555 = vpop.f32.mrf.mxu0
      %v6556 = vadd.f32 %v6260, %v6555
      %v6557 = vpop.f32.mrf.mxu0
      %6558 = vmatprep.mubr.bf16.mxu0 0
      %6559 = vmatmul.mubr.bf16.gmra.mxu0 %v6426
      %v6560 = vpop.f32.mrf.mxu0
      %v6561 = vadd.f32 %v6260, %v6560
      %v6562 = vpop.f32.mrf.mxu0
      %v6563 = vpop.f32.mrf.mxu0
      %v6564 = vadd.f32 %v6260, %v6563
      %v6565 = vpop.f32.mrf.mxu0
      %6566 = vmatprep.mubr.bf16.mxu0 0
      %6567 = vmatmul.mubr.bf16.gmra.mxu0 %v6429
      %v6568 = vpop.f32.mrf.mxu0
      %v6569 = vadd.f32 %v6260, %v6568
      %v6570 = vpop.f32.mrf.mxu0
      %v6571 = vpop.f32.mrf.mxu0
      %v6572 = vadd.f32 %v6260, %v6571
      %v6573 = vpop.f32.mrf.mxu0
      %6574 = vmatprep.mubr.bf16.mxu0 0
      %6575 = vmatmul.mubr.bf16.gmra.mxu0 %v6432
      %v6576 = vpop.f32.mrf.mxu0
      %v6577 = vadd.f32 %v6260, %v6576
      %v6578 = vpop.f32.mrf.mxu0
      %v6579 = vpop.f32.mrf.mxu0
      %v6580 = vadd.f32 %v6260, %v6579
      %v6581 = vpop.f32.mrf.mxu0
      %6582 = vmatprep.mubr.bf16.mxu0 0
      %6583 = vmatmul.mubr.bf16.gmra.mxu0 %v6435
      %v6584 = vpop.f32.mrf.mxu0
      %v6585 = vadd.f32 %v6260, %v6584
      %v6586 = vpop.f32.mrf.mxu0
      %v6587 = vpop.f32.mrf.mxu0
      %v6588 = vadd.f32 %v6260, %v6587
      %v6589 = vpop.f32.mrf.mxu0
      %6590 = vmatprep.mubr.bf16.mxu0 0
      %6591 = vmatmul.mubr.bf16.gmra.mxu0 %v6438
      %v6592 = vpop.f32.mrf.mxu0
      %v6593 = vadd.f32 %v6260, %v6592
      %v6594 = vpop.f32.mrf.mxu0
      %v6595 = vpop.f32.mrf.mxu0
      %v6596 = vadd.f32 %v6260, %v6595
      %v6597 = vpop.f32.mrf.mxu0
      %6598 = vmatprep.mubr.bf16.mxu0 0
      %6599 = vmatmul.mubr.bf16.gmra.mxu0 %v6441
      %v6600 = vpop.f32.mrf.mxu0
      %v6601 = vadd.f32 %v6260, %v6600
      %v6602 = vpop.f32.mrf.mxu0
      %v6603 = vpop.f32.mrf.mxu0
      %v6604 = vadd.f32 %v6260, %v6603
      %v6605 = vpop.f32.mrf.mxu0
      %6606 = vmatprep.mubr.bf16.mxu0 0
      %6607 = vmatmul.mubr.bf16.gmra.mxu0 %v6444
      %v6608 = vpop.f32.mrf.mxu0
      %v6609 = vadd.f32 %v6260, %v6608
      %v6610 = vpop.f32.mrf.mxu0
      %v6611 = vpop.f32.mrf.mxu0
      %v6612 = vadd.f32 %v6260, %v6611
      %v6613 = vpop.f32.mrf.mxu0
      %6614 = vmatprep.mubr.bf16.mxu0 0
      %6615 = vmatmul.mubr.bf16.gmra.mxu0 %v6447
      %v6616 = vpop.f32.mrf.mxu0
      %v6617 = vadd.f32 %v6260, %v6616
      %v6618 = vpop.f32.mrf.mxu0
      %v6619 = vpop.f32.mrf.mxu0
      %v6620 = vadd.f32 %v6260, %v6619
      %v6621 = vpop.f32.mrf.mxu0
      %6622 = vmatprep.mubr.bf16.mxu0 0
      %6623 = vmatmul.mubr.bf16.gmra.mxu0 %v6450
      %v6624 = vpop.f32.mrf.mxu0
      %v6625 = vadd.f32 %v6260, %v6624
      %v6626 = vpop.f32.mrf.mxu0
      %v6627 = vpop.f32.mrf.mxu0
      %v6628 = vadd.f32 %v6260, %v6627
      %v6629 = vpop.f32.mrf.mxu0
      %6630 = vmatprep.mubr.bf16.mxu0 0
      %6631 = vmatmul.mubr.bf16.gmra.mxu0 %v6453
      %v6632 = vpop.f32.mrf.mxu0
      %v6633 = vadd.f32 %v6260, %v6632
      %v6634 = vpop.f32.mrf.mxu0
      %v6635 = vpop.f32.mrf.mxu0
      %v6636 = vadd.f32 %v6260, %v6635
      %v6637 = vpop.f32.mrf.mxu0
      %6638 = vmatprep.mubr.bf16.mxu0 0
      %6639 = vmatmul.mubr.bf16.gmra.mxu0 %v6456
      %v6640 = vpop.f32.mrf.mxu0
      %v6641 = vadd.f32 %v6260, %v6640
      %v6642 = vpop.f32.mrf.mxu0
      %v6643 = vpop.f32.mrf.mxu0
      %v6644 = vadd.f32 %v6260, %v6643
      %v6645 = vpop.f32.mrf.mxu0
      %6646 = vmatprep.mubr.bf16.mxu0 0
      %6647 = vmatmul.mubr.bf16.gmra.mxu0 %v6459
      %v6648 = vpop.f32.mrf.mxu0
      %v6649 = vadd.f32 %v6260, %v6648
      %v6650 = vpop.f32.mrf.mxu0
      %v6651 = vpop.f32.mrf.mxu0
      %v6652 = vadd.f32 %v6260, %v6651
      %v6653 = vpop.f32.mrf.mxu0
      %6654 = vmatprep.mubr.bf16.mxu0 0
      %6655 = vmatmul.mubr.bf16.gmra.mxu0 %v6462
      %v6656 = vpop.f32.mrf.mxu0
      %v6657 = vadd.f32 %v6260, %v6656
      %v6658 = vpop.f32.mrf.mxu0
      %v6659 = vpop.f32.mrf.mxu0
      %v6660 = vadd.f32 %v6260, %v6659
      %v6661 = vpop.f32.mrf.mxu0
      %6662 = vmatprep.mubr.bf16.mxu0 0
      %6663 = vmatmul.mubr.bf16.gmra.mxu0 %v6465
      %v6664 = vpop.f32.mrf.mxu0
      %v6665 = vadd.f32 %v6260, %v6664
      %v6666 = vpop.f32.mrf.mxu0
      %v6667 = vpop.f32.mrf.mxu0
      %v6668 = vadd.f32 %v6260, %v6667
      %v6669 = vpop.f32.mrf.mxu0
      %6670 = vmatprep.mubr.bf16.mxu0 0
      %6671 = vmatmul.mubr.bf16.gmra.mxu0 %v6468
      %v6672 = vpop.f32.mrf.mxu0
      %v6673 = vadd.f32 %v6260, %v6672
      %v6674 = vpop.f32.mrf.mxu0
      %v6675 = vpop.f32.mrf.mxu0
      %v6676 = vadd.f32 %v6260, %v6675
      %v6677 = vpop.f32.mrf.mxu0
      %6678 = vmatprep.mubr.bf16.mxu0 0
      %6679 = vmatmul.mubr.bf16.gmra.mxu0 %v6471
      %v6680 = vpop.f32.mrf.mxu0
      %v6681 = vadd.f32 %v6260, %v6680
      %v6682 = vpop.f32.mrf.mxu0
      %v6683 = vpop.f32.mrf.mxu0
      %v6684 = vadd.f32 %v6260, %v6683
      %v6685 = vpop.f32.mrf.mxu0
      %6686 = vmatprep.mubr.bf16.mxu0 0
      %6687 = vmatmul.mubr.bf16.gmra.mxu0 %v6474
      %v6688 = vpop.f32.mrf.mxu0
      %v6689 = vadd.f32 %v6260, %v6688
      %v6690 = vpop.f32.mrf.mxu0
      %v6691 = vpop.f32.mrf.mxu0
      %v6692 = vadd.f32 %v6260, %v6691
      %v6693 = vpop.f32.mrf.mxu0
      %6694 = vmatprep.mubr.bf16.mxu0 0
      %6695 = vmatmul.mubr.bf16.gmra.mxu0 %v6477
      %v6696 = vpop.f32.mrf.mxu0
      %v6697 = vadd.f32 %v6260, %v6696
      %v6698 = vpop.f32.mrf.mxu0
      %v6699 = vpop.f32.mrf.mxu0
      %v6700 = vadd.f32 %v6260, %v6699
      %v6701 = vpop.f32.mrf.mxu0
      %6702 = vmatprep.mubr.bf16.mxu0 0
      %6703 = vmatmul.mubr.bf16.gmra.mxu0 %v6480
      %v6704 = vpop.f32.mrf.mxu0
      %v6705 = vadd.f32 %v6260, %v6704
      %v6706 = vpop.f32.mrf.mxu0
      %v6707 = vpop.f32.mrf.mxu0
      %v6708 = vadd.f32 %v6260, %v6707
      %v6709 = vpop.f32.mrf.mxu0
      %6710 = vdwg.mxu0
      %v6711 = vmax.f32 %v6521, 0.0
      %v6712 = vmax.f32 %v6524, 0.0
      %v6713 = vmax.f32 %v6529, 0.0
      %v6714 = vmax.f32 %v6532, 0.0
      %v6715 = vmax.f32 %v6537, 0.0
      %v6716 = vmax.f32 %v6540, 0.0
      %v6717 = vmax.f32 %v6545, 0.0
      %v6718 = vmax.f32 %v6548, 0.0
      %v6719 = vmax.f32 %v6553, 0.0
      %v6720 = vmax.f32 %v6556, 0.0
      %v6721 = vmax.f32 %v6561, 0.0
      %v6722 = vmax.f32 %v6564, 0.0
      %v6723 = vmax.f32 %v6569, 0.0
      %v6724 = vmax.f32 %v6572, 0.0
      %v6725 = vmax.f32 %v6577, 0.0
      %v6726 = vmax.f32 %v6580, 0.0
      %v6727 = vmax.f32 %v6585, 0.0
      %v6728 = vmax.f32 %v6588, 0.0
      %v6729 = vmax.f32 %v6593, 0.0
      %v6730 = vmax.f32 %v6596, 0.0
      %v6731 = vmax.f32 %v6601, 0.0
      %v6732 = vmax.f32 %v6604, 0.0
      %v6733 = vmax.f32 %v6609, 0.0
      %v6734 = vmax.f32 %v6612, 0.0
      %v6735 = vmax.f32 %v6617, 0.0
      %v6736 = vmax.f32 %v6620, 0.0
      %v6737 = vmax.f32 %v6625, 0.0
      %v6738 = vmax.f32 %v6628, 0.0
      %v6739 = vmax.f32 %v6633, 0.0
      %v6740 = vmax.f32 %v6636, 0.0
      %v6741 = vmax.f32 %v6641, 0.0
      %v6742 = vmax.f32 %v6644, 0.0
      %v6743 = vmax.f32 %v6649, 0.0
      %v6744 = vmax.f32 %v6652, 0.0
      %v6745 = vmax.f32 %v6657, 0.0
      %v6746 = vmax.f32 %v6660, 0.0
      %v6747 = vmax.f32 %v6665, 0.0
      %v6748 = vmax.f32 %v6668, 0.0
      %v6749 = vmax.f32 %v6673, 0.0
      %v6750 = vmax.f32 %v6676, 0.0
      %v6751 = vmax.f32 %v6681, 0.0
      %v6752 = vmax.f32 %v6684, 0.0
      %v6753 = vmax.f32 %v6689, 0.0
      %v6754 = vmax.f32 %v6692, 0.0
      %v6755 = vmax.f32 %v6697, 0.0
      %v6756 = vmax.f32 %v6700, 0.0
      %v6757 = vmax.f32 %v6705, 0.0
      %v6758 = vmax.f32 %v6708, 0.0
      %vm6759 = vcmask 64514
      %6760 = vst.msk [vmem:[%s224 - $0x2] sm:$0xfc] %vm6759, %v6711
      %vm6761 = vcmask 64512
      %6762 = vst.msk [vmem:[%s224 + $0x6] sm:$0xff] %vm6761, %v6712
      %vm6763 = vcmask 58368
      %6764 = vst.msk [vmem:[%s224 + $0xe] sm:$0x3] %vm6763, %v6713
      %6765 = vst.msk [vmem:[%s224 + $0xe] sm:$0xfc] %vm6759, %v6714
      %6766 = vst.msk [vmem:[%s224 + $0x16] sm:$0xff] %vm6761, %v6715
      %6767 = vst.msk [vmem:[%s224 + $0x1e] sm:$0x3] %vm6763, %v6716
      %6768 = vst.msk [vmem:[%s224 + $0x1e] sm:$0xfc] %vm6759, %v6717
      %6769 = vst.msk [vmem:[%s224 + $0x26] sm:$0xff] %vm6761, %v6718
      %6770 = vst.msk [vmem:[%s224 + $0x2e] sm:$0x3] %vm6763, %v6719
      %6771 = vst.msk [vmem:[%s224 + $0x2e] sm:$0xfc] %vm6759, %v6720
      %6772 = vst.msk [vmem:[%s224 + $0x36] sm:$0xff] %vm6761, %v6721
      %6773 = vst.msk [vmem:[%s224 + $0x3e] sm:$0x3] %vm6763, %v6722
      %6774 = vst.msk [vmem:[%s224 + $0x3e] sm:$0xfc] %vm6759, %v6723
      %6775 = vst.msk [vmem:[%s224 + $0x46] sm:$0xff] %vm6761, %v6724
      %6776 = vst.msk [vmem:[%s224 + $0x4e] sm:$0x3] %vm6763, %v6725
      %6777 = vst.msk [vmem:[%s224 + $0x4e] sm:$0xfc] %vm6759, %v6726
      %6778 = vst.msk [vmem:[%s224 + $0x56] sm:$0xff] %vm6761, %v6727
      %6779 = vst.msk [vmem:[%s224 + $0x5e] sm:$0x3] %vm6763, %v6728
      %6780 = vst.msk [vmem:[%s224 + $0x5e] sm:$0xfc] %vm6759, %v6729
      %6781 = vst.msk [vmem:[%s224 + $0x66] sm:$0xff] %vm6761, %v6730
      %6782 = vst.msk [vmem:[%s224 + $0x6e] sm:$0x3] %vm6763, %v6731
      %6783 = vst.msk [vmem:[%s224 + $0x6e] sm:$0xfc] %vm6759, %v6732
      %6784 = vst.msk [vmem:[%s224 + $0x76] sm:$0xff] %vm6761, %v6733
      %6785 = vst.msk [vmem:[%s224 + $0x7e] sm:$0x3] %vm6763, %v6734
      %6786 = vst.msk [vmem:[%s224 + $0x7e] sm:$0xfc] %vm6759, %v6735
      %6787 = vst.msk [vmem:[%s224 + $0x86] sm:$0xff] %vm6761, %v6736
      %6788 = vst.msk [vmem:[%s224 + $0x8e] sm:$0x3] %vm6763, %v6737
      %6789 = vst.msk [vmem:[%s224 + $0x8e] sm:$0xfc] %vm6759, %v6738
      %6790 = vst.msk [vmem:[%s224 + $0x96] sm:$0xff] %vm6761, %v6739
      %6791 = vst.msk [vmem:[%s224 + $0x9e] sm:$0x3] %vm6763, %v6740
      %6792 = vst.msk [vmem:[%s224 + $0x9e] sm:$0xfc] %vm6759, %v6741
      %6793 = vst.msk [vmem:[%s224 + $0xa6] sm:$0xff] %vm6761, %v6742
      %6794 = vst.msk [vmem:[%s224 + $0xae] sm:$0x3] %vm6763, %v6743
      %6795 = vst.msk [vmem:[%s224 + $0xae] sm:$0xfc] %vm6759, %v6744
      %6796 = vst.msk [vmem:[%s224 + $0xb6] sm:$0xff] %vm6761, %v6745
      %6797 = vst.msk [vmem:[%s224 + $0xbe] sm:$0x3] %vm6763, %v6746
      %6798 = vst.msk [vmem:[%s224 + $0xbe] sm:$0xfc] %vm6759, %v6747
      %6799 = vst.msk [vmem:[%s224 + $0xc6] sm:$0xff] %vm6761, %v6748
      %6800 = vst.msk [vmem:[%s224 + $0xce] sm:$0x3] %vm6763, %v6749
      %6801 = vst.msk [vmem:[%s224 + $0xce] sm:$0xfc] %vm6759, %v6750
      %6802 = vst.msk [vmem:[%s224 + $0xd6] sm:$0xff] %vm6761, %v6751
      %6803 = vst.msk [vmem:[%s224 + $0xde] sm:$0x3] %vm6763, %v6752
      %6804 = vst.msk [vmem:[%s224 + $0xde] sm:$0xfc] %vm6759, %v6753
      %6805 = vst.msk [vmem:[%s224 + $0xe6] sm:$0xff] %vm6761, %v6754
      %6806 = vst.msk [vmem:[%s224 + $0xee] sm:$0x3] %vm6763, %v6755
      %6807 = vst.msk [vmem:[%s224 + $0xee] sm:$0xfc] %vm6759, %v6756
      %6808 = vst.msk [vmem:[%s224 + $0xf6] sm:$0xff] %vm6761, %v6757
      %6809 = vst.msk [vmem:[%s224 + $0xfe] sm:$0x3] %vm6763, %v6758
      %p6810 = scmp.lt.s32.totalorder %s16, 1
      %s6811 = scalar_select %p6810, %s16, 1
      %s6812 = smul.addr %s6811, 32
      %s6813 = smul.addr %s6812, 8
      %s6814 = scalar_lea.vmem %s5, %s6813
      // Predicated region
      $region41: #{double_conv_forward.1} parent=39 // pred_check
        %p6815 = pneg %p144
      $region42: #{double_conv_forward.1} parent=39 // pred_check_branch
        %6817 = sbr.rel (%p6815) target = $region44
      $region43: #{double_conv_forward.1} parent=39 // pred_region
        _
      $region44: #{double_conv_forward.1} parent=39 // pred_fallthru
        _
    $region40: #{double_conv_forward.1} parent=5 // pred_fallthru
      _
    %p6818 = scmp.le.s32.totalorder 2, %s11
    // Predicated region
    $region45: #{double_conv_forward.1} parent=5 // pred_check
      %p6819 = pneg %p6818
    $region46: #{double_conv_forward.1} parent=5 // pred_check_branch
      %6821 = sbr.rel (%p6819) target = $region48
    $region47: #{double_conv_forward.1} parent=5 // pred_region
      %s6822 = ssub.s32 %s11, 2
      // Predicated region
      $region49: #{double_conv_forward.1} parent=47 // pred_check
        %p6823 = pneg %p150
      $region50: #{double_conv_forward.1} parent=47 // pred_check_branch
        %6825 = sbr.rel (%p6823) target = $region52
      $region51: #{double_conv_forward.1} parent=47 // pred_region
        %p6826 = scmp.lt.s32.totalorder %s17, 1
        %s6827 = scalar_select %p6826, %s17, 1
        %s6828 = smul.addr %s6827, 32
        %s6829 = smul.addr %s6828, 8
        %s6830 = scalar_lea.vmem %s5, %s6829
      $region52: #{double_conv_forward.1} parent=47 // pred_fallthru
        _
    $region48: #{double_conv_forward.1} parent=5 // pred_fallthru
      _
  $region6: #{double_conv_forward.1} parent=0 // loop_footer
    %s15 = sadd.s32 1, %s11
  $region7: #{double_conv_forward.1} parent=0 // loop_footer_branch
    %10 = sbr.rel target = $region3
  $region8: #{double_conv_forward.1} parent=0 // loop_exit
    _

</llo_original>
